<compile_context>
chip_gen: v7x
topology: tpu7x:2x2x1
jax: 0.10.0
libtpu: 0.0.40
codegen_flags: <defaults>
</compile_context>

<pallas_src>
import jax
import jax.numpy as jnp
from jax.experimental import pallas as pl
from jax.experimental.pallas import tpu as pltpu


_VMEM_LIMIT = 32 * 1024 * 1024  # explicit scoped-VMEM budget (portable to v7x's 64 MiB)


# --------------------------------------------------------------------------
# Fused Conv3x3('same') + bias + ReLU + MaxPool2x2 kernel (one image / grid step).
# --------------------------------------------------------------------------

def _make_conv_relu_pool_kernel(H, W, Cin, Cout):
    Ho, Wo = H // 2, W // 2

    def kernel(xp_ref, w_ref, b_ref, o_ref, patch_ref, row_ref):
        # xp_ref   : (1, H+2, W+2, Cin)  zero-padded NHWC image block
        # w_ref    : (9*Cin, Cout)       folded 3x3 weights (resident)
        # b_ref    : (1, Cout)
        # o_ref    : (1, Ho, Wo, Cout)   pooled output block
        # patch_ref: (H*W, 9*Cin)        VMEM scratch (im2col built in-kernel)
        # row_ref  : (Ho, W, Cout)       VMEM scratch (vertically pooled rows)

        # Build the im2col patch matrix in VMEM: 9 shifted windows of the padded
        # block laid out along the contraction (lane) dimension.
        t = 0
        for ky in range(3):
            for kx in range(3):
                piece = xp_ref[0, ky:ky + H, kx:kx + W, :]            # (H, W, Cin)
                patch_ref[:, t * Cin:(t + 1) * Cin] = piece.reshape(H * W, Cin)
                t += 1

        # Single MXU matmul with K = 9*Cin (replaces 9 tiny K=Cin dots + add chain).
        # TODO(synk): on v6e/v7x the dot operands could be cast to bf16 (f32 accum)
        # for ~2x traffic/footprint; kept f32 to stay numerically faithful to torch.
        y = jnp.dot(patch_ref[...], w_ref[...],
                    preferred_element_type=jnp.float32)               # (H*W, Cout)
        y = jnp.maximum(y + b_ref[...], 0.0)

        # Fused MaxPool2d(2,2):
        #  vertical: rows h=2i and h=2i+1 are exactly W apart -> aligned slices.
        y = y.reshape(Ho, 2 * W, Cout)
        row_ref[...] = jnp.maximum(y[:, :W, :], y[:, W:, :])          # (Ho, W, Cout)
        #  horizontal: even/odd columns via stride-2 sublane reads from scratch.
        left = row_ref[:, pl.ds(0, Wo, stride=2), :]
        right = row_ref[:, pl.ds(1, Wo, stride=2), :]
        o_ref[0] = jnp.maximum(left, right)                           # (Ho, Wo, Cout)

    return kernel


def conv_relu_pool(x_nhwc, w9, b_row):
    """x_nhwc: (N,H,W,Cin); w9: (9*Cin,Cout); b_row: (1,Cout) -> (N,H/2,W/2,Cout)."""
    N, H, W, Cin = x_nhwc.shape
    Cout = w9.shape[1]
    Ho, Wo = H // 2, W // 2
    xp = jnp.pad(x_nhwc, ((0, 0), (1, 1), (1, 1), (0, 0)))            # 'same' pad=1
    kernel = _make_conv_relu_pool_kernel(H, W, Cin, Cout)
    return pl.pallas_call(
        kernel,
        out_shape=jax.ShapeDtypeStruct((N, Ho, Wo, Cout), jnp.float32),
        grid=(N,),
        in_specs=[
            pl.BlockSpec((1, H + 2, W + 2, Cin), lambda n: (n, 0, 0, 0)),
            pl.BlockSpec((9 * Cin, Cout), lambda n: (0, 0)),          # resident weights
            pl.BlockSpec((1, Cout), lambda n: (0, 0)),
        ],
        out_specs=pl.BlockSpec((1, Ho, Wo, Cout), lambda n: (n, 0, 0, 0)),
        scratch_shapes=[
            pltpu.VMEM((H * W, 9 * Cin), jnp.float32),
            pltpu.VMEM((Ho, W, Cout), jnp.float32),
        ],
        compiler_params=pltpu.CompilerParams(
            dimension_semantics=("parallel",),
            vmem_limit_bytes=_VMEM_LIMIT),
    )(xp, w9, b_row)


# --------------------------------------------------------------------------
# Fused 3-layer MLP head (Linear-ReLU-Linear-ReLU-Linear), batch-tiled grid.
# --------------------------------------------------------------------------

def _mlp3_kernel(x_ref, w1_ref, b1_ref, w2_ref, b2_ref, w3_ref, b3_ref, o_ref):
    h = jnp.dot(x_ref[...], w1_ref[...], preferred_element_type=jnp.float32) + b1_ref[...]
    h = jnp.maximum(h, 0.0)
    h = jnp.dot(h, w2_ref[...], preferred_element_type=jnp.float32) + b2_ref[...]
    h = jnp.maximum(h, 0.0)
    o_ref[...] = jnp.dot(h, w3_ref[...], preferred_element_type=jnp.float32) + b3_ref[...]


def _batch_tile(n):
    for t in (256, 128, 64, 32, 16, 8):
        if n % t == 0:
            return t
    return n  # small / odd batches: one whole-batch block


def classifier(x, p, out_dim):
    """x: (N, d_in) NHWC-flattened activations -> (N, out_dim) logits."""
    N, d_in = x.shape
    d_hid = p["fc1_w"].shape[1]
    pad_out = p["fc3_w"].shape[1]                  # out_dim padded to 128 lanes
    TN = _batch_tile(N)
    logits = pl.pallas_call(
        _mlp3_kernel,
        out_shape=jax.ShapeDtypeStruct((N, pad_out), jnp.float32),
        grid=(N // TN,),
        in_specs=[
            pl.BlockSpec((TN, d_in), lambda i: (i, 0)),
            pl.BlockSpec((d_in, d_hid), lambda i: (0, 0)),
            pl.BlockSpec((1, d_hid), lambda i: (0, 0)),
            pl.BlockSpec((d_hid, d_hid), lambda i: (0, 0)),
            pl.BlockSpec((1, d_hid), lambda i: (0, 0)),
            pl.BlockSpec((d_hid, pad_out), lambda i: (0, 0)),
            pl.BlockSpec((1, pad_out), lambda i: (0, 0)),
        ],
        out_specs=pl.BlockSpec((TN, pad_out), lambda i: (i, 0)),
        compiler_params=pltpu.CompilerParams(
            dimension_semantics=("parallel",),
            vmem_limit_bytes=_VMEM_LIMIT),
    )(x, p["fc1_w"], p["fc1_b"], p["fc2_w"], p["fc2_b"], p["fc3_w"], p["fc3_b"])
    return logits[:, :out_dim]


# --------------------------------------------------------------------------
# Forward pass + one-time parameter preparation (outside jit).
# --------------------------------------------------------------------------

def cnn_forward(x_nchw, p, out_dim):
    """Matches CNN.forward for float32 NCHW input (uses prepared params)."""
    x = jnp.transpose(x_nchw, (0, 2, 3, 1))        # NCHW -> NHWC (input only, once)
    x = conv_relu_pool(x, p["conv1_w"], p["conv1_b"])
    x = conv_relu_pool(x, p["conv2_w"], p["conv2_b"])
    x = x.reshape(x.shape[0], -1)                  # NHWC flatten (fc1 rows pre-permuted)
    return classifier(x, p, out_dim)
# TODO(synk): get_label (softmax+argmax) is not part of forward(); not implemented as a kernel.


def prepare_params(params, input_hw):
    """One-time layout prep (outside jit): fold conv weights to (9*Cin, Cout),
    permute fc1 rows from torch's channel-major flatten to NHWC flatten order,
    pre-transpose fc weights, and pad the logits dim to a lane-dense 128."""
    H, W = input_hw
    cw1, cb1 = params["conv1"]
    cw2, cb2 = params["conv2"]
    (fw1, fb1), (fw2, fb2), (fw3, fb3) = params["fc"]

    def fold_conv(w):                               # (Cout,Cin,3,3) -> (9*Cin,Cout)
        cin = w.shape[1]
        return jnp.transpose(w, (2, 3, 1, 0)).reshape(9 * cin, w.shape[0])

    C2, H2, W2 = cw2.shape[0], H // 4, W // 4
    d_hid, d_in = fw1.shape
    # fc1 rows reordered: torch flatten order (c,h,w) -> NHWC flatten order (h,w,c).
    w1 = fw1.T.reshape(C2, H2, W2, d_hid).transpose(1, 2, 0, 3).reshape(d_in, d_hid)

    out_dim = fw3.shape[0]
    pad_out = ((out_dim + 127) // 128) * 128
    w3 = jnp.zeros((fw3.shape[1], pad_out), jnp.float32).at[:, :out_dim].set(fw3.T)
    b3 = jnp.zeros((1, pad_out), jnp.float32).at[:, :out_dim].set(fb3)

    return {
        "conv1_w": fold_conv(cw1), "conv1_b": cb1.reshape(1, -1),
        "conv2_w": fold_conv(cw2), "conv2_b": cb2.reshape(1, -1),
        "fc1_w": w1, "fc1_b": fb1.reshape(1, -1),
        "fc2_w": fw2.T, "fc2_b": fb2.reshape(1, -1),
        "fc3_w": w3, "fc3_b": b3,
    }


def init_params(key, input_channels, input_dim, output_dim):
    c1, c2 = 2 * input_channels, 4 * input_channels
    d_in, d_hid = input_dim // 4, input_dim // 8
    ks = jax.random.split(key, 10)

    def u(k, shape, fan_in):
        bound = 1.0 / (fan_in ** 0.5)
        return jax.random.uniform(k, shape, jnp.float32, -bound, bound)

    return {
        "conv1": (u(ks[0], (c1, input_channels, 3, 3), input_channels * 9),
                  u(ks[1], (c1,), input_channels * 9)),
        "conv2": (u(ks[2], (c2, c1, 3, 3), c1 * 9),
                  u(ks[3], (c2,), c1 * 9)),
        "fc": (
            (u(ks[4], (d_hid, d_in), d_in), u(ks[5], (d_hid,), d_in)),
            (u(ks[6], (d_hid, d_hid), d_hid), u(ks[7], (d_hid,), d_hid)),
            (u(ks[8], (output_dim, d_hid), d_hid), u(ks[9], (output_dim,), d_hid)),
        ),
    }


if __name__ == "__main__":
    key = jax.random.PRNGKey(0)
    k_x, k_p = jax.random.split(key)
    N, C, H, W = 2, 4, 16, 16
    input_dim = C * H * W                 # classifier: 256 -> 128 -> 128 -> 10
    output_dim = 10
    x = jax.random.normal(k_x, (N, C, H, W), jnp.float32)   # NCHW like PyTorch
    params = init_params(k_p, C, input_dim, output_dim)
    prepared = prepare_params(params, (H, W))

    fwd = jax.jit(cnn_forward, static_argnames="out_dim")
    logits = fwd(x, prepared, out_dim=output_dim)
    jax.block_until_ready(logits)
    assert logits.shape == (N, output_dim) and logits.dtype == jnp.float32
    print("KERNEL_OK")
</pallas_src>

<mosaic_0001>
module attributes {stable_mosaic.version = 11 : i64} {
  func.func @kernel(%arg0: i32, %arg1: memref<1x18x18x4xf32, #tpu.memory_space<vmem>>, %arg2: memref<36x8xf32, #tpu.memory_space<vmem>>, %arg3: memref<1x8xf32, #tpu.memory_space<vmem>>, %arg4: memref<1x8x8x8xf32, #tpu.memory_space<vmem>>, %arg5: memref<256x36xf32, #tpu.memory_space<vmem>>, %arg6: memref<8x16x8xf32, #tpu.memory_space<vmem>>) attributes {dimension_semantics = [#tpu.dimension_semantics<parallel>], iteration_bounds = array<i64: 2>, scalar_prefetch = 0 : i64, scratch_operands = 2 : i64, tpu.core_type = #tpu.core_type<tc>, window_params = [{transform_indices = @transform_0, window_bounds = array<i64: 1, 18, 18, 4>}, {pipeline_mode = #tpu.pipeline_mode<synchronous>, transform_indices = @transform_1, window_bounds = array<i64: 36, 8>}, {pipeline_mode = #tpu.pipeline_mode<synchronous>, transform_indices = @transform_2, window_bounds = array<i64: 1, 8>}, {transform_indices = @transform_3, window_bounds = array<i64: 1, 8, 8, 8>}]} {
    %c0 = arith.constant 0 : index
    %c0_0 = arith.constant 0 : index
    %c0_1 = arith.constant 0 : index
    %c0_2 = arith.constant 0 : index
    %0 = vector.load %arg1[%c0, %c0_0, %c0_1, %c0_2] : memref<1x18x18x4xf32, #tpu.memory_space<vmem>>, vector<1x16x16x4xf32>
    %1 = vector.shape_cast %0 : vector<1x16x16x4xf32> to vector<16x16x4xf32>
    %2 = vector.shape_cast %1 : vector<16x16x4xf32> to vector<256x4xf32>
    %c0_3 = arith.constant 0 : index
    %c0_4 = arith.constant 0 : index
    %3 = vector.load %arg5[%c0_3, %c0_4] : memref<256x36xf32, #tpu.memory_space<vmem>>, vector<256x4xf32>
    tpu.vector_store %arg5[%c0_3, %c0_4], %2 {strides = array<i32>} : memref<256x36xf32, #tpu.memory_space<vmem>>, vector<256x4xf32>,
    %c0_5 = arith.constant 0 : index
    %c0_6 = arith.constant 0 : index
    %c1 = arith.constant 1 : index
    %c0_7 = arith.constant 0 : index
    %4 = vector.load %arg1[%c0_5, %c0_6, %c1, %c0_7] : memref<1x18x18x4xf32, #tpu.memory_space<vmem>>, vector<1x16x16x4xf32>
    %5 = vector.shape_cast %4 : vector<1x16x16x4xf32> to vector<16x16x4xf32>
    %6 = vector.shape_cast %5 : vector<16x16x4xf32> to vector<256x4xf32>
    %c0_8 = arith.constant 0 : index
    %c4 = arith.constant 4 : index
    %7 = vector.load %arg5[%c0_8, %c4] : memref<256x36xf32, #tpu.memory_space<vmem>>, vector<256x4xf32>
    tpu.vector_store %arg5[%c0_8, %c4], %6 {strides = array<i32>} : memref<256x36xf32, #tpu.memory_space<vmem>>, vector<256x4xf32>,
    %c0_9 = arith.constant 0 : index
    %c0_10 = arith.constant 0 : index
    %c2 = arith.constant 2 : index
    %c0_11 = arith.constant 0 : index
    %8 = vector.load %arg1[%c0_9, %c0_10, %c2, %c0_11] : memref<1x18x18x4xf32, #tpu.memory_space<vmem>>, vector<1x16x16x4xf32>
    %9 = vector.shape_cast %8 : vector<1x16x16x4xf32> to vector<16x16x4xf32>
    %10 = vector.shape_cast %9 : vector<16x16x4xf32> to vector<256x4xf32>
    %c0_12 = arith.constant 0 : index
    %c8 = arith.constant 8 : index
    %11 = vector.load %arg5[%c0_12, %c8] : memref<256x36xf32, #tpu.memory_space<vmem>>, vector<256x4xf32>
    tpu.vector_store %arg5[%c0_12, %c8], %10 {strides = array<i32>} : memref<256x36xf32, #tpu.memory_space<vmem>>, vector<256x4xf32>,
    %c0_13 = arith.constant 0 : index
    %c1_14 = arith.constant 1 : index
    %c0_15 = arith.constant 0 : index
    %c0_16 = arith.constant 0 : index
    %12 = vector.load %arg1[%c0_13, %c1_14, %c0_15, %c0_16] : memref<1x18x18x4xf32, #tpu.memory_space<vmem>>, vector<1x16x16x4xf32>
    %13 = vector.shape_cast %12 : vector<1x16x16x4xf32> to vector<16x16x4xf32>
    %14 = vector.shape_cast %13 : vector<16x16x4xf32> to vector<256x4xf32>
    %c0_17 = arith.constant 0 : index
    %c12 = arith.constant 12 : index
    %15 = vector.load %arg5[%c0_17, %c12] : memref<256x36xf32, #tpu.memory_space<vmem>>, vector<256x4xf32>
    tpu.vector_store %arg5[%c0_17, %c12], %14 {strides = array<i32>} : memref<256x36xf32, #tpu.memory_space<vmem>>, vector<256x4xf32>,
    %c0_18 = arith.constant 0 : index
    %c1_19 = arith.constant 1 : index
    %c1_20 = arith.constant 1 : index
    %c0_21 = arith.constant 0 : index
    %16 = vector.load %arg1[%c0_18, %c1_19, %c1_20, %c0_21] : memref<1x18x18x4xf32, #tpu.memory_space<vmem>>, vector<1x16x16x4xf32>
    %17 = vector.shape_cast %16 : vector<1x16x16x4xf32> to vector<16x16x4xf32>
    %18 = vector.shape_cast %17 : vector<16x16x4xf32> to vector<256x4xf32>
    %c0_22 = arith.constant 0 : index
    %c16 = arith.constant 16 : index
    %19 = vector.load %arg5[%c0_22, %c16] : memref<256x36xf32, #tpu.memory_space<vmem>>, vector<256x4xf32>
    tpu.vector_store %arg5[%c0_22, %c16], %18 {strides = array<i32>} : memref<256x36xf32, #tpu.memory_space<vmem>>, vector<256x4xf32>,
    %c0_23 = arith.constant 0 : index
    %c1_24 = arith.constant 1 : index
    %c2_25 = arith.constant 2 : index
    %c0_26 = arith.constant 0 : index
    %20 = vector.load %arg1[%c0_23, %c1_24, %c2_25, %c0_26] : memref<1x18x18x4xf32, #tpu.memory_space<vmem>>, vector<1x16x16x4xf32>
    %21 = vector.shape_cast %20 : vector<1x16x16x4xf32> to vector<16x16x4xf32>
    %22 = vector.shape_cast %21 : vector<16x16x4xf32> to vector<256x4xf32>
    %c0_27 = arith.constant 0 : index
    %c20 = arith.constant 20 : index
    %23 = vector.load %arg5[%c0_27, %c20] : memref<256x36xf32, #tpu.memory_space<vmem>>, vector<256x4xf32>
    tpu.vector_store %arg5[%c0_27, %c20], %22 {strides = array<i32>} : memref<256x36xf32, #tpu.memory_space<vmem>>, vector<256x4xf32>,
    %c0_28 = arith.constant 0 : index
    %c2_29 = arith.constant 2 : index
    %c0_30 = arith.constant 0 : index
    %c0_31 = arith.constant 0 : index
    %24 = vector.load %arg1[%c0_28, %c2_29, %c0_30, %c0_31] : memref<1x18x18x4xf32, #tpu.memory_space<vmem>>, vector<1x16x16x4xf32>
    %25 = vector.shape_cast %24 : vector<1x16x16x4xf32> to vector<16x16x4xf32>
    %26 = vector.shape_cast %25 : vector<16x16x4xf32> to vector<256x4xf32>
    %c0_32 = arith.constant 0 : index
    %c24 = arith.constant 24 : index
    %27 = vector.load %arg5[%c0_32, %c24] : memref<256x36xf32, #tpu.memory_space<vmem>>, vector<256x4xf32>
    tpu.vector_store %arg5[%c0_32, %c24], %26 {strides = array<i32>} : memref<256x36xf32, #tpu.memory_space<vmem>>, vector<256x4xf32>,
    %c0_33 = arith.constant 0 : index
    %c2_34 = arith.constant 2 : index
    %c1_35 = arith.constant 1 : index
    %c0_36 = arith.constant 0 : index
    %28 = vector.load %arg1[%c0_33, %c2_34, %c1_35, %c0_36] : memref<1x18x18x4xf32, #tpu.memory_space<vmem>>, vector<1x16x16x4xf32>
    %29 = vector.shape_cast %28 : vector<1x16x16x4xf32> to vector<16x16x4xf32>
    %30 = vector.shape_cast %29 : vector<16x16x4xf32> to vector<256x4xf32>
    %c0_37 = arith.constant 0 : index
    %c28 = arith.constant 28 : index
    %31 = vector.load %arg5[%c0_37, %c28] : memref<256x36xf32, #tpu.memory_space<vmem>>, vector<256x4xf32>
    tpu.vector_store %arg5[%c0_37, %c28], %30 {strides = array<i32>} : memref<256x36xf32, #tpu.memory_space<vmem>>, vector<256x4xf32>,
    %c0_38 = arith.constant 0 : index
    %c2_39 = arith.constant 2 : index
    %c2_40 = arith.constant 2 : index
    %c0_41 = arith.constant 0 : index
    %32 = vector.load %arg1[%c0_38, %c2_39, %c2_40, %c0_41] : memref<1x18x18x4xf32, #tpu.memory_space<vmem>>, vector<1x16x16x4xf32>
    %33 = vector.shape_cast %32 : vector<1x16x16x4xf32> to vector<16x16x4xf32>
    %34 = vector.shape_cast %33 : vector<16x16x4xf32> to vector<256x4xf32>
    %c0_42 = arith.constant 0 : index
    %c32 = arith.constant 32 : index
    %35 = vector.load %arg5[%c0_42, %c32] : memref<256x36xf32, #tpu.memory_space<vmem>>, vector<256x4xf32>
    tpu.vector_store %arg5[%c0_42, %c32], %34 {strides = array<i32>} : memref<256x36xf32, #tpu.memory_space<vmem>>, vector<256x4xf32>,
    %c0_43 = arith.constant 0 : index
    %c0_44 = arith.constant 0 : index
    %36 = vector.load %arg5[%c0_43, %c0_44] : memref<256x36xf32, #tpu.memory_space<vmem>>, vector<256x36xf32>
    %c0_45 = arith.constant 0 : index
    %c0_46 = arith.constant 0 : index
    %37 = vector.load %arg2[%c0_45, %c0_46] : memref<36x8xf32, #tpu.memory_space<vmem>>, vector<36x8xf32>
    %cst = arith.constant dense<0.000000e+00> : vector<256x8xf32>
    %38 = tpu.matmul %36, %37, %cst {dimension_numbers = #tpu.dot_dimension_numbers<[1], [0], [0], [1], [0, 0, 1, 1], [], []>} : vector<256x36xf32>, vector<36x8xf32>, vector<256x8xf32> -> vector<256x8xf32>
    %c0_47 = arith.constant 0 : index
    %c0_48 = arith.constant 0 : index
    %39 = vector.load %arg3[%c0_47, %c0_48] : memref<1x8xf32, #tpu.memory_space<vmem>>, vector<1x8xf32>
    %40 = vector.broadcast %39 : vector<1x8xf32> to vector<256x8xf32>
    %41 = arith.addf %38, %40 : vector<256x8xf32>
    %cst_49 = arith.constant 0.000000e+00 : f32
    %42 = vector.broadcast %cst_49 : f32 to vector<256x8xf32>
    %43 = arith.maximumf %41, %42 : vector<256x8xf32>
    %44 = vector.shape_cast %43 : vector<256x8xf32> to vector<8x32x8xf32>
    %45 = vector.extract_strided_slice %44 {offsets = [0, 0, 0], sizes = [8, 16, 8], strides = [1, 1, 1]} : vector<8x32x8xf32> to vector<8x16x8xf32>
    %46 = vector.extract_strided_slice %44 {offsets = [0, 16, 0], sizes = [8, 16, 8], strides = [1, 1, 1]} : vector<8x32x8xf32> to vector<8x16x8xf32>
    %47 = arith.maximumf %45, %46 : vector<8x16x8xf32>
    %c0_50 = arith.constant 0 : index
    %c0_51 = arith.constant 0 : index
    %c0_52 = arith.constant 0 : index
    %48 = vector.load %arg6[%c0_50, %c0_51, %c0_52] : memref<8x16x8xf32, #tpu.memory_space<vmem>>, vector<8x16x8xf32>
    tpu.vector_store %arg6[%c0_50, %c0_51, %c0_52], %47 {strides = array<i32>} : memref<8x16x8xf32, #tpu.memory_space<vmem>>, vector<8x16x8xf32>,
    %c0_53 = arith.constant 0 : index
    %c0_54 = arith.constant 0 : index
    %c0_55 = arith.constant 0 : index
    %49 = tpu.strided_load %arg6[%c0_53, %c0_54, %c0_55] {strides = array<i32: 1, 2, 1>} : memref<8x16x8xf32, #tpu.memory_space<vmem>>, vector<8x8x8xf32>
    %c0_56 = arith.constant 0 : index
    %c1_57 = arith.constant 1 : index
    %c0_58 = arith.constant 0 : index
    %50 = tpu.strided_load %arg6[%c0_56, %c1_57, %c0_58] {strides = array<i32: 1, 2, 1>} : memref<8x16x8xf32, #tpu.memory_space<vmem>>, vector<8x8x8xf32>
    %51 = arith.maximumf %49, %50 : vector<8x8x8xf32>
    %c0_59 = arith.constant 0 : index
    %c0_60 = arith.constant 0 : index
    %c0_61 = arith.constant 0 : index
    %c0_62 = arith.constant 0 : index
    %52 = vector.load %arg4[%c0_59, %c0_60, %c0_61, %c0_62] : memref<1x8x8x8xf32, #tpu.memory_space<vmem>>, vector<1x8x8x8xf32>
    %53 = vector.shape_cast %52 : vector<1x8x8x8xf32> to vector<8x8x8xf32>
    %54 = vector.shape_cast %51 : vector<8x8x8xf32> to vector<1x8x8x8xf32>
    tpu.vector_store %arg4[%c0_59, %c0_60, %c0_61, %c0_62], %54 {strides = array<i32>} : memref<1x8x8x8xf32, #tpu.memory_space<vmem>>, vector<1x8x8x8xf32>,
    return
  }
  func.func @transform_0(%arg0: i32) -> (i32, i32, i32, i32) {
    %c0_i32 = arith.constant 0 : i32
    %c0_i32_0 = arith.constant 0 : i32
    %c0_i32_1 = arith.constant 0 : i32
    %c0_i32_2 = arith.constant 0 : i32
    return %arg0, %c0_i32, %c0_i32_0, %c0_i32_1 : i32, i32, i32, i32
  }
  func.func @transform_1(%arg0: i32) -> (i32, i32) {
    %c0_i32 = arith.constant 0 : i32
    %c0_i32_0 = arith.constant 0 : i32
    %c0_i32_1 = arith.constant 0 : i32
    return %c0_i32, %c0_i32_0 : i32, i32
  }
  func.func @transform_2(%arg0: i32) -> (i32, i32) {
    %c0_i32 = arith.constant 0 : i32
    %c0_i32_0 = arith.constant 0 : i32
    %c0_i32_1 = arith.constant 0 : i32
    return %c0_i32, %c0_i32_0 : i32, i32
  }
  func.func @transform_3(%arg0: i32) -> (i32, i32, i32, i32) {
    %c0_i32 = arith.constant 0 : i32
    %c0_i32_0 = arith.constant 0 : i32
    %c0_i32_1 = arith.constant 0 : i32
    %c0_i32_2 = arith.constant 0 : i32
    return %arg0, %c0_i32, %c0_i32_0, %c0_i32_1 : i32, i32, i32, i32
  }
}

module attributes {stable_mosaic.version = 11 : i64} {
  func.func @kernel(%arg0: i32, %arg1: memref<1x10x10x8xf32, #tpu.memory_space<vmem>>, %arg2: memref<72x16xf32, #tpu.memory_space<vmem>>, %arg3: memref<1x16xf32, #tpu.memory_space<vmem>>, %arg4: memref<1x4x4x16xf32, #tpu.memory_space<vmem>>, %arg5: memref<64x72xf32, #tpu.memory_space<vmem>>, %arg6: memref<4x8x16xf32, #tpu.memory_space<vmem>>) attributes {dimension_semantics = [#tpu.dimension_semantics<parallel>], iteration_bounds = array<i64: 2>, scalar_prefetch = 0 : i64, scratch_operands = 2 : i64, tpu.core_type = #tpu.core_type<tc>, window_params = [{transform_indices = @transform_0, window_bounds = array<i64: 1, 10, 10, 8>}, {pipeline_mode = #tpu.pipeline_mode<synchronous>, transform_indices = @transform_1, window_bounds = array<i64: 72, 16>}, {pipeline_mode = #tpu.pipeline_mode<synchronous>, transform_indices = @transform_2, window_bounds = array<i64: 1, 16>}, {transform_indices = @transform_3, window_bounds = array<i64: 1, 4, 4, 16>}]} {
    %c0 = arith.constant 0 : index
    %c0_0 = arith.constant 0 : index
    %c0_1 = arith.constant 0 : index
    %c0_2 = arith.constant 0 : index
    %0 = vector.load %arg1[%c0, %c0_0, %c0_1, %c0_2] : memref<1x10x10x8xf32, #tpu.memory_space<vmem>>, vector<1x8x8x8xf32>
    %1 = vector.shape_cast %0 : vector<1x8x8x8xf32> to vector<8x8x8xf32>
    %2 = vector.shape_cast %1 : vector<8x8x8xf32> to vector<64x8xf32>
    %c0_3 = arith.constant 0 : index
    %c0_4 = arith.constant 0 : index
    %3 = vector.load %arg5[%c0_3, %c0_4] : memref<64x72xf32, #tpu.memory_space<vmem>>, vector<64x8xf32>
    tpu.vector_store %arg5[%c0_3, %c0_4], %2 {strides = array<i32>} : memref<64x72xf32, #tpu.memory_space<vmem>>, vector<64x8xf32>,
    %c0_5 = arith.constant 0 : index
    %c0_6 = arith.constant 0 : index
    %c1 = arith.constant 1 : index
    %c0_7 = arith.constant 0 : index
    %4 = vector.load %arg1[%c0_5, %c0_6, %c1, %c0_7] : memref<1x10x10x8xf32, #tpu.memory_space<vmem>>, vector<1x8x8x8xf32>
    %5 = vector.shape_cast %4 : vector<1x8x8x8xf32> to vector<8x8x8xf32>
    %6 = vector.shape_cast %5 : vector<8x8x8xf32> to vector<64x8xf32>
    %c0_8 = arith.constant 0 : index
    %c8 = arith.constant 8 : index
    %7 = vector.load %arg5[%c0_8, %c8] : memref<64x72xf32, #tpu.memory_space<vmem>>, vector<64x8xf32>
    tpu.vector_store %arg5[%c0_8, %c8], %6 {strides = array<i32>} : memref<64x72xf32, #tpu.memory_space<vmem>>, vector<64x8xf32>,
    %c0_9 = arith.constant 0 : index
    %c0_10 = arith.constant 0 : index
    %c2 = arith.constant 2 : index
    %c0_11 = arith.constant 0 : index
    %8 = vector.load %arg1[%c0_9, %c0_10, %c2, %c0_11] : memref<1x10x10x8xf32, #tpu.memory_space<vmem>>, vector<1x8x8x8xf32>
    %9 = vector.shape_cast %8 : vector<1x8x8x8xf32> to vector<8x8x8xf32>
    %10 = vector.shape_cast %9 : vector<8x8x8xf32> to vector<64x8xf32>
    %c0_12 = arith.constant 0 : index
    %c16 = arith.constant 16 : index
    %11 = vector.load %arg5[%c0_12, %c16] : memref<64x72xf32, #tpu.memory_space<vmem>>, vector<64x8xf32>
    tpu.vector_store %arg5[%c0_12, %c16], %10 {strides = array<i32>} : memref<64x72xf32, #tpu.memory_space<vmem>>, vector<64x8xf32>,
    %c0_13 = arith.constant 0 : index
    %c1_14 = arith.constant 1 : index
    %c0_15 = arith.constant 0 : index
    %c0_16 = arith.constant 0 : index
    %12 = vector.load %arg1[%c0_13, %c1_14, %c0_15, %c0_16] : memref<1x10x10x8xf32, #tpu.memory_space<vmem>>, vector<1x8x8x8xf32>
    %13 = vector.shape_cast %12 : vector<1x8x8x8xf32> to vector<8x8x8xf32>
    %14 = vector.shape_cast %13 : vector<8x8x8xf32> to vector<64x8xf32>
    %c0_17 = arith.constant 0 : index
    %c24 = arith.constant 24 : index
    %15 = vector.load %arg5[%c0_17, %c24] : memref<64x72xf32, #tpu.memory_space<vmem>>, vector<64x8xf32>
    tpu.vector_store %arg5[%c0_17, %c24], %14 {strides = array<i32>} : memref<64x72xf32, #tpu.memory_space<vmem>>, vector<64x8xf32>,
    %c0_18 = arith.constant 0 : index
    %c1_19 = arith.constant 1 : index
    %c1_20 = arith.constant 1 : index
    %c0_21 = arith.constant 0 : index
    %16 = vector.load %arg1[%c0_18, %c1_19, %c1_20, %c0_21] : memref<1x10x10x8xf32, #tpu.memory_space<vmem>>, vector<1x8x8x8xf32>
    %17 = vector.shape_cast %16 : vector<1x8x8x8xf32> to vector<8x8x8xf32>
    %18 = vector.shape_cast %17 : vector<8x8x8xf32> to vector<64x8xf32>
    %c0_22 = arith.constant 0 : index
    %c32 = arith.constant 32 : index
    %19 = vector.load %arg5[%c0_22, %c32] : memref<64x72xf32, #tpu.memory_space<vmem>>, vector<64x8xf32>
    tpu.vector_store %arg5[%c0_22, %c32], %18 {strides = array<i32>} : memref<64x72xf32, #tpu.memory_space<vmem>>, vector<64x8xf32>,
    %c0_23 = arith.constant 0 : index
    %c1_24 = arith.constant 1 : index
    %c2_25 = arith.constant 2 : index
    %c0_26 = arith.constant 0 : index
    %20 = vector.load %arg1[%c0_23, %c1_24, %c2_25, %c0_26] : memref<1x10x10x8xf32, #tpu.memory_space<vmem>>, vector<1x8x8x8xf32>
    %21 = vector.shape_cast %20 : vector<1x8x8x8xf32> to vector<8x8x8xf32>
    %22 = vector.shape_cast %21 : vector<8x8x8xf32> to vector<64x8xf32>
    %c0_27 = arith.constant 0 : index
    %c40 = arith.constant 40 : index
    %23 = vector.load %arg5[%c0_27, %c40] : memref<64x72xf32, #tpu.memory_space<vmem>>, vector<64x8xf32>
    tpu.vector_store %arg5[%c0_27, %c40], %22 {strides = array<i32>} : memref<64x72xf32, #tpu.memory_space<vmem>>, vector<64x8xf32>,
    %c0_28 = arith.constant 0 : index
    %c2_29 = arith.constant 2 : index
    %c0_30 = arith.constant 0 : index
    %c0_31 = arith.constant 0 : index
    %24 = vector.load %arg1[%c0_28, %c2_29, %c0_30, %c0_31] : memref<1x10x10x8xf32, #tpu.memory_space<vmem>>, vector<1x8x8x8xf32>
    %25 = vector.shape_cast %24 : vector<1x8x8x8xf32> to vector<8x8x8xf32>
    %26 = vector.shape_cast %25 : vector<8x8x8xf32> to vector<64x8xf32>
    %c0_32 = arith.constant 0 : index
    %c48 = arith.constant 48 : index
    %27 = vector.load %arg5[%c0_32, %c48] : memref<64x72xf32, #tpu.memory_space<vmem>>, vector<64x8xf32>
    tpu.vector_store %arg5[%c0_32, %c48], %26 {strides = array<i32>} : memref<64x72xf32, #tpu.memory_space<vmem>>, vector<64x8xf32>,
    %c0_33 = arith.constant 0 : index
    %c2_34 = arith.constant 2 : index
    %c1_35 = arith.constant 1 : index
    %c0_36 = arith.constant 0 : index
    %28 = vector.load %arg1[%c0_33, %c2_34, %c1_35, %c0_36] : memref<1x10x10x8xf32, #tpu.memory_space<vmem>>, vector<1x8x8x8xf32>
    %29 = vector.shape_cast %28 : vector<1x8x8x8xf32> to vector<8x8x8xf32>
    %30 = vector.shape_cast %29 : vector<8x8x8xf32> to vector<64x8xf32>
    %c0_37 = arith.constant 0 : index
    %c56 = arith.constant 56 : index
    %31 = vector.load %arg5[%c0_37, %c56] : memref<64x72xf32, #tpu.memory_space<vmem>>, vector<64x8xf32>
    tpu.vector_store %arg5[%c0_37, %c56], %30 {strides = array<i32>} : memref<64x72xf32, #tpu.memory_space<vmem>>, vector<64x8xf32>,
    %c0_38 = arith.constant 0 : index
    %c2_39 = arith.constant 2 : index
    %c2_40 = arith.constant 2 : index
    %c0_41 = arith.constant 0 : index
    %32 = vector.load %arg1[%c0_38, %c2_39, %c2_40, %c0_41] : memref<1x10x10x8xf32, #tpu.memory_space<vmem>>, vector<1x8x8x8xf32>
    %33 = vector.shape_cast %32 : vector<1x8x8x8xf32> to vector<8x8x8xf32>
    %34 = vector.shape_cast %33 : vector<8x8x8xf32> to vector<64x8xf32>
    %c0_42 = arith.constant 0 : index
    %c64 = arith.constant 64 : index
    %35 = vector.load %arg5[%c0_42, %c64] : memref<64x72xf32, #tpu.memory_space<vmem>>, vector<64x8xf32>
    tpu.vector_store %arg5[%c0_42, %c64], %34 {strides = array<i32>} : memref<64x72xf32, #tpu.memory_space<vmem>>, vector<64x8xf32>,
    %c0_43 = arith.constant 0 : index
    %c0_44 = arith.constant 0 : index
    %36 = vector.load %arg5[%c0_43, %c0_44] : memref<64x72xf32, #tpu.memory_space<vmem>>, vector<64x72xf32>
    %c0_45 = arith.constant 0 : index
    %c0_46 = arith.constant 0 : index
    %37 = vector.load %arg2[%c0_45, %c0_46] : memref<72x16xf32, #tpu.memory_space<vmem>>, vector<72x16xf32>
    %cst = arith.constant dense<0.000000e+00> : vector<64x16xf32>
    %38 = tpu.matmul %36, %37, %cst {dimension_numbers = #tpu.dot_dimension_numbers<[1], [0], [0], [1], [0, 0, 1, 1], [], []>} : vector<64x72xf32>, vector<72x16xf32>, vector<64x16xf32> -> vector<64x16xf32>
    %c0_47 = arith.constant 0 : index
    %c0_48 = arith.constant 0 : index
    %39 = vector.load %arg3[%c0_47, %c0_48] : memref<1x16xf32, #tpu.memory_space<vmem>>, vector<1x16xf32>
    %40 = vector.broadcast %39 : vector<1x16xf32> to vector<64x16xf32>
    %41 = arith.addf %38, %40 : vector<64x16xf32>
    %cst_49 = arith.constant 0.000000e+00 : f32
    %42 = vector.broadcast %cst_49 : f32 to vector<64x16xf32>
    %43 = arith.maximumf %41, %42 : vector<64x16xf32>
    %44 = vector.shape_cast %43 : vector<64x16xf32> to vector<4x16x16xf32>
    %45 = vector.extract_strided_slice %44 {offsets = [0, 0, 0], sizes = [4, 8, 16], strides = [1, 1, 1]} : vector<4x16x16xf32> to vector<4x8x16xf32>
    %46 = vector.extract_strided_slice %44 {offsets = [0, 8, 0], sizes = [4, 8, 16], strides = [1, 1, 1]} : vector<4x16x16xf32> to vector<4x8x16xf32>
    %47 = arith.maximumf %45, %46 : vector<4x8x16xf32>
    %c0_50 = arith.constant 0 : index
    %c0_51 = arith.constant 0 : index
    %c0_52 = arith.constant 0 : index
    %48 = vector.load %arg6[%c0_50, %c0_51, %c0_52] : memref<4x8x16xf32, #tpu.memory_space<vmem>>, vector<4x8x16xf32>
    tpu.vector_store %arg6[%c0_50, %c0_51, %c0_52], %47 {strides = array<i32>} : memref<4x8x16xf32, #tpu.memory_space<vmem>>, vector<4x8x16xf32>,
    %c0_53 = arith.constant 0 : index
    %c0_54 = arith.constant 0 : index
    %c0_55 = arith.constant 0 : index
    %49 = tpu.strided_load %arg6[%c0_53, %c0_54, %c0_55] {strides = array<i32: 1, 2, 1>} : memref<4x8x16xf32, #tpu.memory_space<vmem>>, vector<4x4x16xf32>
    %c0_56 = arith.constant 0 : index
    %c1_57 = arith.constant 1 : index
    %c0_58 = arith.constant 0 : index
    %50 = tpu.strided_load %arg6[%c0_56, %c1_57, %c0_58] {strides = array<i32: 1, 2, 1>} : memref<4x8x16xf32, #tpu.memory_space<vmem>>, vector<4x4x16xf32>
    %51 = arith.maximumf %49, %50 : vector<4x4x16xf32>
    %c0_59 = arith.constant 0 : index
    %c0_60 = arith.constant 0 : index
    %c0_61 = arith.constant 0 : index
    %c0_62 = arith.constant 0 : index
    %52 = vector.load %arg4[%c0_59, %c0_60, %c0_61, %c0_62] : memref<1x4x4x16xf32, #tpu.memory_space<vmem>>, vector<1x4x4x16xf32>
    %53 = vector.shape_cast %52 : vector<1x4x4x16xf32> to vector<4x4x16xf32>
    %54 = vector.shape_cast %51 : vector<4x4x16xf32> to vector<1x4x4x16xf32>
    tpu.vector_store %arg4[%c0_59, %c0_60, %c0_61, %c0_62], %54 {strides = array<i32>} : memref<1x4x4x16xf32, #tpu.memory_space<vmem>>, vector<1x4x4x16xf32>,
    return
  }
  func.func @transform_0(%arg0: i32) -> (i32, i32, i32, i32) {
    %c0_i32 = arith.constant 0 : i32
    %c0_i32_0 = arith.constant 0 : i32
    %c0_i32_1 = arith.constant 0 : i32
    %c0_i32_2 = arith.constant 0 : i32
    return %arg0, %c0_i32, %c0_i32_0, %c0_i32_1 : i32, i32, i32, i32
  }
  func.func @transform_1(%arg0: i32) -> (i32, i32) {
    %c0_i32 = arith.constant 0 : i32
    %c0_i32_0 = arith.constant 0 : i32
    %c0_i32_1 = arith.constant 0 : i32
    return %c0_i32, %c0_i32_0 : i32, i32
  }
  func.func @transform_2(%arg0: i32) -> (i32, i32) {
    %c0_i32 = arith.constant 0 : i32
    %c0_i32_0 = arith.constant 0 : i32
    %c0_i32_1 = arith.constant 0 : i32
    return %c0_i32, %c0_i32_0 : i32, i32
  }
  func.func @transform_3(%arg0: i32) -> (i32, i32, i32, i32) {
    %c0_i32 = arith.constant 0 : i32
    %c0_i32_0 = arith.constant 0 : i32
    %c0_i32_1 = arith.constant 0 : i32
    %c0_i32_2 = arith.constant 0 : i32
    return %arg0, %c0_i32, %c0_i32_0, %c0_i32_1 : i32, i32, i32, i32
  }
}

module attributes {stable_mosaic.version = 11 : i64} {
  func.func @_mlp3_kernel(%arg0: i32, %arg1: memref<2x256xf32, #tpu.memory_space<vmem>>, %arg2: memref<256x128xf32, #tpu.memory_space<vmem>>, %arg3: memref<1x128xf32, #tpu.memory_space<vmem>>, %arg4: memref<128x128xf32, #tpu.memory_space<vmem>>, %arg5: memref<1x128xf32, #tpu.memory_space<vmem>>, %arg6: memref<128x128xf32, #tpu.memory_space<vmem>>, %arg7: memref<1x128xf32, #tpu.memory_space<vmem>>, %arg8: memref<2x128xf32, #tpu.memory_space<vmem>>) attributes {dimension_semantics = [#tpu.dimension_semantics<parallel>], iteration_bounds = array<i64: 1>, scalar_prefetch = 0 : i64, scratch_operands = 0 : i64, tpu.core_type = #tpu.core_type<tc>, window_params = [{transform_indices = @transform_0, window_bounds = array<i64: 2, 256>}, {pipeline_mode = #tpu.pipeline_mode<synchronous>, transform_indices = @transform_1, window_bounds = array<i64: 256, 128>}, {pipeline_mode = #tpu.pipeline_mode<synchronous>, transform_indices = @transform_2, window_bounds = array<i64: 1, 128>}, {pipeline_mode = #tpu.pipeline_mode<synchronous>, transform_indices = @transform_3, window_bounds = array<i64: 128, 128>}, {pipeline_mode = #tpu.pipeline_mode<synchronous>, transform_indices = @transform_4, window_bounds = array<i64: 1, 128>}, {pipeline_mode = #tpu.pipeline_mode<synchronous>, transform_indices = @transform_5, window_bounds = array<i64: 128, 128>}, {pipeline_mode = #tpu.pipeline_mode<synchronous>, transform_indices = @transform_6, window_bounds = array<i64: 1, 128>}, {transform_indices = @transform_7, window_bounds = array<i64: 2, 128>}]} {
    %c0 = arith.constant 0 : index
    %c0_0 = arith.constant 0 : index
    %0 = vector.load %arg1[%c0, %c0_0] : memref<2x256xf32, #tpu.memory_space<vmem>>, vector<2x256xf32>
    %c0_1 = arith.constant 0 : index
    %c0_2 = arith.constant 0 : index
    %1 = vector.load %arg2[%c0_1, %c0_2] : memref<256x128xf32, #tpu.memory_space<vmem>>, vector<256x128xf32>
    %cst = arith.constant dense<0.000000e+00> : vector<2x128xf32>
    %2 = tpu.matmul %0, %1, %cst {dimension_numbers = #tpu.dot_dimension_numbers<[1], [0], [0], [1], [0, 0, 1, 1], [], []>} : vector<2x256xf32>, vector<256x128xf32>, vector<2x128xf32> -> vector<2x128xf32>
    %c0_3 = arith.constant 0 : index
    %c0_4 = arith.constant 0 : index
    %3 = vector.load %arg3[%c0_3, %c0_4] : memref<1x128xf32, #tpu.memory_space<vmem>>, vector<1x128xf32>
    %4 = vector.broadcast %3 : vector<1x128xf32> to vector<2x128xf32>
    %5 = arith.addf %2, %4 : vector<2x128xf32>
    %cst_5 = arith.constant 0.000000e+00 : f32
    %6 = vector.broadcast %cst_5 : f32 to vector<2x128xf32>
    %7 = arith.maximumf %5, %6 : vector<2x128xf32>
    %c0_6 = arith.constant 0 : index
    %c0_7 = arith.constant 0 : index
    %8 = vector.load %arg4[%c0_6, %c0_7] : memref<128x128xf32, #tpu.memory_space<vmem>>, vector<128x128xf32>
    %cst_8 = arith.constant dense<0.000000e+00> : vector<2x128xf32>
    %9 = tpu.matmul %7, %8, %cst_8 {dimension_numbers = #tpu.dot_dimension_numbers<[1], [0], [0], [1], [0, 0, 1, 1], [], []>} : vector<2x128xf32>, vector<128x128xf32>, vector<2x128xf32> -> vector<2x128xf32>
    %c0_9 = arith.constant 0 : index
    %c0_10 = arith.constant 0 : index
    %10 = vector.load %arg5[%c0_9, %c0_10] : memref<1x128xf32, #tpu.memory_space<vmem>>, vector<1x128xf32>
    %11 = vector.broadcast %10 : vector<1x128xf32> to vector<2x128xf32>
    %12 = arith.addf %9, %11 : vector<2x128xf32>
    %cst_11 = arith.constant 0.000000e+00 : f32
    %13 = vector.broadcast %cst_11 : f32 to vector<2x128xf32>
    %14 = arith.maximumf %12, %13 : vector<2x128xf32>
    %c0_12 = arith.constant 0 : index
    %c0_13 = arith.constant 0 : index
    %15 = vector.load %arg6[%c0_12, %c0_13] : memref<128x128xf32, #tpu.memory_space<vmem>>, vector<128x128xf32>
    %cst_14 = arith.constant dense<0.000000e+00> : vector<2x128xf32>
    %16 = tpu.matmul %14, %15, %cst_14 {dimension_numbers = #tpu.dot_dimension_numbers<[1], [0], [0], [1], [0, 0, 1, 1], [], []>} : vector<2x128xf32>, vector<128x128xf32>, vector<2x128xf32> -> vector<2x128xf32>
    %c0_15 = arith.constant 0 : index
    %c0_16 = arith.constant 0 : index
    %17 = vector.load %arg7[%c0_15, %c0_16] : memref<1x128xf32, #tpu.memory_space<vmem>>, vector<1x128xf32>
    %18 = vector.broadcast %17 : vector<1x128xf32> to vector<2x128xf32>
    %19 = arith.addf %16, %18 : vector<2x128xf32>
    %c0_17 = arith.constant 0 : index
    %c0_18 = arith.constant 0 : index
    %20 = vector.load %arg8[%c0_17, %c0_18] : memref<2x128xf32, #tpu.memory_space<vmem>>, vector<2x128xf32>
    tpu.vector_store %arg8[%c0_17, %c0_18], %19 {strides = array<i32>} : memref<2x128xf32, #tpu.memory_space<vmem>>, vector<2x128xf32>,
    return
  }
  func.func @transform_0(%arg0: i32) -> (i32, i32) {
    %c0_i32 = arith.constant 0 : i32
    %c0_i32_0 = arith.constant 0 : i32
    return %arg0, %c0_i32 : i32, i32
  }
  func.func @transform_1(%arg0: i32) -> (i32, i32) {
    %c0_i32 = arith.constant 0 : i32
    %c0_i32_0 = arith.constant 0 : i32
    %c0_i32_1 = arith.constant 0 : i32
    return %c0_i32, %c0_i32_0 : i32, i32
  }
  func.func @transform_2(%arg0: i32) -> (i32, i32) {
    %c0_i32 = arith.constant 0 : i32
    %c0_i32_0 = arith.constant 0 : i32
    %c0_i32_1 = arith.constant 0 : i32
    return %c0_i32, %c0_i32_0 : i32, i32
  }
  func.func @transform_3(%arg0: i32) -> (i32, i32) {
    %c0_i32 = arith.constant 0 : i32
    %c0_i32_0 = arith.constant 0 : i32
    %c0_i32_1 = arith.constant 0 : i32
    return %c0_i32, %c0_i32_0 : i32, i32
  }
  func.func @transform_4(%arg0: i32) -> (i32, i32) {
    %c0_i32 = arith.constant 0 : i32
    %c0_i32_0 = arith.constant 0 : i32
    %c0_i32_1 = arith.constant 0 : i32
    return %c0_i32, %c0_i32_0 : i32, i32
  }
  func.func @transform_5(%arg0: i32) -> (i32, i32) {
    %c0_i32 = arith.constant 0 : i32
    %c0_i32_0 = arith.constant 0 : i32
    %c0_i32_1 = arith.constant 0 : i32
    return %c0_i32, %c0_i32_0 : i32, i32
  }
  func.func @transform_6(%arg0: i32) -> (i32, i32) {
    %c0_i32 = arith.constant 0 : i32
    %c0_i32_0 = arith.constant 0 : i32
    %c0_i32_1 = arith.constant 0 : i32
    return %c0_i32, %c0_i32_0 : i32, i32
  }
  func.func @transform_7(%arg0: i32) -> (i32, i32) {
    %c0_i32 = arith.constant 0 : i32
    %c0_i32_0 = arith.constant 0 : i32
    return %arg0, %c0_i32 : i32, i32
  }
}

</mosaic_0001>

<llo_original>
// kernel: cnn_forward.5
$region0: #{cnn_forward.5}
  #allocation0 [shape = 'u32[]', space=smem, size = 0x4, offset = 0x4, fixed_abs, tag = 'smem constant byte address 0x4 - core index']
  #allocation1 [shape = 'u32[144,128]{1,0:T(1,128)}', space=vmem, size = 0x12000, scoped, tag = 'internal scratch']
  %s0 = inlined_call_operand.vmem [shape: f32[2,256], index: 0, kind: input, shape index: {}]
  %s1 = inlined_call_operand.vmem [shape: f32[256,128], index: 1, kind: input, shape index: {}]
  %s2 = inlined_call_operand.vmem [shape: f32[1,128], index: 2, kind: input, shape index: {}]
  %s3 = inlined_call_operand.vmem [shape: f32[128,128], index: 3, kind: input, shape index: {}]
  %s4 = inlined_call_operand.vmem [shape: f32[1,128], index: 4, kind: input, shape index: {}]
  %s5 = inlined_call_operand.vmem [shape: f32[128,128], index: 5, kind: input, shape index: {}]
  %s6 = inlined_call_operand.vmem [shape: f32[1,128], index: 6, kind: input, shape index: {}]
  %s7 = inlined_call_operand.hbm [shape: f32[2,128], index: 7, kind: output, shape index: {}]
  %s8 = sld [smem:[#allocation0]]
  $region38: #{cnn_forward.5} parent=0
    _
  %s10 = ssub.s32 1, %s8
  %s11 = scalar_select 0, %s10, %s8
  $region1: #{cnn_forward.5} parent=0
    #allocation2 [shape = 'u8[1024]{0}', space=vmem, size = 0x400, scoped, tag = 'output window, operand 0, single buffered']
    #allocation3 [shape = 's32[1]{0}', space=sflag, size = 0x4, scoped, tag = 'scoped memory for cnn_forward.5']
    %12 = vsyncpa [#allocation3], 0
    // Predicated region
    $region2: #{cnn_forward.5} parent=1 // pred_check
      _
    $region3: #{cnn_forward.5} parent=1 // pred_check_branch
      %14 = sbr.rel (0) target = $region5
    $region4: #{cnn_forward.5} parent=1 // pred_region
      _
    $region5: #{cnn_forward.5} parent=1 // pred_fallthru
      _
    // Predicated region
    $region6: #{cnn_forward.5} parent=1 // pred_check
      _
    $region7: #{cnn_forward.5} parent=1 // pred_check_branch
      %16 = sbr.rel (0) target = $region9
    $region8: #{cnn_forward.5} parent=1 // pred_region
      _
    $region9: #{cnn_forward.5} parent=1 // pred_fallthru
      _
    // Predicated region
    $region10: #{cnn_forward.5} parent=1 // pred_check
      _
    $region11: #{cnn_forward.5} parent=1 // pred_check_branch
      %18 = sbr.rel (0) target = $region13
    $region12: #{cnn_forward.5} parent=1 // pred_region
      _
    $region13: #{cnn_forward.5} parent=1 // pred_fallthru
      _
    // Predicated region
    $region14: #{cnn_forward.5} parent=1 // pred_check
      _
    $region15: #{cnn_forward.5} parent=1 // pred_check_branch
      %20 = sbr.rel (0) target = $region17
    $region16: #{cnn_forward.5} parent=1 // pred_region
      _
    $region17: #{cnn_forward.5} parent=1 // pred_fallthru
      _
    // Predicated region
    $region18: #{cnn_forward.5} parent=1 // pred_check
      _
    $region19: #{cnn_forward.5} parent=1 // pred_check_branch
      %22 = sbr.rel (0) target = $region21
    $region20: #{cnn_forward.5} parent=1 // pred_region
      _
    $region21: #{cnn_forward.5} parent=1 // pred_fallthru
      _
    // Predicated region
    $region22: #{cnn_forward.5} parent=1 // pred_check
      _
    $region23: #{cnn_forward.5} parent=1 // pred_check_branch
      %24 = sbr.rel (0) target = $region25
    $region24: #{cnn_forward.5} parent=1 // pred_region
      _
    $region25: #{cnn_forward.5} parent=1 // pred_fallthru
      _
    // Predicated region
    $region26: #{cnn_forward.5} parent=1 // pred_check
      _
    $region27: #{cnn_forward.5} parent=1 // pred_check_branch
      %26 = sbr.rel (0) target = $region29
    $region28: #{cnn_forward.5} parent=1 // pred_region
      _
    $region29: #{cnn_forward.5} parent=1 // pred_fallthru
      _
    %v27 = vld [vmem:[%s0] sm:$0xf]
    %v28 = vld [vmem:[%s1] sm:$0xff]
    %v29 = vld [vmem:[%s1 + $0x8] sm:$0xff]
    %v30 = vld [vmem:[%s1 + $0x10] sm:$0xff]
    %v31 = vld [vmem:[%s1 + $0x18] sm:$0xff]
    %v32 = vld [vmem:[%s1 + $0x20] sm:$0xff]
    %v33 = vld [vmem:[%s1 + $0x28] sm:$0xff]
    %v34 = vld [vmem:[%s1 + $0x30] sm:$0xff]
    %v35 = vld [vmem:[%s1 + $0x38] sm:$0xff]
    %v36 = vld [vmem:[%s1 + $0x40] sm:$0xff]
    %v37 = vld [vmem:[%s1 + $0x48] sm:$0xff]
    %v38 = vld [vmem:[%s1 + $0x50] sm:$0xff]
    %v39 = vld [vmem:[%s1 + $0x58] sm:$0xff]
    %v40 = vld [vmem:[%s1 + $0x60] sm:$0xff]
    %v41 = vld [vmem:[%s1 + $0x68] sm:$0xff]
    %v42 = vld [vmem:[%s1 + $0x70] sm:$0xff]
    %v43 = vld [vmem:[%s1 + $0x78] sm:$0xff]
    %v44 = vld [vmem:[%s1 + $0x80] sm:$0xff]
    %v45 = vld [vmem:[%s1 + $0x88] sm:$0xff]
    %v46 = vld [vmem:[%s1 + $0x90] sm:$0xff]
    %v47 = vld [vmem:[%s1 + $0x98] sm:$0xff]
    %v48 = vld [vmem:[%s1 + $0xa0] sm:$0xff]
    %v49 = vld [vmem:[%s1 + $0xa8] sm:$0xff]
    %v50 = vld [vmem:[%s1 + $0xb0] sm:$0xff]
    %v51 = vld [vmem:[%s1 + $0xb8] sm:$0xff]
    %v52 = vld [vmem:[%s1 + $0xc0] sm:$0xff]
    %v53 = vld [vmem:[%s1 + $0xc8] sm:$0xff]
    %v54 = vld [vmem:[%s1 + $0xd0] sm:$0xff]
    %v55 = vld [vmem:[%s1 + $0xd8] sm:$0xff]
    %v56 = vld [vmem:[%s1 + $0xe0] sm:$0xff]
    %v57 = vld [vmem:[%s1 + $0xe8] sm:$0xff]
    %v58 = vld [vmem:[%s1 + $0xf0] sm:$0xff]
    %v59 = vld [vmem:[%s1 + $0xf8] sm:$0xff]
    %v60 = vld [vmem:[%s2] sm:$0x1]
    %v62 = vlaneseq
    %v63 = vshrl.u32 %v62, 7
    %v64 = vsub.s32 0, %v63
    %v65 = vrot.slane %v60, %v64
    %v69 = vunpack.c.l.s4 1983009808
    %v70 = vunpack.c.0.s8 %v69
    %v71 = vlaneseq
    %v72 = vshrl.u32 %v71, 7
    %v73 = vsub.s32 %v70, %v72
    %v74 = vrot.slane %v27, %v73
    %v75 = vcombine.high %v74, %v74
    %78 = vmatprep.subr.mxu0 0.0
    %79 = vmatpush1.msra.mxu0 %v28
    %80 = vmatprep.subr.mxu0 0.0
    %81 = vmatpush1.msra.mxu0 %v29
    %82 = vmatprep.subr.mxu0 0.0
    %83 = vmatpush1.msra.mxu0 %v30
    %84 = vmatprep.subr.mxu0 0.0
    %85 = vmatpush1.msra.mxu0 %v31
    %86 = vmatprep.subr.mxu0 0.0
    %87 = vmatpush1.msra.mxu0 %v32
    %88 = vmatprep.subr.mxu0 0.0
    %89 = vmatpush1.msra.mxu0 %v33
    %90 = vmatprep.subr.mxu0 0.0
    %91 = vmatpush1.msra.mxu0 %v34
    %92 = vmatprep.subr.mxu0 0.0
    %93 = vmatpush1.msra.mxu0 %v35
    %94 = vmatprep.subr.mxu0 0.0
    %95 = vmatpush1.msra.mxu0 %v36
    %96 = vmatprep.subr.mxu0 0.0
    %97 = vmatpush1.msra.mxu0 %v37
    %98 = vmatprep.subr.mxu0 0.0
    %99 = vmatpush1.msra.mxu0 %v38
    %100 = vmatprep.subr.mxu0 0.0
    %101 = vmatpush1.msra.mxu0 %v39
    %102 = vmatprep.subr.mxu0 0.0
    %103 = vmatpush1.msra.mxu0 %v40
    %104 = vmatprep.subr.mxu0 0.0
    %105 = vmatpush1.msra.mxu0 %v41
    %106 = vmatprep.subr.mxu0 0.0
    %107 = vmatpush1.msra.mxu0 %v42
    %108 = vmatprep.subr.mxu0 0.0
    %109 = vmatpush1.msra.mxu0 %v43
    %110 = vmatprep.subr.mxu0 0.0
    %111 = vmatpush1.msra.mxu0 %v44
    %112 = vmatprep.subr.mxu0 0.0
    %113 = vmatpush1.msra.mxu0 %v45
    %114 = vmatprep.subr.mxu0 0.0
    %115 = vmatpush1.msra.mxu0 %v46
    %116 = vmatprep.subr.mxu0 0.0
    %117 = vmatpush1.msra.mxu0 %v47
    %118 = vmatprep.subr.mxu0 0.0
    %119 = vmatpush1.msra.mxu0 %v48
    %120 = vmatprep.subr.mxu0 0.0
    %121 = vmatpush1.msra.mxu0 %v49
    %122 = vmatprep.subr.mxu0 0.0
    %123 = vmatpush1.msra.mxu0 %v50
    %124 = vmatprep.subr.mxu0 0.0
    %125 = vmatpush1.msra.mxu0 %v51
    %126 = vmatprep.subr.mxu0 0.0
    %127 = vmatpush1.msra.mxu0 %v52
    %128 = vmatprep.subr.mxu0 0.0
    %129 = vmatpush1.msra.mxu0 %v53
    %130 = vmatprep.subr.mxu0 0.0
    %131 = vmatpush1.msra.mxu0 %v54
    %132 = vmatprep.subr.mxu0 0.0
    %133 = vmatpush1.msra.mxu0 %v55
    %134 = vmatprep.subr.mxu0 0.0
    %135 = vmatpush1.msra.mxu0 %v56
    %136 = vmatprep.subr.mxu0 0.0
    %137 = vmatpush1.msra.mxu0 %v57
    %138 = vmatprep.subr.mxu0 0.0
    %139 = vmatpush1.msra.mxu0 %v58
    %140 = vmatprep.subr.mxu0 0.0
    %141 = vmatpush1.msra.mxu0 %v59
    %142 = vmatprep.mubr.f32.mxu0 %v75
    %143 = vmatmul.mubr.f32.gmra.mrb[0].mxu0 %v74
    %v144 = vpop.f32.mrb[0].mxu0
    %v145 = vadd.f32 %v65, %v144
    %v146 = vpop.f32.mrb[0].mxu0
    %147 = vdwg.mxu0
    %v148 = vmax.f32 %v145, 0.0
    %v149 = vld [vmem:[%s3] sm:$0xff]
    %v150 = vld [vmem:[%s3 + $0x8] sm:$0xff]
    %v151 = vld [vmem:[%s3 + $0x10] sm:$0xff]
    %v152 = vld [vmem:[%s3 + $0x18] sm:$0xff]
    %v153 = vld [vmem:[%s3 + $0x20] sm:$0xff]
    %v154 = vld [vmem:[%s3 + $0x28] sm:$0xff]
    %v155 = vld [vmem:[%s3 + $0x30] sm:$0xff]
    %v156 = vld [vmem:[%s3 + $0x38] sm:$0xff]
    %v157 = vld [vmem:[%s3 + $0x40] sm:$0xff]
    %v158 = vld [vmem:[%s3 + $0x48] sm:$0xff]
    %v159 = vld [vmem:[%s3 + $0x50] sm:$0xff]
    %v160 = vld [vmem:[%s3 + $0x58] sm:$0xff]
    %v161 = vld [vmem:[%s3 + $0x60] sm:$0xff]
    %v162 = vld [vmem:[%s3 + $0x68] sm:$0xff]
    %v163 = vld [vmem:[%s3 + $0x70] sm:$0xff]
    %v164 = vld [vmem:[%s3 + $0x78] sm:$0xff]
    %v165 = vld [vmem:[%s4] sm:$0x1]
    %v167 = vlaneseq
    %v168 = vshrl.u32 %v167, 7
    %v169 = vsub.s32 0, %v168
    %v170 = vrot.slane %v165, %v169
    %172 = vmatprep.subr.mxu0 0.0
    %173 = vmatpush1.msra.mxu0 %v149
    %174 = vmatprep.subr.mxu0 0.0
    %175 = vmatpush1.msra.mxu0 %v150
    %176 = vmatprep.subr.mxu0 0.0
    %177 = vmatpush1.msra.mxu0 %v151
    %178 = vmatprep.subr.mxu0 0.0
    %179 = vmatpush1.msra.mxu0 %v152
    %180 = vmatprep.subr.mxu0 0.0
    %181 = vmatpush1.msra.mxu0 %v153
    %182 = vmatprep.subr.mxu0 0.0
    %183 = vmatpush1.msra.mxu0 %v154
    %184 = vmatprep.subr.mxu0 0.0
    %185 = vmatpush1.msra.mxu0 %v155
    %186 = vmatprep.subr.mxu0 0.0
    %187 = vmatpush1.msra.mxu0 %v156
    %188 = vmatprep.subr.mxu0 0.0
    %189 = vmatpush1.msra.mxu0 %v157
    %190 = vmatprep.subr.mxu0 0.0
    %191 = vmatpush1.msra.mxu0 %v158
    %192 = vmatprep.subr.mxu0 0.0
    %193 = vmatpush1.msra.mxu0 %v159
    %194 = vmatprep.subr.mxu0 0.0
    %195 = vmatpush1.msra.mxu0 %v160
    %196 = vmatprep.subr.mxu0 0.0
    %197 = vmatpush1.msra.mxu0 %v161
    %198 = vmatprep.subr.mxu0 0.0
    %199 = vmatpush1.msra.mxu0 %v162
    %200 = vmatprep.subr.mxu0 0.0
    %201 = vmatpush1.msra.mxu0 %v163
    %202 = vmatprep.subr.mxu0 0.0
    %203 = vmatpush1.msra.mxu0 %v164
    %204 = vmatprep.subr.mxu0 0.0
    %205 = vmatpush1.msra.mxu0 0.0
    %206 = vmatprep.subr.mxu0 0.0
    %207 = vmatpush1.msra.mxu0 0.0
    %208 = vmatprep.subr.mxu0 0.0
    %209 = vmatpush1.msra.mxu0 0.0
    %210 = vmatprep.subr.mxu0 0.0
    %211 = vmatpush1.msra.mxu0 0.0
    %212 = vmatprep.subr.mxu0 0.0
    %213 = vmatpush1.msra.mxu0 0.0
    %214 = vmatprep.subr.mxu0 0.0
    %215 = vmatpush1.msra.mxu0 0.0
    %216 = vmatprep.subr.mxu0 0.0
    %217 = vmatpush1.msra.mxu0 0.0
    %218 = vmatprep.subr.mxu0 0.0
    %219 = vmatpush1.msra.mxu0 0.0
    %220 = vmatprep.subr.mxu0 0.0
    %221 = vmatpush1.msra.mxu0 0.0
    %222 = vmatprep.subr.mxu0 0.0
    %223 = vmatpush1.msra.mxu0 0.0
    %224 = vmatprep.subr.mxu0 0.0
    %225 = vmatpush1.msra.mxu0 0.0
    %226 = vmatprep.subr.mxu0 0.0
    %227 = vmatpush1.msra.mxu0 0.0
    %228 = vmatprep.subr.mxu0 0.0
    %229 = vmatpush1.msra.mxu0 0.0
    %230 = vmatprep.subr.mxu0 0.0
    %231 = vmatpush1.msra.mxu0 0.0
    %232 = vmatprep.subr.mxu0 0.0
    %233 = vmatpush1.msra.mxu0 0.0
    %234 = vmatprep.subr.mxu0 0.0
    %235 = vmatpush1.msra.mxu0 0.0
    %236 = vmatprep.mubr.f32.mxu0 0.0
    %237 = vmatmul.mubr.f32.gmra.mrb[0].mxu0 %v148
    %v238 = vpop.f32.mrb[0].mxu0
    %v239 = vadd.f32 %v170, %v238
    %v240 = vpop.f32.mrb[0].mxu0
    %241 = vdwg.mxu0
    %v242 = vmax.f32 %v239, 0.0
    %v243 = vld [vmem:[%s5] sm:$0xff]
    %v244 = vld [vmem:[%s5 + $0x8] sm:$0xff]
    %v245 = vld [vmem:[%s5 + $0x10] sm:$0xff]
    %v246 = vld [vmem:[%s5 + $0x18] sm:$0xff]
    %v247 = vld [vmem:[%s5 + $0x20] sm:$0xff]
    %v248 = vld [vmem:[%s5 + $0x28] sm:$0xff]
    %v249 = vld [vmem:[%s5 + $0x30] sm:$0xff]
    %v250 = vld [vmem:[%s5 + $0x38] sm:$0xff]
    %v251 = vld [vmem:[%s5 + $0x40] sm:$0xff]
    %v252 = vld [vmem:[%s5 + $0x48] sm:$0xff]
    %v253 = vld [vmem:[%s5 + $0x50] sm:$0xff]
    %v254 = vld [vmem:[%s5 + $0x58] sm:$0xff]
    %v255 = vld [vmem:[%s5 + $0x60] sm:$0xff]
    %v256 = vld [vmem:[%s5 + $0x68] sm:$0xff]
    %v257 = vld [vmem:[%s5 + $0x70] sm:$0xff]
    %v258 = vld [vmem:[%s5 + $0x78] sm:$0xff]
    %v259 = vld [vmem:[%s6] sm:$0x1]
    %v261 = vlaneseq
    %v262 = vshrl.u32 %v261, 7
    %v263 = vsub.s32 0, %v262
    %v264 = vrot.slane %v259, %v263
    %266 = vmatprep.subr.mxu0 0.0
    %267 = vmatpush1.msra.mxu0 %v243
    %268 = vmatprep.subr.mxu0 0.0
    %269 = vmatpush1.msra.mxu0 %v244
    %270 = vmatprep.subr.mxu0 0.0
    %271 = vmatpush1.msra.mxu0 %v245
    %272 = vmatprep.subr.mxu0 0.0
    %273 = vmatpush1.msra.mxu0 %v246
    %274 = vmatprep.subr.mxu0 0.0
    %275 = vmatpush1.msra.mxu0 %v247
    %276 = vmatprep.subr.mxu0 0.0
    %277 = vmatpush1.msra.mxu0 %v248
    %278 = vmatprep.subr.mxu0 0.0
    %279 = vmatpush1.msra.mxu0 %v249
    %280 = vmatprep.subr.mxu0 0.0
    %281 = vmatpush1.msra.mxu0 %v250
    %282 = vmatprep.subr.mxu0 0.0
    %283 = vmatpush1.msra.mxu0 %v251
    %284 = vmatprep.subr.mxu0 0.0
    %285 = vmatpush1.msra.mxu0 %v252
    %286 = vmatprep.subr.mxu0 0.0
    %287 = vmatpush1.msra.mxu0 %v253
    %288 = vmatprep.subr.mxu0 0.0
    %289 = vmatpush1.msra.mxu0 %v254
    %290 = vmatprep.subr.mxu0 0.0
    %291 = vmatpush1.msra.mxu0 %v255
    %292 = vmatprep.subr.mxu0 0.0
    %293 = vmatpush1.msra.mxu0 %v256
    %294 = vmatprep.subr.mxu0 0.0
    %295 = vmatpush1.msra.mxu0 %v257
    %296 = vmatprep.subr.mxu0 0.0
    %297 = vmatpush1.msra.mxu0 %v258
    %298 = vmatprep.subr.mxu0 0.0
    %299 = vmatpush1.msra.mxu0 0.0
    %300 = vmatprep.subr.mxu0 0.0
    %301 = vmatpush1.msra.mxu0 0.0
    %302 = vmatprep.subr.mxu0 0.0
    %303 = vmatpush1.msra.mxu0 0.0
    %304 = vmatprep.subr.mxu0 0.0
    %305 = vmatpush1.msra.mxu0 0.0
    %306 = vmatprep.subr.mxu0 0.0
    %307 = vmatpush1.msra.mxu0 0.0
    %308 = vmatprep.subr.mxu0 0.0
    %309 = vmatpush1.msra.mxu0 0.0
    %310 = vmatprep.subr.mxu0 0.0
    %311 = vmatpush1.msra.mxu0 0.0
    %312 = vmatprep.subr.mxu0 0.0
    %313 = vmatpush1.msra.mxu0 0.0
    %314 = vmatprep.subr.mxu0 0.0
    %315 = vmatpush1.msra.mxu0 0.0
    %316 = vmatprep.subr.mxu0 0.0
    %317 = vmatpush1.msra.mxu0 0.0
    %318 = vmatprep.subr.mxu0 0.0
    %319 = vmatpush1.msra.mxu0 0.0
    %320 = vmatprep.subr.mxu0 0.0
    %321 = vmatpush1.msra.mxu0 0.0
    %322 = vmatprep.subr.mxu0 0.0
    %323 = vmatpush1.msra.mxu0 0.0
    %324 = vmatprep.subr.mxu0 0.0
    %325 = vmatpush1.msra.mxu0 0.0
    %326 = vmatprep.subr.mxu0 0.0
    %327 = vmatpush1.msra.mxu0 0.0
    %328 = vmatprep.subr.mxu0 0.0
    %329 = vmatpush1.msra.mxu0 0.0
    %330 = vmatprep.mubr.f32.mxu0 0.0
    %331 = vmatmul.mubr.f32.gmra.mrb[0].mxu0 %v242
    %v332 = vpop.f32.mrb[0].mxu0
    %v333 = vadd.f32 %v264, %v332
    %v334 = vpop.f32.mrb[0].mxu0
    %335 = vdwg.mxu0
    %336 = vst [vmem:[#allocation2] sm:$0x3] %v333
    // Predicated region
    $region30: #{cnn_forward.5} parent=1 // pred_check
      _
    $region31: #{cnn_forward.5} parent=1 // pred_check_branch
      %338 = sbr.rel (0) target = $region33
    $region32: #{cnn_forward.5} parent=1 // pred_region
      %s340 = ssub.s32 32, 32
      %341 = vsyncadd [#allocation3], %s340
      %s343 = sshll.u32 [#allocation2], 4
      %s344 = int_to_ptr.vmem [resolvable:$true] %s343
      %346 = dma.vmem_to_hbm [thread:$0]  %s344, 32, %s7, [#allocation3]
    $region33: #{cnn_forward.5} parent=1 // pred_fallthru
      _
    // Predicated region
    $region34: #{cnn_forward.5} parent=1 // pred_check
      _
    $region35: #{cnn_forward.5} parent=1 // pred_check_branch
      %348 = sbr.rel (0) target = $region37
    $region36: #{cnn_forward.5} parent=1 // pred_region
      %349 = dma.done [#allocation3], 32
    $region37: #{cnn_forward.5} parent=1 // pred_fallthru
      _
    %350 = vsyncpa [#allocation3], 1

// kernel: cnn_forward.4
$region0: #{cnn_forward.4}
  #allocation0 [shape = 'u32[]', space=smem, size = 0x4, offset = 0x4, fixed_abs, tag = 'smem constant byte address 0x4 - core index']
  #allocation1 [shape = 'u32[144,128]{1,0:T(1,128)}', space=vmem, size = 0x12000, scoped, tag = 'internal scratch']
  #allocation2 [shape = 'f32[64,72]{1,0:T(8,128)}', space=vmem, size = 0x8000, scoped, tag = 'scratch operand']
  #allocation3 [shape = 'f32[4,8,16]{2,1,0:T(8,128)}', space=vmem, size = 0x4000, scoped, tag = 'scratch operand']
  %s0 = inlined_call_operand.vmem [shape: f32[2,10,10,8], index: 0, kind: input, shape index: {}]
  %s1 = inlined_call_operand.vmem [shape: f32[72,16], index: 1, kind: input, shape index: {}]
  %s2 = inlined_call_operand.vmem [shape: f32[1,16], index: 2, kind: input, shape index: {}]
  %s3 = inlined_call_operand.vmem [shape: f32[2,4,4,16], index: 3, kind: output, shape index: {}]
  %s4 = sld [smem:[#allocation0]]
  $region45: #{cnn_forward.4} parent=0
    _
  %s6 = ssub.s32 1, %s4
  %s7 = scalar_select 0, %s6, %s4
  loop: start=0, step=1, limit=4
  $region2: #{cnn_forward.4} parent=0 // loop_pre_header
    _
  $region3: #{cnn_forward.4} parent=0 // loop_header
    %s9 = sphi 0, %s13
    %p10 = scmp.ge.s32.totalorder %s9, 4
    %s19 = sphi 0, %s21
    %s22 = sphi 0, %s19
    %s23 = sphi 0, %s22
    %s39 = sphi 0, %s23
    %s43 = sphi 0, %s43
    %s45 = sphi 0, %s43
    %s46 = sphi 0, %s45
    %s60 = sphi 0, %s46
    %s64 = sphi 0, %s64
    %s66 = sphi 0, %s64
    %s67 = sphi 0, %s66
    %s81 = sphi 0, %s67
    %s87 = sphi 0, %s89
    %s90 = sphi 0, %s87
    %s91 = sphi 0, %s90
    %s107 = sphi 0, %s91
  $region4: #{cnn_forward.4} parent=0 // loop_header_branch
    %12 = sbr.rel (%p10) target = $region8
  $region5: #{cnn_forward.4} parent=0 // loop_body
    %s14 = ssub.s32 %s9, 1
    %s15 = ssub.s32 %s9, 2
    %s16 = sadd.s32 %s9, 1
    %s17 = ssub.s32 %s9, %s16
    %p18 = scmp.eq.s32.totalorder %s17, 0
    %s20 = sadd.s32 %s19, 1
    %s21 = scalar_select %p18, %s19, %s20
    %p24 = pneg %p18
    %p25 = scmp.eq.s32.totalorder %s9, 1
    %p26 = por %p24, %p25
    %p27 = scmp.ne.s32.totalorder %s19, %s22
    %p28 = scmp.eq.s32.totalorder %s9, 0
    %p29 = por %p27, %p28
    %p30 = scmp.ne.s32.totalorder %s19, %s22
    %p31 = scmp.eq.s32.totalorder %s14, 1
    %p32 = por %p30, %p31
    %p33 = scmp.ne.s32.totalorder %s22, %s23
    %p34 = scmp.eq.s32.totalorder %s14, 0
    %p35 = por %p33, %p34
    %p36 = scmp.ne.s32.totalorder %s22, %s23
    %p37 = scmp.eq.s32.totalorder %s15, 1
    %p38 = por %p36, %p37
    %p40 = scmp.ne.s32.totalorder %s23, %s39
    %p41 = scmp.eq.s32.totalorder %s15, 0
    %p42 = por %p40, %p41
    %s44 = sadd.s32 %s43, 1
    %p47 = scmp.eq.s32.totalorder %s9, 1
    %p48 = scmp.ne.s32.totalorder %s43, %s45
    %p49 = scmp.eq.s32.totalorder %s9, 0
    %p50 = por %p48, %p49
    %p51 = scmp.ne.s32.totalorder %s43, %s45
    %p52 = scmp.eq.s32.totalorder %s14, 1
    %p53 = por %p51, %p52
    %p54 = scmp.ne.s32.totalorder %s45, %s46
    %p55 = scmp.eq.s32.totalorder %s14, 0
    %p56 = por %p54, %p55
    %p57 = scmp.ne.s32.totalorder %s45, %s46
    %p58 = scmp.eq.s32.totalorder %s15, 1
    %p59 = por %p57, %p58
    %p61 = scmp.ne.s32.totalorder %s46, %s60
    %p62 = scmp.eq.s32.totalorder %s15, 0
    %p63 = por %p61, %p62
    %s65 = sadd.s32 %s64, 1
    %p68 = scmp.eq.s32.totalorder %s9, 1
    %p69 = scmp.ne.s32.totalorder %s64, %s66
    %p70 = scmp.eq.s32.totalorder %s9, 0
    %p71 = por %p69, %p70
    %p72 = scmp.ne.s32.totalorder %s64, %s66
    %p73 = scmp.eq.s32.totalorder %s14, 1
    %p74 = por %p72, %p73
    %p75 = scmp.ne.s32.totalorder %s66, %s67
    %p76 = scmp.eq.s32.totalorder %s14, 0
    %p77 = por %p75, %p76
    %p78 = scmp.ne.s32.totalorder %s66, %s67
    %p79 = scmp.eq.s32.totalorder %s15, 1
    %p80 = por %p78, %p79
    %p82 = scmp.ne.s32.totalorder %s67, %s81
    %p83 = scmp.eq.s32.totalorder %s15, 0
    %p84 = por %p82, %p83
    %s85 = ssub.s32 %s9, %s16
    %p86 = scmp.eq.s32.totalorder %s85, 0
    %s88 = sadd.s32 %s87, 1
    %s89 = scalar_select %p86, %s87, %s88
    %p92 = pneg %p86
    %p93 = scmp.eq.s32.totalorder %s9, 1
    %p94 = por %p92, %p93
    %p95 = scmp.ne.s32.totalorder %s87, %s90
    %p96 = scmp.eq.s32.totalorder %s9, 0
    %p97 = por %p95, %p96
    %p98 = scmp.ne.s32.totalorder %s87, %s90
    %p99 = scmp.eq.s32.totalorder %s14, 1
    %p100 = por %p98, %p99
    %p101 = scmp.ne.s32.totalorder %s90, %s91
    %p102 = scmp.eq.s32.totalorder %s14, 0
    %p103 = por %p101, %p102
    %p104 = scmp.ne.s32.totalorder %s90, %s91
    %p105 = scmp.eq.s32.totalorder %s15, 1
    %p106 = por %p104, %p105
    %p108 = scmp.ne.s32.totalorder %s91, %s107
    %p109 = scmp.eq.s32.totalorder %s15, 0
    %p110 = por %p108, %p109
    %p111 = scmp.le.s32.totalorder 1, %s9
    %p112 = scmp.lt.s32.totalorder %s9, 3
    %p113 = pnand %p111, %p112
    %p114 = pneg %p113
    // Predicated region
    $region9: #{cnn_forward.4} parent=5 // pred_check
      _
    $region10: #{cnn_forward.4} parent=5 // pred_check_branch
      %116 = sbr.rel (%p113) target = $region12
    $region11: #{cnn_forward.4} parent=5 // pred_region
      %s117 = ssub.s32 %s9, 1
      // Predicated region
      $region13: #{cnn_forward.4} parent=11 // pred_check
        %p118 = pneg %p56
      $region14: #{cnn_forward.4} parent=11 // pred_check_branch
        %120 = sbr.rel (%p118) target = $region16
      $region15: #{cnn_forward.4} parent=11 // pred_region
        _
      $region16: #{cnn_forward.4} parent=11 // pred_fallthru
        _
      // Predicated region
      $region17: #{cnn_forward.4} parent=11 // pred_check
        %p121 = pneg %p77
      $region18: #{cnn_forward.4} parent=11 // pred_check_branch
        %123 = sbr.rel (%p121) target = $region20
      $region19: #{cnn_forward.4} parent=11 // pred_region
        _
      $region20: #{cnn_forward.4} parent=11 // pred_fallthru
        _
    $region12: #{cnn_forward.4} parent=5 // pred_fallthru
      _
    %p124 = scmp.lt.s32.totalorder %s9, 2
    // Predicated region
    $region21: #{cnn_forward.4} parent=5 // pred_check
      %p125 = pneg %p124
    $region22: #{cnn_forward.4} parent=5 // pred_check_branch
      %127 = sbr.rel (%p125) target = $region24
    $region23: #{cnn_forward.4} parent=5 // pred_region
      // Predicated region
      $region25: #{cnn_forward.4} parent=23 // pred_check
        %p128 = pneg %p29
      $region26: #{cnn_forward.4} parent=23 // pred_check_branch
        %130 = sbr.rel (%p128) target = $region28
      $region27: #{cnn_forward.4} parent=23 // pred_region
        %p131 = scmp.lt.s32.totalorder %s9, 1
        %s132 = scalar_select %p131, %s9, 1
        %s133 = smul.addr %s132, 20
        %s134 = smul.addr %s133, 8
        %s135 = scalar_lea.vmem %s0, %s134
      $region28: #{cnn_forward.4} parent=23 // pred_fallthru
        _
    $region24: #{cnn_forward.4} parent=5 // pred_fallthru
      _
    %p136 = scmp.le.s32.totalorder 1, %s9
    %p137 = scmp.lt.s32.totalorder %s9, 3
    %p138 = pnand %p136, %p137
    %p139 = pneg %p138
    // Predicated region
    $region29: #{cnn_forward.4} parent=5 // pred_check
      _
    $region30: #{cnn_forward.4} parent=5 // pred_check_branch
      %141 = sbr.rel (%p138) target = $region32
    $region31: #{cnn_forward.4} parent=5 // pred_region
      %s142 = ssub.s32 %s9, 1
      %p143 = scmp.lt.s32.totalorder %s14, 1
      %s144 = scalar_select %p143, %s14, 1
      %s145 = smul.addr %s144, 20
      %s146 = smul.addr %s145, 8
      %s147 = scalar_lea.vmem %s0, %s146
      %p148 = pneg %p35
      %p149 = pneg %p32
      %p150 = pneg %p56
      %p151 = pneg %p53
      %p152 = pneg %p77
      %p153 = pneg %p74
      %p154 = pneg %p103
      %p155 = pneg %p100
      %p156 = scmp.lt.s32.totalorder %s14, 1
      %s157 = scalar_select %p156, %s14, 1
      %s158 = smul.addr %s157, 4
      %s159 = smul.addr %s158, 4
      %s160 = scalar_lea.vmem %s3, %s159
      %p161 = scmp.lt.s32.totalorder %s14, 1
      %s162 = scalar_select %p161, %s14, 1
      %s163 = smul.addr %s162, 20
      %s164 = smul.addr %s163, 8
      %s165 = scalar_lea.vmem %s0, %s164
      %p166 = scmp.lt.s32.totalorder %s14, 1
      %s167 = scalar_select %p166, %s14, 1
      %s168 = smul.addr %s167, 4
      %s169 = smul.addr %s168, 4
      %s170 = scalar_lea.vmem %s3, %s169
      %v171 = vld [vmem:[%s165] sm:$0xff]
      %v172 = vld [vmem:[%s165 + $0x10] sm:$0xff]
      %v173 = vld [vmem:[%s165 + $0x20] sm:$0xff]
      %v174 = vld [vmem:[%s165 + $0x30] sm:$0xff]
      %v175 = vld [vmem:[%s165 + $0x40] sm:$0xff]
      %v176 = vld [vmem:[%s165 + $0x50] sm:$0xff]
      %v177 = vld [vmem:[%s165 + $0x60] sm:$0xff]
      %v178 = vld [vmem:[%s165 + $0x70] sm:$0xff]
      %vm179 = vcmask 64512
      %180 = vst.msk [vmem:[#allocation2] sm:$0xff] %vm179, %v171
      %181 = vst.msk [vmem:[#allocation2 + $0x8] sm:$0xff] %vm179, %v172
      %182 = vst.msk [vmem:[#allocation2 + $0x10] sm:$0xff] %vm179, %v173
      %183 = vst.msk [vmem:[#allocation2 + $0x18] sm:$0xff] %vm179, %v174
      %184 = vst.msk [vmem:[#allocation2 + $0x20] sm:$0xff] %vm179, %v175
      %185 = vst.msk [vmem:[#allocation2 + $0x28] sm:$0xff] %vm179, %v176
      %186 = vst.msk [vmem:[#allocation2 + $0x30] sm:$0xff] %vm179, %v177
      %187 = vst.msk [vmem:[#allocation2 + $0x38] sm:$0xff] %vm179, %v178
      %v188 = vld [vmem:[%s165 + $0x1] sm:$0xff]
      %v189 = vld [vmem:[%s165 + $0x11] sm:$0xff]
      %v190 = vld [vmem:[%s165 + $0x21] sm:$0xff]
      %v191 = vld [vmem:[%s165 + $0x31] sm:$0xff]
      %v192 = vld [vmem:[%s165 + $0x41] sm:$0xff]
      %v193 = vld [vmem:[%s165 + $0x51] sm:$0xff]
      %v194 = vld [vmem:[%s165 + $0x61] sm:$0xff]
      %v195 = vld [vmem:[%s165 + $0x71] sm:$0xff]
      %204 = vrot.lane.b32.xlu0 %v188, 8
      %v205 = vpop.permute.xlu0 %204
      %206 = vrot.lane.b32.xlu0 %v189, 8
      %v207 = vpop.permute.xlu0 %206
      %208 = vrot.lane.b32.xlu0 %v190, 8
      %v209 = vpop.permute.xlu0 %208
      %210 = vrot.lane.b32.xlu0 %v191, 8
      %v211 = vpop.permute.xlu0 %210
      %212 = vrot.lane.b32.xlu0 %v192, 8
      %v213 = vpop.permute.xlu0 %212
      %214 = vrot.lane.b32.xlu0 %v193, 8
      %v215 = vpop.permute.xlu0 %214
      %216 = vrot.lane.b32.xlu0 %v194, 8
      %v217 = vpop.permute.xlu0 %216
      %218 = vrot.lane.b32.xlu0 %v195, 8
      %v219 = vpop.permute.xlu0 %218
      %vm228 = vcmask 130112
      %229 = vst.msk [vmem:[#allocation2] sm:$0xff] %vm228, %v205
      %230 = vst.msk [vmem:[#allocation2 + $0x8] sm:$0xff] %vm228, %v207
      %231 = vst.msk [vmem:[#allocation2 + $0x10] sm:$0xff] %vm228, %v209
      %232 = vst.msk [vmem:[#allocation2 + $0x18] sm:$0xff] %vm228, %v211
      %233 = vst.msk [vmem:[#allocation2 + $0x20] sm:$0xff] %vm228, %v213
      %234 = vst.msk [vmem:[#allocation2 + $0x28] sm:$0xff] %vm228, %v215
      %235 = vst.msk [vmem:[#allocation2 + $0x30] sm:$0xff] %vm228, %v217
      %236 = vst.msk [vmem:[#allocation2 + $0x38] sm:$0xff] %vm228, %v219
      %v237 = vld [vmem:[%s165 + $0x2] sm:$0xff]
      %v238 = vld [vmem:[%s165 + $0x12] sm:$0xff]
      %v239 = vld [vmem:[%s165 + $0x22] sm:$0xff]
      %v240 = vld [vmem:[%s165 + $0x32] sm:$0xff]
      %v241 = vld [vmem:[%s165 + $0x42] sm:$0xff]
      %v242 = vld [vmem:[%s165 + $0x52] sm:$0xff]
      %v243 = vld [vmem:[%s165 + $0x62] sm:$0xff]
      %v244 = vld [vmem:[%s165 + $0x72] sm:$0xff]
      %253 = vrot.lane.b32.xlu0 %v237, 16
      %v254 = vpop.permute.xlu0 %253
      %255 = vrot.lane.b32.xlu0 %v238, 16
      %v256 = vpop.permute.xlu0 %255
      %257 = vrot.lane.b32.xlu0 %v239, 16
      %v258 = vpop.permute.xlu0 %257
      %259 = vrot.lane.b32.xlu0 %v240, 16
      %v260 = vpop.permute.xlu0 %259
      %261 = vrot.lane.b32.xlu0 %v241, 16
      %v262 = vpop.permute.xlu0 %261
      %263 = vrot.lane.b32.xlu0 %v242, 16
      %v264 = vpop.permute.xlu0 %263
      %265 = vrot.lane.b32.xlu0 %v243, 16
      %v266 = vpop.permute.xlu0 %265
      %267 = vrot.lane.b32.xlu0 %v244, 16
      %v268 = vpop.permute.xlu0 %267
      %vm277 = vcmask 195712
      %278 = vst.msk [vmem:[#allocation2] sm:$0xff] %vm277, %v254
      %279 = vst.msk [vmem:[#allocation2 + $0x8] sm:$0xff] %vm277, %v256
      %280 = vst.msk [vmem:[#allocation2 + $0x10] sm:$0xff] %vm277, %v258
      %281 = vst.msk [vmem:[#allocation2 + $0x18] sm:$0xff] %vm277, %v260
      %282 = vst.msk [vmem:[#allocation2 + $0x20] sm:$0xff] %vm277, %v262
      %283 = vst.msk [vmem:[#allocation2 + $0x28] sm:$0xff] %vm277, %v264
      %284 = vst.msk [vmem:[#allocation2 + $0x30] sm:$0xff] %vm277, %v266
      %285 = vst.msk [vmem:[#allocation2 + $0x38] sm:$0xff] %vm277, %v268
      %s286 = scalar_lea.vmem %s165, 16
      %v287 = vld [vmem:[%s286] sm:$0xff]
      %v288 = vld [vmem:[%s286 + $0x10] sm:$0xff]
      %v289 = vld [vmem:[%s286 + $0x20] sm:$0xff]
      %v290 = vld [vmem:[%s286 + $0x30] sm:$0xff]
      %v291 = vld [vmem:[%s286 + $0x40] sm:$0xff]
      %v292 = vld [vmem:[%s286 + $0x50] sm:$0xff]
      %v293 = vld [vmem:[%s286 + $0x60] sm:$0xff]
      %v294 = vld [vmem:[%s286 + $0x70] sm:$0xff]
      %303 = vrot.lane.b32.xlu0 %v287, 24
      %v304 = vpop.permute.xlu0 %303
      %305 = vrot.lane.b32.xlu0 %v288, 24
      %v306 = vpop.permute.xlu0 %305
      %307 = vrot.lane.b32.xlu0 %v289, 24
      %v308 = vpop.permute.xlu0 %307
      %309 = vrot.lane.b32.xlu0 %v290, 24
      %v310 = vpop.permute.xlu0 %309
      %311 = vrot.lane.b32.xlu0 %v291, 24
      %v312 = vpop.permute.xlu0 %311
      %313 = vrot.lane.b32.xlu0 %v292, 24
      %v314 = vpop.permute.xlu0 %313
      %315 = vrot.lane.b32.xlu0 %v293, 24
      %v316 = vpop.permute.xlu0 %315
      %317 = vrot.lane.b32.xlu0 %v294, 24
      %v318 = vpop.permute.xlu0 %317
      %vm327 = vcmask 261312
      %328 = vst.msk [vmem:[#allocation2] sm:$0xff] %vm327, %v304
      %329 = vst.msk [vmem:[#allocation2 + $0x8] sm:$0xff] %vm327, %v306
      %330 = vst.msk [vmem:[#allocation2 + $0x10] sm:$0xff] %vm327, %v308
      %331 = vst.msk [vmem:[#allocation2 + $0x18] sm:$0xff] %vm327, %v310
      %332 = vst.msk [vmem:[#allocation2 + $0x20] sm:$0xff] %vm327, %v312
      %333 = vst.msk [vmem:[#allocation2 + $0x28] sm:$0xff] %vm327, %v314
      %334 = vst.msk [vmem:[#allocation2 + $0x30] sm:$0xff] %vm327, %v316
      %335 = vst.msk [vmem:[#allocation2 + $0x38] sm:$0xff] %vm327, %v318
      %v336 = vld [vmem:[%s286 + $0x1] sm:$0xff]
      %v337 = vld [vmem:[%s286 + $0x11] sm:$0xff]
      %v338 = vld [vmem:[%s286 + $0x21] sm:$0xff]
      %v339 = vld [vmem:[%s286 + $0x31] sm:$0xff]
      %v340 = vld [vmem:[%s286 + $0x41] sm:$0xff]
      %v341 = vld [vmem:[%s286 + $0x51] sm:$0xff]
      %v342 = vld [vmem:[%s286 + $0x61] sm:$0xff]
      %v343 = vld [vmem:[%s286 + $0x71] sm:$0xff]
      %352 = vrot.lane.b32.xlu0 %v336, 32
      %v353 = vpop.permute.xlu0 %352
      %354 = vrot.lane.b32.xlu0 %v337, 32
      %v355 = vpop.permute.xlu0 %354
      %356 = vrot.lane.b32.xlu0 %v338, 32
      %v357 = vpop.permute.xlu0 %356
      %358 = vrot.lane.b32.xlu0 %v339, 32
      %v359 = vpop.permute.xlu0 %358
      %360 = vrot.lane.b32.xlu0 %v340, 32
      %v361 = vpop.permute.xlu0 %360
      %362 = vrot.lane.b32.xlu0 %v341, 32
      %v363 = vpop.permute.xlu0 %362
      %364 = vrot.lane.b32.xlu0 %v342, 32
      %v365 = vpop.permute.xlu0 %364
      %366 = vrot.lane.b32.xlu0 %v343, 32
      %v367 = vpop.permute.xlu0 %366
      %vm376 = vcmask 326912
      %377 = vst.msk [vmem:[#allocation2] sm:$0xff] %vm376, %v353
      %378 = vst.msk [vmem:[#allocation2 + $0x8] sm:$0xff] %vm376, %v355
      %379 = vst.msk [vmem:[#allocation2 + $0x10] sm:$0xff] %vm376, %v357
      %380 = vst.msk [vmem:[#allocation2 + $0x18] sm:$0xff] %vm376, %v359
      %381 = vst.msk [vmem:[#allocation2 + $0x20] sm:$0xff] %vm376, %v361
      %382 = vst.msk [vmem:[#allocation2 + $0x28] sm:$0xff] %vm376, %v363
      %383 = vst.msk [vmem:[#allocation2 + $0x30] sm:$0xff] %vm376, %v365
      %384 = vst.msk [vmem:[#allocation2 + $0x38] sm:$0xff] %vm376, %v367
      %v385 = vld [vmem:[%s286 + $0x2] sm:$0xff]
      %v386 = vld [vmem:[%s286 + $0x12] sm:$0xff]
      %v387 = vld [vmem:[%s286 + $0x22] sm:$0xff]
      %v388 = vld [vmem:[%s286 + $0x32] sm:$0xff]
      %v389 = vld [vmem:[%s286 + $0x42] sm:$0xff]
      %v390 = vld [vmem:[%s286 + $0x52] sm:$0xff]
      %v391 = vld [vmem:[%s286 + $0x62] sm:$0xff]
      %v392 = vld [vmem:[%s286 + $0x72] sm:$0xff]
      %401 = vrot.lane.b32.xlu0 %v385, 40
      %v402 = vpop.permute.xlu0 %401
      %403 = vrot.lane.b32.xlu0 %v386, 40
      %v404 = vpop.permute.xlu0 %403
      %405 = vrot.lane.b32.xlu0 %v387, 40
      %v406 = vpop.permute.xlu0 %405
      %407 = vrot.lane.b32.xlu0 %v388, 40
      %v408 = vpop.permute.xlu0 %407
      %409 = vrot.lane.b32.xlu0 %v389, 40
      %v410 = vpop.permute.xlu0 %409
      %411 = vrot.lane.b32.xlu0 %v390, 40
      %v412 = vpop.permute.xlu0 %411
      %413 = vrot.lane.b32.xlu0 %v391, 40
      %v414 = vpop.permute.xlu0 %413
      %415 = vrot.lane.b32.xlu0 %v392, 40
      %v416 = vpop.permute.xlu0 %415
      %vm425 = vcmask 392512
      %426 = vst.msk [vmem:[#allocation2] sm:$0xff] %vm425, %v402
      %427 = vst.msk [vmem:[#allocation2 + $0x8] sm:$0xff] %vm425, %v404
      %428 = vst.msk [vmem:[#allocation2 + $0x10] sm:$0xff] %vm425, %v406
      %429 = vst.msk [vmem:[#allocation2 + $0x18] sm:$0xff] %vm425, %v408
      %430 = vst.msk [vmem:[#allocation2 + $0x20] sm:$0xff] %vm425, %v410
      %431 = vst.msk [vmem:[#allocation2 + $0x28] sm:$0xff] %vm425, %v412
      %432 = vst.msk [vmem:[#allocation2 + $0x30] sm:$0xff] %vm425, %v414
      %433 = vst.msk [vmem:[#allocation2 + $0x38] sm:$0xff] %vm425, %v416
      %s434 = scalar_lea.vmem %s165, 32
      %v435 = vld [vmem:[%s434] sm:$0xff]
      %v436 = vld [vmem:[%s434 + $0x10] sm:$0xff]
      %v437 = vld [vmem:[%s434 + $0x20] sm:$0xff]
      %v438 = vld [vmem:[%s434 + $0x30] sm:$0xff]
      %v439 = vld [vmem:[%s434 + $0x40] sm:$0xff]
      %v440 = vld [vmem:[%s434 + $0x50] sm:$0xff]
      %v441 = vld [vmem:[%s434 + $0x60] sm:$0xff]
      %v442 = vld [vmem:[%s434 + $0x70] sm:$0xff]
      %451 = vrot.lane.b32.xlu0 %v435, 48
      %v452 = vpop.permute.xlu0 %451
      %453 = vrot.lane.b32.xlu0 %v436, 48
      %v454 = vpop.permute.xlu0 %453
      %455 = vrot.lane.b32.xlu0 %v437, 48
      %v456 = vpop.permute.xlu0 %455
      %457 = vrot.lane.b32.xlu0 %v438, 48
      %v458 = vpop.permute.xlu0 %457
      %459 = vrot.lane.b32.xlu0 %v439, 48
      %v460 = vpop.permute.xlu0 %459
      %461 = vrot.lane.b32.xlu0 %v440, 48
      %v462 = vpop.permute.xlu0 %461
      %463 = vrot.lane.b32.xlu0 %v441, 48
      %v464 = vpop.permute.xlu0 %463
      %465 = vrot.lane.b32.xlu0 %v442, 48
      %v466 = vpop.permute.xlu0 %465
      %vm475 = vcmask 458112
      %476 = vst.msk [vmem:[#allocation2] sm:$0xff] %vm475, %v452
      %477 = vst.msk [vmem:[#allocation2 + $0x8] sm:$0xff] %vm475, %v454
      %478 = vst.msk [vmem:[#allocation2 + $0x10] sm:$0xff] %vm475, %v456
      %479 = vst.msk [vmem:[#allocation2 + $0x18] sm:$0xff] %vm475, %v458
      %480 = vst.msk [vmem:[#allocation2 + $0x20] sm:$0xff] %vm475, %v460
      %481 = vst.msk [vmem:[#allocation2 + $0x28] sm:$0xff] %vm475, %v462
      %482 = vst.msk [vmem:[#allocation2 + $0x30] sm:$0xff] %vm475, %v464
      %483 = vst.msk [vmem:[#allocation2 + $0x38] sm:$0xff] %vm475, %v466
      %v484 = vld [vmem:[%s434 + $0x1] sm:$0xff]
      %v485 = vld [vmem:[%s434 + $0x11] sm:$0xff]
      %v486 = vld [vmem:[%s434 + $0x21] sm:$0xff]
      %v487 = vld [vmem:[%s434 + $0x31] sm:$0xff]
      %v488 = vld [vmem:[%s434 + $0x41] sm:$0xff]
      %v489 = vld [vmem:[%s434 + $0x51] sm:$0xff]
      %v490 = vld [vmem:[%s434 + $0x61] sm:$0xff]
      %v491 = vld [vmem:[%s434 + $0x71] sm:$0xff]
      %500 = vrot.lane.b32.xlu0 %v484, 56
      %v501 = vpop.permute.xlu0 %500
      %502 = vrot.lane.b32.xlu0 %v485, 56
      %v503 = vpop.permute.xlu0 %502
      %504 = vrot.lane.b32.xlu0 %v486, 56
      %v505 = vpop.permute.xlu0 %504
      %506 = vrot.lane.b32.xlu0 %v487, 56
      %v507 = vpop.permute.xlu0 %506
      %508 = vrot.lane.b32.xlu0 %v488, 56
      %v509 = vpop.permute.xlu0 %508
      %510 = vrot.lane.b32.xlu0 %v489, 56
      %v511 = vpop.permute.xlu0 %510
      %512 = vrot.lane.b32.xlu0 %v490, 56
      %v513 = vpop.permute.xlu0 %512
      %514 = vrot.lane.b32.xlu0 %v491, 56
      %v515 = vpop.permute.xlu0 %514
      %vm524 = vcmask 523712
      %525 = vst.msk [vmem:[#allocation2] sm:$0xff] %vm524, %v501
      %526 = vst.msk [vmem:[#allocation2 + $0x8] sm:$0xff] %vm524, %v503
      %527 = vst.msk [vmem:[#allocation2 + $0x10] sm:$0xff] %vm524, %v505
      %528 = vst.msk [vmem:[#allocation2 + $0x18] sm:$0xff] %vm524, %v507
      %529 = vst.msk [vmem:[#allocation2 + $0x20] sm:$0xff] %vm524, %v509
      %530 = vst.msk [vmem:[#allocation2 + $0x28] sm:$0xff] %vm524, %v511
      %531 = vst.msk [vmem:[#allocation2 + $0x30] sm:$0xff] %vm524, %v513
      %532 = vst.msk [vmem:[#allocation2 + $0x38] sm:$0xff] %vm524, %v515
      %v533 = vld [vmem:[%s434 + $0x2] sm:$0xff]
      %v534 = vld [vmem:[%s434 + $0x12] sm:$0xff]
      %v535 = vld [vmem:[%s434 + $0x22] sm:$0xff]
      %v536 = vld [vmem:[%s434 + $0x32] sm:$0xff]
      %v537 = vld [vmem:[%s434 + $0x42] sm:$0xff]
      %v538 = vld [vmem:[%s434 + $0x52] sm:$0xff]
      %v539 = vld [vmem:[%s434 + $0x62] sm:$0xff]
      %v540 = vld [vmem:[%s434 + $0x72] sm:$0xff]
      %549 = vrot.lane.b32.xlu0 %v533, 64
      %v550 = vpop.permute.xlu0 %549
      %551 = vrot.lane.b32.xlu0 %v534, 64
      %v552 = vpop.permute.xlu0 %551
      %553 = vrot.lane.b32.xlu0 %v535, 64
      %v554 = vpop.permute.xlu0 %553
      %555 = vrot.lane.b32.xlu0 %v536, 64
      %v556 = vpop.permute.xlu0 %555
      %557 = vrot.lane.b32.xlu0 %v537, 64
      %v558 = vpop.permute.xlu0 %557
      %559 = vrot.lane.b32.xlu0 %v538, 64
      %v560 = vpop.permute.xlu0 %559
      %561 = vrot.lane.b32.xlu0 %v539, 64
      %v562 = vpop.permute.xlu0 %561
      %563 = vrot.lane.b32.xlu0 %v540, 64
      %v564 = vpop.permute.xlu0 %563
      %vm573 = vcmask 589312
      %574 = vst.msk [vmem:[#allocation2] sm:$0xff] %vm573, %v550
      %575 = vst.msk [vmem:[#allocation2 + $0x8] sm:$0xff] %vm573, %v552
      %576 = vst.msk [vmem:[#allocation2 + $0x10] sm:$0xff] %vm573, %v554
      %577 = vst.msk [vmem:[#allocation2 + $0x18] sm:$0xff] %vm573, %v556
      %578 = vst.msk [vmem:[#allocation2 + $0x20] sm:$0xff] %vm573, %v558
      %579 = vst.msk [vmem:[#allocation2 + $0x28] sm:$0xff] %vm573, %v560
      %580 = vst.msk [vmem:[#allocation2 + $0x30] sm:$0xff] %vm573, %v562
      %581 = vst.msk [vmem:[#allocation2 + $0x38] sm:$0xff] %vm573, %v564
      %v582 = vld [vmem:[#allocation2] sm:$0xff]
      %v583 = vld [vmem:[#allocation2 + $0x8] sm:$0xff]
      %v584 = vld [vmem:[#allocation2 + $0x10] sm:$0xff]
      %v585 = vld [vmem:[#allocation2 + $0x18] sm:$0xff]
      %v586 = vld [vmem:[#allocation2 + $0x20] sm:$0xff]
      %v587 = vld [vmem:[#allocation2 + $0x28] sm:$0xff]
      %v588 = vld [vmem:[#allocation2 + $0x30] sm:$0xff]
      %v589 = vld [vmem:[#allocation2 + $0x38] sm:$0xff]
      %v590 = vld [vmem:[%s1] sm:$0xff]
      %v591 = vld [vmem:[%s1 + $0x8] sm:$0xff]
      %v592 = vld [vmem:[%s1 + $0x10] sm:$0xff]
      %v593 = vld [vmem:[%s1 + $0x18] sm:$0xff]
      %v594 = vld [vmem:[%s1 + $0x20] sm:$0xff]
      %v595 = vld [vmem:[%s1 + $0x28] sm:$0xff]
      %v596 = vld [vmem:[%s1 + $0x30] sm:$0xff]
      %v597 = vld [vmem:[%s1 + $0x38] sm:$0xff]
      %v598 = vld [vmem:[%s1 + $0x40] sm:$0xff]
      %v599 = vld [vmem:[%s2] sm:$0x1]
      %v601 = vlaneseq
      %v602 = vshrl.u32 %v601, 7
      %v603 = vsub.s32 0, %v602
      %v604 = vrot.slane %v599, %v603
      %vm606 = vcmask 588800
      %v608 = vsel %vm606, %v582, 0
      %v611 = vsel %vm606, %v583, 0
      %v614 = vsel %vm606, %v584, 0
      %v617 = vsel %vm606, %v585, 0
      %v620 = vsel %vm606, %v586, 0
      %v623 = vsel %vm606, %v587, 0
      %v626 = vsel %vm606, %v588, 0
      %v629 = vsel %vm606, %v589, 0
      %631 = vmatprep.subr.mxu0 0.0
      %632 = vmatpush1.msra.mxu0 %v590
      %633 = vmatprep.subr.mxu0 0.0
      %634 = vmatpush1.msra.mxu0 %v591
      %635 = vmatprep.subr.mxu0 0.0
      %636 = vmatpush1.msra.mxu0 %v592
      %637 = vmatprep.subr.mxu0 0.0
      %638 = vmatpush1.msra.mxu0 %v593
      %639 = vmatprep.subr.mxu0 0.0
      %640 = vmatpush1.msra.mxu0 %v594
      %641 = vmatprep.subr.mxu0 0.0
      %642 = vmatpush1.msra.mxu0 %v595
      %643 = vmatprep.subr.mxu0 0.0
      %644 = vmatpush1.msra.mxu0 %v596
      %645 = vmatprep.subr.mxu0 0.0
      %646 = vmatpush1.msra.mxu0 %v597
      %647 = vmatprep.subr.mxu0 0.0
      %648 = vmatpush1.msra.mxu0 %v598
      %649 = vmatprep.subr.mxu0 0.0
      %650 = vmatpush1.msra.mxu0 0.0
      %651 = vmatprep.subr.mxu0 0.0
      %652 = vmatpush1.msra.mxu0 0.0
      %653 = vmatprep.subr.mxu0 0.0
      %654 = vmatpush1.msra.mxu0 0.0
      %655 = vmatprep.subr.mxu0 0.0
      %656 = vmatpush1.msra.mxu0 0.0
      %657 = vmatprep.subr.mxu0 0.0
      %658 = vmatpush1.msra.mxu0 0.0
      %659 = vmatprep.subr.mxu0 0.0
      %660 = vmatpush1.msra.mxu0 0.0
      %661 = vmatprep.subr.mxu0 0.0
      %662 = vmatpush1.msra.mxu0 0.0
      %663 = vmatprep.subr.mxu0 0.0
      %664 = vmatpush1.msra.mxu0 0.0
      %665 = vmatprep.subr.mxu0 0.0
      %666 = vmatpush1.msra.mxu0 0.0
      %667 = vmatprep.subr.mxu0 0.0
      %668 = vmatpush1.msra.mxu0 0.0
      %669 = vmatprep.subr.mxu0 0.0
      %670 = vmatpush1.msra.mxu0 0.0
      %671 = vmatprep.subr.mxu0 0.0
      %672 = vmatpush1.msra.mxu0 0.0
      %673 = vmatprep.subr.mxu0 0.0
      %674 = vmatpush1.msra.mxu0 0.0
      %675 = vmatprep.subr.mxu0 0.0
      %676 = vmatpush1.msra.mxu0 0.0
      %677 = vmatprep.subr.mxu0 0.0
      %678 = vmatpush1.msra.mxu0 0.0
      %679 = vmatprep.subr.mxu0 0.0
      %680 = vmatpush1.msra.mxu0 0.0
      %681 = vmatprep.subr.mxu0 0.0
      %682 = vmatpush1.msra.mxu0 0.0
      %683 = vmatprep.subr.mxu0 0.0
      %684 = vmatpush1.msra.mxu0 0.0
      %685 = vmatprep.subr.mxu0 0.0
      %686 = vmatpush1.msra.mxu0 0.0
      %687 = vmatprep.subr.mxu0 0.0
      %688 = vmatpush1.msra.mxu0 0.0
      %689 = vmatprep.subr.mxu0 0.0
      %690 = vmatpush1.msra.mxu0 0.0
      %691 = vmatprep.subr.mxu0 0.0
      %692 = vmatpush1.msra.mxu0 0.0
      %693 = vmatprep.subr.mxu0 0.0
      %694 = vmatpush1.msra.mxu0 0.0
      %695 = vmatprep.mubr.f32.mxu0 0.0
      %696 = vmatmul.mubr.f32.gmra.mrb[0].mxu0 %v608
      %v697 = vpop.f32.mrb[0].mxu0
      %v698 = vadd.f32 %v604, %v697
      %v699 = vpop.f32.mrb[0].mxu0
      %700 = vmatprep.mubr.f32.mxu0 0.0
      %701 = vmatmul.mubr.f32.gmra.mrb[0].mxu0 %v611
      %v702 = vpop.f32.mrb[0].mxu0
      %v703 = vadd.f32 %v604, %v702
      %v704 = vpop.f32.mrb[0].mxu0
      %705 = vmatprep.mubr.f32.mxu0 0.0
      %706 = vmatmul.mubr.f32.gmra.mrb[0].mxu0 %v614
      %v707 = vpop.f32.mrb[0].mxu0
      %v708 = vadd.f32 %v604, %v707
      %v709 = vpop.f32.mrb[0].mxu0
      %710 = vmatprep.mubr.f32.mxu0 0.0
      %711 = vmatmul.mubr.f32.gmra.mrb[0].mxu0 %v617
      %v712 = vpop.f32.mrb[0].mxu0
      %v713 = vadd.f32 %v604, %v712
      %v714 = vpop.f32.mrb[0].mxu0
      %715 = vmatprep.mubr.f32.mxu0 0.0
      %716 = vmatmul.mubr.f32.gmra.mrb[0].mxu0 %v620
      %v717 = vpop.f32.mrb[0].mxu0
      %v718 = vadd.f32 %v604, %v717
      %v719 = vpop.f32.mrb[0].mxu0
      %720 = vmatprep.mubr.f32.mxu0 0.0
      %721 = vmatmul.mubr.f32.gmra.mrb[0].mxu0 %v623
      %v722 = vpop.f32.mrb[0].mxu0
      %v723 = vadd.f32 %v604, %v722
      %v724 = vpop.f32.mrb[0].mxu0
      %725 = vmatprep.mubr.f32.mxu0 0.0
      %726 = vmatmul.mubr.f32.gmra.mrb[0].mxu0 %v626
      %v727 = vpop.f32.mrb[0].mxu0
      %v728 = vadd.f32 %v604, %v727
      %v729 = vpop.f32.mrb[0].mxu0
      %730 = vmatprep.mubr.f32.mxu0 0.0
      %731 = vmatmul.mubr.f32.gmra.mrb[0].mxu0 %v629
      %v732 = vpop.f32.mrb[0].mxu0
      %v733 = vadd.f32 %v604, %v732
      %v734 = vpop.f32.mrb[0].mxu0
      %735 = vdwg.mxu0
      %v736 = vmax.f32 %v698, 0.0
      %v737 = vmax.f32 %v703, 0.0
      %v738 = vmax.f32 %v708, 0.0
      %v739 = vmax.f32 %v713, 0.0
      %v740 = vmax.f32 %v718, 0.0
      %v741 = vmax.f32 %v723, 0.0
      %v742 = vmax.f32 %v728, 0.0
      %v743 = vmax.f32 %v733, 0.0
      %v744 = vmax.f32 %v736, %v737
      %v745 = vmax.f32 %v738, %v739
      %v746 = vmax.f32 %v740, %v741
      %v747 = vmax.f32 %v742, %v743
      %vm748 = vcmask 130048
      %749 = vst.msk [vmem:[#allocation3] sm:$0xff] %vm748, %v744
      %750 = vst.msk [vmem:[#allocation3 + $0x8] sm:$0xff] %vm748, %v745
      %751 = vst.msk [vmem:[#allocation3 + $0x10] sm:$0xff] %vm748, %v746
      %752 = vst.msk [vmem:[#allocation3 + $0x18] sm:$0xff] %vm748, %v747
      %v753 = vld [vmem:[#allocation3] ss:$2 sm:$0xf]
      %s754 = scalar_lea.vmem [#allocation3], 8
      %v755 = vld [vmem:[%s754] ss:$2 sm:$0xf]
      %s756 = scalar_lea.vmem [#allocation3], 16
      %v757 = vld [vmem:[%s756] ss:$2 sm:$0xf]
      %s758 = scalar_lea.vmem [#allocation3], 24
      %v759 = vld [vmem:[%s758] ss:$2 sm:$0xf]
      %s760 = scalar_lea.vmem [#allocation3], 1
      %v761 = vld [vmem:[%s760] ss:$2 sm:$0xf]
      %s762 = scalar_lea.vmem [#allocation3], 9
      %v763 = vld [vmem:[%s762] ss:$2 sm:$0xf]
      %s764 = scalar_lea.vmem [#allocation3], 17
      %v765 = vld [vmem:[%s764] ss:$2 sm:$0xf]
      %s766 = scalar_lea.vmem [#allocation3], 25
      %v767 = vld [vmem:[%s766] ss:$2 sm:$0xf]
      %v768 = vmax.f32 %v753, %v761
      %v769 = vmax.f32 %v755, %v763
      %v770 = vmax.f32 %v757, %v765
      %v771 = vmax.f32 %v759, %v767
      %vm772 = vcmask 125952
      %773 = vst.msk [vmem:[%s170] sm:$0xf] %vm772, %v768
      %774 = vst.msk [vmem:[%s170 + $0x4] sm:$0xf] %vm772, %v769
      %775 = vst.msk [vmem:[%s170 + $0x8] sm:$0xf] %vm772, %v770
      %776 = vst.msk [vmem:[%s170 + $0xc] sm:$0xf] %vm772, %v771
      %p777 = scmp.lt.s32.totalorder %s14, 1
      %s778 = scalar_select %p777, %s14, 1
      %s779 = smul.addr %s778, 4
      %s780 = smul.addr %s779, 4
      %s781 = scalar_lea.vmem %s3, %s780
      // Predicated region
      $region33: #{cnn_forward.4} parent=31 // pred_check
        %p782 = pneg %p100
      $region34: #{cnn_forward.4} parent=31 // pred_check_branch
        %784 = sbr.rel (%p782) target = $region36
      $region35: #{cnn_forward.4} parent=31 // pred_region
        _
      $region36: #{cnn_forward.4} parent=31 // pred_fallthru
        _
    $region32: #{cnn_forward.4} parent=5 // pred_fallthru
      _
    %p785 = scmp.le.s32.totalorder 2, %s9
    // Predicated region
    $region37: #{cnn_forward.4} parent=5 // pred_check
      %p786 = pneg %p785
    $region38: #{cnn_forward.4} parent=5 // pred_check_branch
      %788 = sbr.rel (%p786) target = $region40
    $region39: #{cnn_forward.4} parent=5 // pred_region
      %s789 = ssub.s32 %s9, 2
      // Predicated region
      $region41: #{cnn_forward.4} parent=39 // pred_check
        %p790 = pneg %p106
      $region42: #{cnn_forward.4} parent=39 // pred_check_branch
        %792 = sbr.rel (%p790) target = $region44
      $region43: #{cnn_forward.4} parent=39 // pred_region
        %p793 = scmp.lt.s32.totalorder %s15, 1
        %s794 = scalar_select %p793, %s15, 1
        %s795 = smul.addr %s794, 4
        %s796 = smul.addr %s795, 4
        %s797 = scalar_lea.vmem %s3, %s796
      $region44: #{cnn_forward.4} parent=39 // pred_fallthru
        _
    $region40: #{cnn_forward.4} parent=5 // pred_fallthru
      _
  $region6: #{cnn_forward.4} parent=0 // loop_footer
    %s13 = sadd.s32 1, %s9
  $region7: #{cnn_forward.4} parent=0 // loop_footer_branch
    %8 = sbr.rel target = $region3
  $region8: #{cnn_forward.4} parent=0 // loop_exit
    _

// kernel: cnn_forward.3
$region0: #{cnn_forward.3}
  #allocation0 [shape = 'u32[]', space=smem, size = 0x4, offset = 0x4, fixed_abs, tag = 'smem constant byte address 0x4 - core index']
  #allocation1 [shape = 'u32[144,128]{1,0:T(1,128)}', space=vmem, size = 0x12000, scoped, tag = 'internal scratch']
  #allocation2 [shape = 'f32[256,36]{1,0:T(8,128)}', space=vmem, size = 0x20000, scoped, tag = 'scratch operand']
  #allocation3 [shape = 'f32[8,16,8]{2,1,0:T(8,128)}', space=vmem, size = 0x10000, scoped, tag = 'scratch operand']
  %s0 = inlined_call_operand.vmem [shape: f32[2,18,18,4], index: 0, kind: input, shape index: {}]
  %s1 = inlined_call_operand.vmem [shape: f32[36,8], index: 1, kind: input, shape index: {}]
  %s2 = inlined_call_operand.vmem [shape: f32[1,8], index: 2, kind: input, shape index: {}]
  %s3 = inlined_call_operand.vmem [shape: f32[2,8,8,8], index: 3, kind: output, shape index: {}]
  %s4 = sld [smem:[#allocation0]]
  $region45: #{cnn_forward.3} parent=0
    _
  %s6 = ssub.s32 1, %s4
  %s7 = scalar_select 0, %s6, %s4
  loop: start=0, step=1, limit=4
  $region2: #{cnn_forward.3} parent=0 // loop_pre_header
    _
  $region3: #{cnn_forward.3} parent=0 // loop_header
    %s9 = sphi 0, %s13
    %p10 = scmp.ge.s32.totalorder %s9, 4
    %s19 = sphi 0, %s21
    %s22 = sphi 0, %s19
    %s23 = sphi 0, %s22
    %s39 = sphi 0, %s23
    %s43 = sphi 0, %s43
    %s45 = sphi 0, %s43
    %s46 = sphi 0, %s45
    %s60 = sphi 0, %s46
    %s64 = sphi 0, %s64
    %s66 = sphi 0, %s64
    %s67 = sphi 0, %s66
    %s81 = sphi 0, %s67
    %s87 = sphi 0, %s89
    %s90 = sphi 0, %s87
    %s91 = sphi 0, %s90
    %s107 = sphi 0, %s91
  $region4: #{cnn_forward.3} parent=0 // loop_header_branch
    %12 = sbr.rel (%p10) target = $region8
  $region5: #{cnn_forward.3} parent=0 // loop_body
    %s14 = ssub.s32 %s9, 1
    %s15 = ssub.s32 %s9, 2
    %s16 = sadd.s32 %s9, 1
    %s17 = ssub.s32 %s9, %s16
    %p18 = scmp.eq.s32.totalorder %s17, 0
    %s20 = sadd.s32 %s19, 1
    %s21 = scalar_select %p18, %s19, %s20
    %p24 = pneg %p18
    %p25 = scmp.eq.s32.totalorder %s9, 1
    %p26 = por %p24, %p25
    %p27 = scmp.ne.s32.totalorder %s19, %s22
    %p28 = scmp.eq.s32.totalorder %s9, 0
    %p29 = por %p27, %p28
    %p30 = scmp.ne.s32.totalorder %s19, %s22
    %p31 = scmp.eq.s32.totalorder %s14, 1
    %p32 = por %p30, %p31
    %p33 = scmp.ne.s32.totalorder %s22, %s23
    %p34 = scmp.eq.s32.totalorder %s14, 0
    %p35 = por %p33, %p34
    %p36 = scmp.ne.s32.totalorder %s22, %s23
    %p37 = scmp.eq.s32.totalorder %s15, 1
    %p38 = por %p36, %p37
    %p40 = scmp.ne.s32.totalorder %s23, %s39
    %p41 = scmp.eq.s32.totalorder %s15, 0
    %p42 = por %p40, %p41
    %s44 = sadd.s32 %s43, 1
    %p47 = scmp.eq.s32.totalorder %s9, 1
    %p48 = scmp.ne.s32.totalorder %s43, %s45
    %p49 = scmp.eq.s32.totalorder %s9, 0
    %p50 = por %p48, %p49
    %p51 = scmp.ne.s32.totalorder %s43, %s45
    %p52 = scmp.eq.s32.totalorder %s14, 1
    %p53 = por %p51, %p52
    %p54 = scmp.ne.s32.totalorder %s45, %s46
    %p55 = scmp.eq.s32.totalorder %s14, 0
    %p56 = por %p54, %p55
    %p57 = scmp.ne.s32.totalorder %s45, %s46
    %p58 = scmp.eq.s32.totalorder %s15, 1
    %p59 = por %p57, %p58
    %p61 = scmp.ne.s32.totalorder %s46, %s60
    %p62 = scmp.eq.s32.totalorder %s15, 0
    %p63 = por %p61, %p62
    %s65 = sadd.s32 %s64, 1
    %p68 = scmp.eq.s32.totalorder %s9, 1
    %p69 = scmp.ne.s32.totalorder %s64, %s66
    %p70 = scmp.eq.s32.totalorder %s9, 0
    %p71 = por %p69, %p70
    %p72 = scmp.ne.s32.totalorder %s64, %s66
    %p73 = scmp.eq.s32.totalorder %s14, 1
    %p74 = por %p72, %p73
    %p75 = scmp.ne.s32.totalorder %s66, %s67
    %p76 = scmp.eq.s32.totalorder %s14, 0
    %p77 = por %p75, %p76
    %p78 = scmp.ne.s32.totalorder %s66, %s67
    %p79 = scmp.eq.s32.totalorder %s15, 1
    %p80 = por %p78, %p79
    %p82 = scmp.ne.s32.totalorder %s67, %s81
    %p83 = scmp.eq.s32.totalorder %s15, 0
    %p84 = por %p82, %p83
    %s85 = ssub.s32 %s9, %s16
    %p86 = scmp.eq.s32.totalorder %s85, 0
    %s88 = sadd.s32 %s87, 1
    %s89 = scalar_select %p86, %s87, %s88
    %p92 = pneg %p86
    %p93 = scmp.eq.s32.totalorder %s9, 1
    %p94 = por %p92, %p93
    %p95 = scmp.ne.s32.totalorder %s87, %s90
    %p96 = scmp.eq.s32.totalorder %s9, 0
    %p97 = por %p95, %p96
    %p98 = scmp.ne.s32.totalorder %s87, %s90
    %p99 = scmp.eq.s32.totalorder %s14, 1
    %p100 = por %p98, %p99
    %p101 = scmp.ne.s32.totalorder %s90, %s91
    %p102 = scmp.eq.s32.totalorder %s14, 0
    %p103 = por %p101, %p102
    %p104 = scmp.ne.s32.totalorder %s90, %s91
    %p105 = scmp.eq.s32.totalorder %s15, 1
    %p106 = por %p104, %p105
    %p108 = scmp.ne.s32.totalorder %s91, %s107
    %p109 = scmp.eq.s32.totalorder %s15, 0
    %p110 = por %p108, %p109
    %p111 = scmp.le.s32.totalorder 1, %s9
    %p112 = scmp.lt.s32.totalorder %s9, 3
    %p113 = pnand %p111, %p112
    %p114 = pneg %p113
    // Predicated region
    $region9: #{cnn_forward.3} parent=5 // pred_check
      _
    $region10: #{cnn_forward.3} parent=5 // pred_check_branch
      %116 = sbr.rel (%p113) target = $region12
    $region11: #{cnn_forward.3} parent=5 // pred_region
      %s117 = ssub.s32 %s9, 1
      // Predicated region
      $region13: #{cnn_forward.3} parent=11 // pred_check
        %p118 = pneg %p56
      $region14: #{cnn_forward.3} parent=11 // pred_check_branch
        %120 = sbr.rel (%p118) target = $region16
      $region15: #{cnn_forward.3} parent=11 // pred_region
        _
      $region16: #{cnn_forward.3} parent=11 // pred_fallthru
        _
      // Predicated region
      $region17: #{cnn_forward.3} parent=11 // pred_check
        %p121 = pneg %p77
      $region18: #{cnn_forward.3} parent=11 // pred_check_branch
        %123 = sbr.rel (%p121) target = $region20
      $region19: #{cnn_forward.3} parent=11 // pred_region
        _
      $region20: #{cnn_forward.3} parent=11 // pred_fallthru
        _
    $region12: #{cnn_forward.3} parent=5 // pred_fallthru
      _
    %p124 = scmp.lt.s32.totalorder %s9, 2
    // Predicated region
    $region21: #{cnn_forward.3} parent=5 // pred_check
      %p125 = pneg %p124
    $region22: #{cnn_forward.3} parent=5 // pred_check_branch
      %127 = sbr.rel (%p125) target = $region24
    $region23: #{cnn_forward.3} parent=5 // pred_region
      // Predicated region
      $region25: #{cnn_forward.3} parent=23 // pred_check
        %p128 = pneg %p29
      $region26: #{cnn_forward.3} parent=23 // pred_check_branch
        %130 = sbr.rel (%p128) target = $region28
      $region27: #{cnn_forward.3} parent=23 // pred_region
        %p131 = scmp.lt.s32.totalorder %s9, 1
        %s132 = scalar_select %p131, %s9, 1
        %s133 = smul.addr %s132, 54
        %s134 = smul.addr %s133, 8
        %s135 = scalar_lea.vmem %s0, %s134
      $region28: #{cnn_forward.3} parent=23 // pred_fallthru
        _
    $region24: #{cnn_forward.3} parent=5 // pred_fallthru
      _
    %p136 = scmp.le.s32.totalorder 1, %s9
    %p137 = scmp.lt.s32.totalorder %s9, 3
    %p138 = pnand %p136, %p137
    %p139 = pneg %p138
    // Predicated region
    $region29: #{cnn_forward.3} parent=5 // pred_check
      _
    $region30: #{cnn_forward.3} parent=5 // pred_check_branch
      %141 = sbr.rel (%p138) target = $region32
    $region31: #{cnn_forward.3} parent=5 // pred_region
      %s142 = ssub.s32 %s9, 1
      %p143 = scmp.lt.s32.totalorder %s14, 1
      %s144 = scalar_select %p143, %s14, 1
      %s145 = smul.addr %s144, 54
      %s146 = smul.addr %s145, 8
      %s147 = scalar_lea.vmem %s0, %s146
      %p148 = pneg %p35
      %p149 = pneg %p32
      %p150 = pneg %p56
      %p151 = pneg %p53
      %p152 = pneg %p77
      %p153 = pneg %p74
      %p154 = pneg %p103
      %p155 = pneg %p100
      %p156 = scmp.lt.s32.totalorder %s14, 1
      %s157 = scalar_select %p156, %s14, 1
      %s158 = smul.addr %s157, 8
      %s159 = smul.addr %s158, 8
      %s160 = scalar_lea.vmem %s3, %s159
      %p161 = scmp.lt.s32.totalorder %s14, 1
      %s162 = scalar_select %p161, %s14, 1
      %s163 = smul.addr %s162, 54
      %s164 = smul.addr %s163, 8
      %s165 = scalar_lea.vmem %s0, %s164
      %p166 = scmp.lt.s32.totalorder %s14, 1
      %s167 = scalar_select %p166, %s14, 1
      %s168 = smul.addr %s167, 8
      %s169 = smul.addr %s168, 8
      %s170 = scalar_lea.vmem %s3, %s169
      %v171 = vld [vmem:[%s165] sm:$0xff]
      %v172 = vld [vmem:[%s165 + $0x8] sm:$0xff]
      %v173 = vld [vmem:[%s165 + $0x18] sm:$0xff]
      %v174 = vld [vmem:[%s165 + $0x20] sm:$0xff]
      %v175 = vld [vmem:[%s165 + $0x30] sm:$0xff]
      %v176 = vld [vmem:[%s165 + $0x38] sm:$0xff]
      %v177 = vld [vmem:[%s165 + $0x48] sm:$0xff]
      %v178 = vld [vmem:[%s165 + $0x50] sm:$0xff]
      %v179 = vld [vmem:[%s165 + $0x60] sm:$0xff]
      %v180 = vld [vmem:[%s165 + $0x68] sm:$0xff]
      %v181 = vld [vmem:[%s165 + $0x78] sm:$0xff]
      %v182 = vld [vmem:[%s165 + $0x80] sm:$0xff]
      %v183 = vld [vmem:[%s165 + $0x90] sm:$0xff]
      %v184 = vld [vmem:[%s165 + $0x98] sm:$0xff]
      %v185 = vld [vmem:[%s165 + $0xa8] sm:$0xff]
      %v186 = vld [vmem:[%s165 + $0xb0] sm:$0xff]
      %v187 = vld [vmem:[%s165 + $0xc0] sm:$0xff]
      %v188 = vld [vmem:[%s165 + $0xc8] sm:$0xff]
      %v189 = vld [vmem:[%s165 + $0xd8] sm:$0xff]
      %v190 = vld [vmem:[%s165 + $0xe0] sm:$0xff]
      %v191 = vld [vmem:[%s165 + $0xf0] sm:$0xff]
      %v192 = vld [vmem:[%s165 + $0xf8] sm:$0xff]
      %v193 = vld [vmem:[%s165 + $0x108] sm:$0xff]
      %v194 = vld [vmem:[%s165 + $0x110] sm:$0xff]
      %v195 = vld [vmem:[%s165 + $0x120] sm:$0xff]
      %v196 = vld [vmem:[%s165 + $0x128] sm:$0xff]
      %v197 = vld [vmem:[%s165 + $0x138] sm:$0xff]
      %v198 = vld [vmem:[%s165 + $0x140] sm:$0xff]
      %v199 = vld [vmem:[%s165 + $0x150] sm:$0xff]
      %v200 = vld [vmem:[%s165 + $0x158] sm:$0xff]
      %v201 = vld [vmem:[%s165 + $0x168] sm:$0xff]
      %v202 = vld [vmem:[%s165 + $0x170] sm:$0xff]
      %vm203 = vcmask 31744
      %204 = vst.msk [vmem:[#allocation2] sm:$0xff] %vm203, %v171
      %205 = vst.msk [vmem:[#allocation2 + $0x8] sm:$0xff] %vm203, %v172
      %206 = vst.msk [vmem:[#allocation2 + $0x10] sm:$0xff] %vm203, %v173
      %207 = vst.msk [vmem:[#allocation2 + $0x18] sm:$0xff] %vm203, %v174
      %208 = vst.msk [vmem:[#allocation2 + $0x20] sm:$0xff] %vm203, %v175
      %209 = vst.msk [vmem:[#allocation2 + $0x28] sm:$0xff] %vm203, %v176
      %210 = vst.msk [vmem:[#allocation2 + $0x30] sm:$0xff] %vm203, %v177
      %211 = vst.msk [vmem:[#allocation2 + $0x38] sm:$0xff] %vm203, %v178
      %212 = vst.msk [vmem:[#allocation2 + $0x40] sm:$0xff] %vm203, %v179
      %213 = vst.msk [vmem:[#allocation2 + $0x48] sm:$0xff] %vm203, %v180
      %214 = vst.msk [vmem:[#allocation2 + $0x50] sm:$0xff] %vm203, %v181
      %215 = vst.msk [vmem:[#allocation2 + $0x58] sm:$0xff] %vm203, %v182
      %216 = vst.msk [vmem:[#allocation2 + $0x60] sm:$0xff] %vm203, %v183
      %217 = vst.msk [vmem:[#allocation2 + $0x68] sm:$0xff] %vm203, %v184
      %218 = vst.msk [vmem:[#allocation2 + $0x70] sm:$0xff] %vm203, %v185
      %219 = vst.msk [vmem:[#allocation2 + $0x78] sm:$0xff] %vm203, %v186
      %220 = vst.msk [vmem:[#allocation2 + $0x80] sm:$0xff] %vm203, %v187
      %221 = vst.msk [vmem:[#allocation2 + $0x88] sm:$0xff] %vm203, %v188
      %222 = vst.msk [vmem:[#allocation2 + $0x90] sm:$0xff] %vm203, %v189
      %223 = vst.msk [vmem:[#allocation2 + $0x98] sm:$0xff] %vm203, %v190
      %224 = vst.msk [vmem:[#allocation2 + $0xa0] sm:$0xff] %vm203, %v191
      %225 = vst.msk [vmem:[#allocation2 + $0xa8] sm:$0xff] %vm203, %v192
      %226 = vst.msk [vmem:[#allocation2 + $0xb0] sm:$0xff] %vm203, %v193
      %227 = vst.msk [vmem:[#allocation2 + $0xb8] sm:$0xff] %vm203, %v194
      %228 = vst.msk [vmem:[#allocation2 + $0xc0] sm:$0xff] %vm203, %v195
      %229 = vst.msk [vmem:[#allocation2 + $0xc8] sm:$0xff] %vm203, %v196
      %230 = vst.msk [vmem:[#allocation2 + $0xd0] sm:$0xff] %vm203, %v197
      %231 = vst.msk [vmem:[#allocation2 + $0xd8] sm:$0xff] %vm203, %v198
      %232 = vst.msk [vmem:[#allocation2 + $0xe0] sm:$0xff] %vm203, %v199
      %233 = vst.msk [vmem:[#allocation2 + $0xe8] sm:$0xff] %vm203, %v200
      %234 = vst.msk [vmem:[#allocation2 + $0xf0] sm:$0xff] %vm203, %v201
      %235 = vst.msk [vmem:[#allocation2 + $0xf8] sm:$0xff] %vm203, %v202
      %v236 = vld [vmem:[%s165 + $0x1] sm:$0xff]
      %v237 = vld [vmem:[%s165 + $0x9] sm:$0xff]
      %v238 = vld [vmem:[%s165 + $0x19] sm:$0xff]
      %v239 = vld [vmem:[%s165 + $0x21] sm:$0xff]
      %v240 = vld [vmem:[%s165 + $0x31] sm:$0xff]
      %v241 = vld [vmem:[%s165 + $0x39] sm:$0xff]
      %v242 = vld [vmem:[%s165 + $0x49] sm:$0xff]
      %v243 = vld [vmem:[%s165 + $0x51] sm:$0xff]
      %v244 = vld [vmem:[%s165 + $0x61] sm:$0xff]
      %v245 = vld [vmem:[%s165 + $0x69] sm:$0xff]
      %v246 = vld [vmem:[%s165 + $0x79] sm:$0xff]
      %v247 = vld [vmem:[%s165 + $0x81] sm:$0xff]
      %v248 = vld [vmem:[%s165 + $0x91] sm:$0xff]
      %v249 = vld [vmem:[%s165 + $0x99] sm:$0xff]
      %v250 = vld [vmem:[%s165 + $0xa9] sm:$0xff]
      %v251 = vld [vmem:[%s165 + $0xb1] sm:$0xff]
      %v252 = vld [vmem:[%s165 + $0xc1] sm:$0xff]
      %v253 = vld [vmem:[%s165 + $0xc9] sm:$0xff]
      %v254 = vld [vmem:[%s165 + $0xd9] sm:$0xff]
      %v255 = vld [vmem:[%s165 + $0xe1] sm:$0xff]
      %v256 = vld [vmem:[%s165 + $0xf1] sm:$0xff]
      %v257 = vld [vmem:[%s165 + $0xf9] sm:$0xff]
      %v258 = vld [vmem:[%s165 + $0x109] sm:$0xff]
      %v259 = vld [vmem:[%s165 + $0x111] sm:$0xff]
      %v260 = vld [vmem:[%s165 + $0x121] sm:$0xff]
      %v261 = vld [vmem:[%s165 + $0x129] sm:$0xff]
      %v262 = vld [vmem:[%s165 + $0x139] sm:$0xff]
      %v263 = vld [vmem:[%s165 + $0x141] sm:$0xff]
      %v264 = vld [vmem:[%s165 + $0x151] sm:$0xff]
      %v265 = vld [vmem:[%s165 + $0x159] sm:$0xff]
      %v266 = vld [vmem:[%s165 + $0x169] sm:$0xff]
      %v267 = vld [vmem:[%s165 + $0x171] sm:$0xff]
      %300 = vrot.lane.b32.xlu0 %v236, 4
      %v301 = vpop.permute.xlu0 %300
      %302 = vrot.lane.b32.xlu0 %v237, 4
      %v303 = vpop.permute.xlu0 %302
      %304 = vrot.lane.b32.xlu0 %v238, 4
      %v305 = vpop.permute.xlu0 %304
      %306 = vrot.lane.b32.xlu0 %v239, 4
      %v307 = vpop.permute.xlu0 %306
      %308 = vrot.lane.b32.xlu0 %v240, 4
      %v309 = vpop.permute.xlu0 %308
      %310 = vrot.lane.b32.xlu0 %v241, 4
      %v311 = vpop.permute.xlu0 %310
      %312 = vrot.lane.b32.xlu0 %v242, 4
      %v313 = vpop.permute.xlu0 %312
      %314 = vrot.lane.b32.xlu0 %v243, 4
      %v315 = vpop.permute.xlu0 %314
      %316 = vrot.lane.b32.xlu0 %v244, 4
      %v317 = vpop.permute.xlu0 %316
      %318 = vrot.lane.b32.xlu0 %v245, 4
      %v319 = vpop.permute.xlu0 %318
      %320 = vrot.lane.b32.xlu0 %v246, 4
      %v321 = vpop.permute.xlu0 %320
      %322 = vrot.lane.b32.xlu0 %v247, 4
      %v323 = vpop.permute.xlu0 %322
      %324 = vrot.lane.b32.xlu0 %v248, 4
      %v325 = vpop.permute.xlu0 %324
      %326 = vrot.lane.b32.xlu0 %v249, 4
      %v327 = vpop.permute.xlu0 %326
      %328 = vrot.lane.b32.xlu0 %v250, 4
      %v329 = vpop.permute.xlu0 %328
      %330 = vrot.lane.b32.xlu0 %v251, 4
      %v331 = vpop.permute.xlu0 %330
      %332 = vrot.lane.b32.xlu0 %v252, 4
      %v333 = vpop.permute.xlu0 %332
      %334 = vrot.lane.b32.xlu0 %v253, 4
      %v335 = vpop.permute.xlu0 %334
      %336 = vrot.lane.b32.xlu0 %v254, 4
      %v337 = vpop.permute.xlu0 %336
      %338 = vrot.lane.b32.xlu0 %v255, 4
      %v339 = vpop.permute.xlu0 %338
      %340 = vrot.lane.b32.xlu0 %v256, 4
      %v341 = vpop.permute.xlu0 %340
      %342 = vrot.lane.b32.xlu0 %v257, 4
      %v343 = vpop.permute.xlu0 %342
      %344 = vrot.lane.b32.xlu0 %v258, 4
      %v345 = vpop.permute.xlu0 %344
      %346 = vrot.lane.b32.xlu0 %v259, 4
      %v347 = vpop.permute.xlu0 %346
      %348 = vrot.lane.b32.xlu0 %v260, 4
      %v349 = vpop.permute.xlu0 %348
      %350 = vrot.lane.b32.xlu0 %v261, 4
      %v351 = vpop.permute.xlu0 %350
      %352 = vrot.lane.b32.xlu0 %v262, 4
      %v353 = vpop.permute.xlu0 %352
      %354 = vrot.lane.b32.xlu0 %v263, 4
      %v355 = vpop.permute.xlu0 %354
      %356 = vrot.lane.b32.xlu0 %v264, 4
      %v357 = vpop.permute.xlu0 %356
      %358 = vrot.lane.b32.xlu0 %v265, 4
      %v359 = vpop.permute.xlu0 %358
      %360 = vrot.lane.b32.xlu0 %v266, 4
      %v361 = vpop.permute.xlu0 %360
      %362 = vrot.lane.b32.xlu0 %v267, 4
      %v363 = vpop.permute.xlu0 %362
      %vm396 = vcmask 64544
      %397 = vst.msk [vmem:[#allocation2] sm:$0xff] %vm396, %v301
      %398 = vst.msk [vmem:[#allocation2 + $0x8] sm:$0xff] %vm396, %v303
      %399 = vst.msk [vmem:[#allocation2 + $0x10] sm:$0xff] %vm396, %v305
      %400 = vst.msk [vmem:[#allocation2 + $0x18] sm:$0xff] %vm396, %v307
      %401 = vst.msk [vmem:[#allocation2 + $0x20] sm:$0xff] %vm396, %v309
      %402 = vst.msk [vmem:[#allocation2 + $0x28] sm:$0xff] %vm396, %v311
      %403 = vst.msk [vmem:[#allocation2 + $0x30] sm:$0xff] %vm396, %v313
      %404 = vst.msk [vmem:[#allocation2 + $0x38] sm:$0xff] %vm396, %v315
      %405 = vst.msk [vmem:[#allocation2 + $0x40] sm:$0xff] %vm396, %v317
      %406 = vst.msk [vmem:[#allocation2 + $0x48] sm:$0xff] %vm396, %v319
      %407 = vst.msk [vmem:[#allocation2 + $0x50] sm:$0xff] %vm396, %v321
      %408 = vst.msk [vmem:[#allocation2 + $0x58] sm:$0xff] %vm396, %v323
      %409 = vst.msk [vmem:[#allocation2 + $0x60] sm:$0xff] %vm396, %v325
      %410 = vst.msk [vmem:[#allocation2 + $0x68] sm:$0xff] %vm396, %v327
      %411 = vst.msk [vmem:[#allocation2 + $0x70] sm:$0xff] %vm396, %v329
      %412 = vst.msk [vmem:[#allocation2 + $0x78] sm:$0xff] %vm396, %v331
      %413 = vst.msk [vmem:[#allocation2 + $0x80] sm:$0xff] %vm396, %v333
      %414 = vst.msk [vmem:[#allocation2 + $0x88] sm:$0xff] %vm396, %v335
      %415 = vst.msk [vmem:[#allocation2 + $0x90] sm:$0xff] %vm396, %v337
      %416 = vst.msk [vmem:[#allocation2 + $0x98] sm:$0xff] %vm396, %v339
      %417 = vst.msk [vmem:[#allocation2 + $0xa0] sm:$0xff] %vm396, %v341
      %418 = vst.msk [vmem:[#allocation2 + $0xa8] sm:$0xff] %vm396, %v343
      %419 = vst.msk [vmem:[#allocation2 + $0xb0] sm:$0xff] %vm396, %v345
      %420 = vst.msk [vmem:[#allocation2 + $0xb8] sm:$0xff] %vm396, %v347
      %421 = vst.msk [vmem:[#allocation2 + $0xc0] sm:$0xff] %vm396, %v349
      %422 = vst.msk [vmem:[#allocation2 + $0xc8] sm:$0xff] %vm396, %v351
      %423 = vst.msk [vmem:[#allocation2 + $0xd0] sm:$0xff] %vm396, %v353
      %424 = vst.msk [vmem:[#allocation2 + $0xd8] sm:$0xff] %vm396, %v355
      %425 = vst.msk [vmem:[#allocation2 + $0xe0] sm:$0xff] %vm396, %v357
      %426 = vst.msk [vmem:[#allocation2 + $0xe8] sm:$0xff] %vm396, %v359
      %427 = vst.msk [vmem:[#allocation2 + $0xf0] sm:$0xff] %vm396, %v361
      %428 = vst.msk [vmem:[#allocation2 + $0xf8] sm:$0xff] %vm396, %v363
      %v429 = vld [vmem:[%s165 + $0x2] sm:$0xff]
      %v430 = vld [vmem:[%s165 + $0xa] sm:$0xff]
      %v431 = vld [vmem:[%s165 + $0x1a] sm:$0xff]
      %v432 = vld [vmem:[%s165 + $0x22] sm:$0xff]
      %v433 = vld [vmem:[%s165 + $0x32] sm:$0xff]
      %v434 = vld [vmem:[%s165 + $0x3a] sm:$0xff]
      %v435 = vld [vmem:[%s165 + $0x4a] sm:$0xff]
      %v436 = vld [vmem:[%s165 + $0x52] sm:$0xff]
      %v437 = vld [vmem:[%s165 + $0x62] sm:$0xff]
      %v438 = vld [vmem:[%s165 + $0x6a] sm:$0xff]
      %v439 = vld [vmem:[%s165 + $0x7a] sm:$0xff]
      %v440 = vld [vmem:[%s165 + $0x82] sm:$0xff]
      %v441 = vld [vmem:[%s165 + $0x92] sm:$0xff]
      %v442 = vld [vmem:[%s165 + $0x9a] sm:$0xff]
      %v443 = vld [vmem:[%s165 + $0xaa] sm:$0xff]
      %v444 = vld [vmem:[%s165 + $0xb2] sm:$0xff]
      %v445 = vld [vmem:[%s165 + $0xc2] sm:$0xff]
      %v446 = vld [vmem:[%s165 + $0xca] sm:$0xff]
      %v447 = vld [vmem:[%s165 + $0xda] sm:$0xff]
      %v448 = vld [vmem:[%s165 + $0xe2] sm:$0xff]
      %v449 = vld [vmem:[%s165 + $0xf2] sm:$0xff]
      %v450 = vld [vmem:[%s165 + $0xfa] sm:$0xff]
      %v451 = vld [vmem:[%s165 + $0x10a] sm:$0xff]
      %v452 = vld [vmem:[%s165 + $0x112] sm:$0xff]
      %v453 = vld [vmem:[%s165 + $0x122] sm:$0xff]
      %v454 = vld [vmem:[%s165 + $0x12a] sm:$0xff]
      %v455 = vld [vmem:[%s165 + $0x13a] sm:$0xff]
      %v456 = vld [vmem:[%s165 + $0x142] sm:$0xff]
      %v457 = vld [vmem:[%s165 + $0x152] sm:$0xff]
      %v458 = vld [vmem:[%s165 + $0x15a] sm:$0xff]
      %v459 = vld [vmem:[%s165 + $0x16a] sm:$0xff]
      %v460 = vld [vmem:[%s165 + $0x172] sm:$0xff]
      %493 = vrot.lane.b32.xlu0 %v429, 8
      %v494 = vpop.permute.xlu0 %493
      %495 = vrot.lane.b32.xlu0 %v430, 8
      %v496 = vpop.permute.xlu0 %495
      %497 = vrot.lane.b32.xlu0 %v431, 8
      %v498 = vpop.permute.xlu0 %497
      %499 = vrot.lane.b32.xlu0 %v432, 8
      %v500 = vpop.permute.xlu0 %499
      %501 = vrot.lane.b32.xlu0 %v433, 8
      %v502 = vpop.permute.xlu0 %501
      %503 = vrot.lane.b32.xlu0 %v434, 8
      %v504 = vpop.permute.xlu0 %503
      %505 = vrot.lane.b32.xlu0 %v435, 8
      %v506 = vpop.permute.xlu0 %505
      %507 = vrot.lane.b32.xlu0 %v436, 8
      %v508 = vpop.permute.xlu0 %507
      %509 = vrot.lane.b32.xlu0 %v437, 8
      %v510 = vpop.permute.xlu0 %509
      %511 = vrot.lane.b32.xlu0 %v438, 8
      %v512 = vpop.permute.xlu0 %511
      %513 = vrot.lane.b32.xlu0 %v439, 8
      %v514 = vpop.permute.xlu0 %513
      %515 = vrot.lane.b32.xlu0 %v440, 8
      %v516 = vpop.permute.xlu0 %515
      %517 = vrot.lane.b32.xlu0 %v441, 8
      %v518 = vpop.permute.xlu0 %517
      %519 = vrot.lane.b32.xlu0 %v442, 8
      %v520 = vpop.permute.xlu0 %519
      %521 = vrot.lane.b32.xlu0 %v443, 8
      %v522 = vpop.permute.xlu0 %521
      %523 = vrot.lane.b32.xlu0 %v444, 8
      %v524 = vpop.permute.xlu0 %523
      %525 = vrot.lane.b32.xlu0 %v445, 8
      %v526 = vpop.permute.xlu0 %525
      %527 = vrot.lane.b32.xlu0 %v446, 8
      %v528 = vpop.permute.xlu0 %527
      %529 = vrot.lane.b32.xlu0 %v447, 8
      %v530 = vpop.permute.xlu0 %529
      %531 = vrot.lane.b32.xlu0 %v448, 8
      %v532 = vpop.permute.xlu0 %531
      %533 = vrot.lane.b32.xlu0 %v449, 8
      %v534 = vpop.permute.xlu0 %533
      %535 = vrot.lane.b32.xlu0 %v450, 8
      %v536 = vpop.permute.xlu0 %535
      %537 = vrot.lane.b32.xlu0 %v451, 8
      %v538 = vpop.permute.xlu0 %537
      %539 = vrot.lane.b32.xlu0 %v452, 8
      %v540 = vpop.permute.xlu0 %539
      %541 = vrot.lane.b32.xlu0 %v453, 8
      %v542 = vpop.permute.xlu0 %541
      %543 = vrot.lane.b32.xlu0 %v454, 8
      %v544 = vpop.permute.xlu0 %543
      %545 = vrot.lane.b32.xlu0 %v455, 8
      %v546 = vpop.permute.xlu0 %545
      %547 = vrot.lane.b32.xlu0 %v456, 8
      %v548 = vpop.permute.xlu0 %547
      %549 = vrot.lane.b32.xlu0 %v457, 8
      %v550 = vpop.permute.xlu0 %549
      %551 = vrot.lane.b32.xlu0 %v458, 8
      %v552 = vpop.permute.xlu0 %551
      %553 = vrot.lane.b32.xlu0 %v459, 8
      %v554 = vpop.permute.xlu0 %553
      %555 = vrot.lane.b32.xlu0 %v460, 8
      %v556 = vpop.permute.xlu0 %555
      %vm589 = vcmask 97344
      %590 = vst.msk [vmem:[#allocation2] sm:$0xff] %vm589, %v494
      %591 = vst.msk [vmem:[#allocation2 + $0x8] sm:$0xff] %vm589, %v496
      %592 = vst.msk [vmem:[#allocation2 + $0x10] sm:$0xff] %vm589, %v498
      %593 = vst.msk [vmem:[#allocation2 + $0x18] sm:$0xff] %vm589, %v500
      %594 = vst.msk [vmem:[#allocation2 + $0x20] sm:$0xff] %vm589, %v502
      %595 = vst.msk [vmem:[#allocation2 + $0x28] sm:$0xff] %vm589, %v504
      %596 = vst.msk [vmem:[#allocation2 + $0x30] sm:$0xff] %vm589, %v506
      %597 = vst.msk [vmem:[#allocation2 + $0x38] sm:$0xff] %vm589, %v508
      %598 = vst.msk [vmem:[#allocation2 + $0x40] sm:$0xff] %vm589, %v510
      %599 = vst.msk [vmem:[#allocation2 + $0x48] sm:$0xff] %vm589, %v512
      %600 = vst.msk [vmem:[#allocation2 + $0x50] sm:$0xff] %vm589, %v514
      %601 = vst.msk [vmem:[#allocation2 + $0x58] sm:$0xff] %vm589, %v516
      %602 = vst.msk [vmem:[#allocation2 + $0x60] sm:$0xff] %vm589, %v518
      %603 = vst.msk [vmem:[#allocation2 + $0x68] sm:$0xff] %vm589, %v520
      %604 = vst.msk [vmem:[#allocation2 + $0x70] sm:$0xff] %vm589, %v522
      %605 = vst.msk [vmem:[#allocation2 + $0x78] sm:$0xff] %vm589, %v524
      %606 = vst.msk [vmem:[#allocation2 + $0x80] sm:$0xff] %vm589, %v526
      %607 = vst.msk [vmem:[#allocation2 + $0x88] sm:$0xff] %vm589, %v528
      %608 = vst.msk [vmem:[#allocation2 + $0x90] sm:$0xff] %vm589, %v530
      %609 = vst.msk [vmem:[#allocation2 + $0x98] sm:$0xff] %vm589, %v532
      %610 = vst.msk [vmem:[#allocation2 + $0xa0] sm:$0xff] %vm589, %v534
      %611 = vst.msk [vmem:[#allocation2 + $0xa8] sm:$0xff] %vm589, %v536
      %612 = vst.msk [vmem:[#allocation2 + $0xb0] sm:$0xff] %vm589, %v538
      %613 = vst.msk [vmem:[#allocation2 + $0xb8] sm:$0xff] %vm589, %v540
      %614 = vst.msk [vmem:[#allocation2 + $0xc0] sm:$0xff] %vm589, %v542
      %615 = vst.msk [vmem:[#allocation2 + $0xc8] sm:$0xff] %vm589, %v544
      %616 = vst.msk [vmem:[#allocation2 + $0xd0] sm:$0xff] %vm589, %v546
      %617 = vst.msk [vmem:[#allocation2 + $0xd8] sm:$0xff] %vm589, %v548
      %618 = vst.msk [vmem:[#allocation2 + $0xe0] sm:$0xff] %vm589, %v550
      %619 = vst.msk [vmem:[#allocation2 + $0xe8] sm:$0xff] %vm589, %v552
      %620 = vst.msk [vmem:[#allocation2 + $0xf0] sm:$0xff] %vm589, %v554
      %621 = vst.msk [vmem:[#allocation2 + $0xf8] sm:$0xff] %vm589, %v556
      %s622 = scalar_lea.vmem %s165, 24
      %v623 = vld [vmem:[%s622] sm:$0xff]
      %v624 = vld [vmem:[%s622 + $0x8] sm:$0xff]
      %v625 = vld [vmem:[%s622 + $0x18] sm:$0xff]
      %v626 = vld [vmem:[%s622 + $0x20] sm:$0xff]
      %v627 = vld [vmem:[%s622 + $0x30] sm:$0xff]
      %v628 = vld [vmem:[%s622 + $0x38] sm:$0xff]
      %v629 = vld [vmem:[%s622 + $0x48] sm:$0xff]
      %v630 = vld [vmem:[%s622 + $0x50] sm:$0xff]
      %v631 = vld [vmem:[%s622 + $0x60] sm:$0xff]
      %v632 = vld [vmem:[%s622 + $0x68] sm:$0xff]
      %v633 = vld [vmem:[%s622 + $0x78] sm:$0xff]
      %v634 = vld [vmem:[%s622 + $0x80] sm:$0xff]
      %v635 = vld [vmem:[%s622 + $0x90] sm:$0xff]
      %v636 = vld [vmem:[%s622 + $0x98] sm:$0xff]
      %v637 = vld [vmem:[%s622 + $0xa8] sm:$0xff]
      %v638 = vld [vmem:[%s622 + $0xb0] sm:$0xff]
      %v639 = vld [vmem:[%s622 + $0xc0] sm:$0xff]
      %v640 = vld [vmem:[%s622 + $0xc8] sm:$0xff]
      %v641 = vld [vmem:[%s622 + $0xd8] sm:$0xff]
      %v642 = vld [vmem:[%s622 + $0xe0] sm:$0xff]
      %v643 = vld [vmem:[%s622 + $0xf0] sm:$0xff]
      %v644 = vld [vmem:[%s622 + $0xf8] sm:$0xff]
      %v645 = vld [vmem:[%s622 + $0x108] sm:$0xff]
      %v646 = vld [vmem:[%s622 + $0x110] sm:$0xff]
      %v647 = vld [vmem:[%s622 + $0x120] sm:$0xff]
      %v648 = vld [vmem:[%s622 + $0x128] sm:$0xff]
      %v649 = vld [vmem:[%s622 + $0x138] sm:$0xff]
      %v650 = vld [vmem:[%s622 + $0x140] sm:$0xff]
      %v651 = vld [vmem:[%s622 + $0x150] sm:$0xff]
      %v652 = vld [vmem:[%s622 + $0x158] sm:$0xff]
      %v653 = vld [vmem:[%s622 + $0x168] sm:$0xff]
      %v654 = vld [vmem:[%s622 + $0x170] sm:$0xff]
      %687 = vrot.lane.b32.xlu0 %v623, 12
      %v688 = vpop.permute.xlu0 %687
      %689 = vrot.lane.b32.xlu0 %v624, 12
      %v690 = vpop.permute.xlu0 %689
      %691 = vrot.lane.b32.xlu0 %v625, 12
      %v692 = vpop.permute.xlu0 %691
      %693 = vrot.lane.b32.xlu0 %v626, 12
      %v694 = vpop.permute.xlu0 %693
      %695 = vrot.lane.b32.xlu0 %v627, 12
      %v696 = vpop.permute.xlu0 %695
      %697 = vrot.lane.b32.xlu0 %v628, 12
      %v698 = vpop.permute.xlu0 %697
      %699 = vrot.lane.b32.xlu0 %v629, 12
      %v700 = vpop.permute.xlu0 %699
      %701 = vrot.lane.b32.xlu0 %v630, 12
      %v702 = vpop.permute.xlu0 %701
      %703 = vrot.lane.b32.xlu0 %v631, 12
      %v704 = vpop.permute.xlu0 %703
      %705 = vrot.lane.b32.xlu0 %v632, 12
      %v706 = vpop.permute.xlu0 %705
      %707 = vrot.lane.b32.xlu0 %v633, 12
      %v708 = vpop.permute.xlu0 %707
      %709 = vrot.lane.b32.xlu0 %v634, 12
      %v710 = vpop.permute.xlu0 %709
      %711 = vrot.lane.b32.xlu0 %v635, 12
      %v712 = vpop.permute.xlu0 %711
      %713 = vrot.lane.b32.xlu0 %v636, 12
      %v714 = vpop.permute.xlu0 %713
      %715 = vrot.lane.b32.xlu0 %v637, 12
      %v716 = vpop.permute.xlu0 %715
      %717 = vrot.lane.b32.xlu0 %v638, 12
      %v718 = vpop.permute.xlu0 %717
      %719 = vrot.lane.b32.xlu0 %v639, 12
      %v720 = vpop.permute.xlu0 %719
      %721 = vrot.lane.b32.xlu0 %v640, 12
      %v722 = vpop.permute.xlu0 %721
      %723 = vrot.lane.b32.xlu0 %v641, 12
      %v724 = vpop.permute.xlu0 %723
      %725 = vrot.lane.b32.xlu0 %v642, 12
      %v726 = vpop.permute.xlu0 %725
      %727 = vrot.lane.b32.xlu0 %v643, 12
      %v728 = vpop.permute.xlu0 %727
      %729 = vrot.lane.b32.xlu0 %v644, 12
      %v730 = vpop.permute.xlu0 %729
      %731 = vrot.lane.b32.xlu0 %v645, 12
      %v732 = vpop.permute.xlu0 %731
      %733 = vrot.lane.b32.xlu0 %v646, 12
      %v734 = vpop.permute.xlu0 %733
      %735 = vrot.lane.b32.xlu0 %v647, 12
      %v736 = vpop.permute.xlu0 %735
      %737 = vrot.lane.b32.xlu0 %v648, 12
      %v738 = vpop.permute.xlu0 %737
      %739 = vrot.lane.b32.xlu0 %v649, 12
      %v740 = vpop.permute.xlu0 %739
      %741 = vrot.lane.b32.xlu0 %v650, 12
      %v742 = vpop.permute.xlu0 %741
      %743 = vrot.lane.b32.xlu0 %v651, 12
      %v744 = vpop.permute.xlu0 %743
      %745 = vrot.lane.b32.xlu0 %v652, 12
      %v746 = vpop.permute.xlu0 %745
      %747 = vrot.lane.b32.xlu0 %v653, 12
      %v748 = vpop.permute.xlu0 %747
      %749 = vrot.lane.b32.xlu0 %v654, 12
      %v750 = vpop.permute.xlu0 %749
      %vm783 = vcmask 130144
      %784 = vst.msk [vmem:[#allocation2] sm:$0xff] %vm783, %v688
      %785 = vst.msk [vmem:[#allocation2 + $0x8] sm:$0xff] %vm783, %v690
      %786 = vst.msk [vmem:[#allocation2 + $0x10] sm:$0xff] %vm783, %v692
      %787 = vst.msk [vmem:[#allocation2 + $0x18] sm:$0xff] %vm783, %v694
      %788 = vst.msk [vmem:[#allocation2 + $0x20] sm:$0xff] %vm783, %v696
      %789 = vst.msk [vmem:[#allocation2 + $0x28] sm:$0xff] %vm783, %v698
      %790 = vst.msk [vmem:[#allocation2 + $0x30] sm:$0xff] %vm783, %v700
      %791 = vst.msk [vmem:[#allocation2 + $0x38] sm:$0xff] %vm783, %v702
      %792 = vst.msk [vmem:[#allocation2 + $0x40] sm:$0xff] %vm783, %v704
      %793 = vst.msk [vmem:[#allocation2 + $0x48] sm:$0xff] %vm783, %v706
      %794 = vst.msk [vmem:[#allocation2 + $0x50] sm:$0xff] %vm783, %v708
      %795 = vst.msk [vmem:[#allocation2 + $0x58] sm:$0xff] %vm783, %v710
      %796 = vst.msk [vmem:[#allocation2 + $0x60] sm:$0xff] %vm783, %v712
      %797 = vst.msk [vmem:[#allocation2 + $0x68] sm:$0xff] %vm783, %v714
      %798 = vst.msk [vmem:[#allocation2 + $0x70] sm:$0xff] %vm783, %v716
      %799 = vst.msk [vmem:[#allocation2 + $0x78] sm:$0xff] %vm783, %v718
      %800 = vst.msk [vmem:[#allocation2 + $0x80] sm:$0xff] %vm783, %v720
      %801 = vst.msk [vmem:[#allocation2 + $0x88] sm:$0xff] %vm783, %v722
      %802 = vst.msk [vmem:[#allocation2 + $0x90] sm:$0xff] %vm783, %v724
      %803 = vst.msk [vmem:[#allocation2 + $0x98] sm:$0xff] %vm783, %v726
      %804 = vst.msk [vmem:[#allocation2 + $0xa0] sm:$0xff] %vm783, %v728
      %805 = vst.msk [vmem:[#allocation2 + $0xa8] sm:$0xff] %vm783, %v730
      %806 = vst.msk [vmem:[#allocation2 + $0xb0] sm:$0xff] %vm783, %v732
      %807 = vst.msk [vmem:[#allocation2 + $0xb8] sm:$0xff] %vm783, %v734
      %808 = vst.msk [vmem:[#allocation2 + $0xc0] sm:$0xff] %vm783, %v736
      %809 = vst.msk [vmem:[#allocation2 + $0xc8] sm:$0xff] %vm783, %v738
      %810 = vst.msk [vmem:[#allocation2 + $0xd0] sm:$0xff] %vm783, %v740
      %811 = vst.msk [vmem:[#allocation2 + $0xd8] sm:$0xff] %vm783, %v742
      %812 = vst.msk [vmem:[#allocation2 + $0xe0] sm:$0xff] %vm783, %v744
      %813 = vst.msk [vmem:[#allocation2 + $0xe8] sm:$0xff] %vm783, %v746
      %814 = vst.msk [vmem:[#allocation2 + $0xf0] sm:$0xff] %vm783, %v748
      %815 = vst.msk [vmem:[#allocation2 + $0xf8] sm:$0xff] %vm783, %v750
      %v816 = vld [vmem:[%s622 + $0x1] sm:$0xff]
      %v817 = vld [vmem:[%s622 + $0x9] sm:$0xff]
      %v818 = vld [vmem:[%s622 + $0x19] sm:$0xff]
      %v819 = vld [vmem:[%s622 + $0x21] sm:$0xff]
      %v820 = vld [vmem:[%s622 + $0x31] sm:$0xff]
      %v821 = vld [vmem:[%s622 + $0x39] sm:$0xff]
      %v822 = vld [vmem:[%s622 + $0x49] sm:$0xff]
      %v823 = vld [vmem:[%s622 + $0x51] sm:$0xff]
      %v824 = vld [vmem:[%s622 + $0x61] sm:$0xff]
      %v825 = vld [vmem:[%s622 + $0x69] sm:$0xff]
      %v826 = vld [vmem:[%s622 + $0x79] sm:$0xff]
      %v827 = vld [vmem:[%s622 + $0x81] sm:$0xff]
      %v828 = vld [vmem:[%s622 + $0x91] sm:$0xff]
      %v829 = vld [vmem:[%s622 + $0x99] sm:$0xff]
      %v830 = vld [vmem:[%s622 + $0xa9] sm:$0xff]
      %v831 = vld [vmem:[%s622 + $0xb1] sm:$0xff]
      %v832 = vld [vmem:[%s622 + $0xc1] sm:$0xff]
      %v833 = vld [vmem:[%s622 + $0xc9] sm:$0xff]
      %v834 = vld [vmem:[%s622 + $0xd9] sm:$0xff]
      %v835 = vld [vmem:[%s622 + $0xe1] sm:$0xff]
      %v836 = vld [vmem:[%s622 + $0xf1] sm:$0xff]
      %v837 = vld [vmem:[%s622 + $0xf9] sm:$0xff]
      %v838 = vld [vmem:[%s622 + $0x109] sm:$0xff]
      %v839 = vld [vmem:[%s622 + $0x111] sm:$0xff]
      %v840 = vld [vmem:[%s622 + $0x121] sm:$0xff]
      %v841 = vld [vmem:[%s622 + $0x129] sm:$0xff]
      %v842 = vld [vmem:[%s622 + $0x139] sm:$0xff]
      %v843 = vld [vmem:[%s622 + $0x141] sm:$0xff]
      %v844 = vld [vmem:[%s622 + $0x151] sm:$0xff]
      %v845 = vld [vmem:[%s622 + $0x159] sm:$0xff]
      %v846 = vld [vmem:[%s622 + $0x169] sm:$0xff]
      %v847 = vld [vmem:[%s622 + $0x171] sm:$0xff]
      %880 = vrot.lane.b32.xlu0 %v816, 16
      %v881 = vpop.permute.xlu0 %880
      %882 = vrot.lane.b32.xlu0 %v817, 16
      %v883 = vpop.permute.xlu0 %882
      %884 = vrot.lane.b32.xlu0 %v818, 16
      %v885 = vpop.permute.xlu0 %884
      %886 = vrot.lane.b32.xlu0 %v819, 16
      %v887 = vpop.permute.xlu0 %886
      %888 = vrot.lane.b32.xlu0 %v820, 16
      %v889 = vpop.permute.xlu0 %888
      %890 = vrot.lane.b32.xlu0 %v821, 16
      %v891 = vpop.permute.xlu0 %890
      %892 = vrot.lane.b32.xlu0 %v822, 16
      %v893 = vpop.permute.xlu0 %892
      %894 = vrot.lane.b32.xlu0 %v823, 16
      %v895 = vpop.permute.xlu0 %894
      %896 = vrot.lane.b32.xlu0 %v824, 16
      %v897 = vpop.permute.xlu0 %896
      %898 = vrot.lane.b32.xlu0 %v825, 16
      %v899 = vpop.permute.xlu0 %898
      %900 = vrot.lane.b32.xlu0 %v826, 16
      %v901 = vpop.permute.xlu0 %900
      %902 = vrot.lane.b32.xlu0 %v827, 16
      %v903 = vpop.permute.xlu0 %902
      %904 = vrot.lane.b32.xlu0 %v828, 16
      %v905 = vpop.permute.xlu0 %904
      %906 = vrot.lane.b32.xlu0 %v829, 16
      %v907 = vpop.permute.xlu0 %906
      %908 = vrot.lane.b32.xlu0 %v830, 16
      %v909 = vpop.permute.xlu0 %908
      %910 = vrot.lane.b32.xlu0 %v831, 16
      %v911 = vpop.permute.xlu0 %910
      %912 = vrot.lane.b32.xlu0 %v832, 16
      %v913 = vpop.permute.xlu0 %912
      %914 = vrot.lane.b32.xlu0 %v833, 16
      %v915 = vpop.permute.xlu0 %914
      %916 = vrot.lane.b32.xlu0 %v834, 16
      %v917 = vpop.permute.xlu0 %916
      %918 = vrot.lane.b32.xlu0 %v835, 16
      %v919 = vpop.permute.xlu0 %918
      %920 = vrot.lane.b32.xlu0 %v836, 16
      %v921 = vpop.permute.xlu0 %920
      %922 = vrot.lane.b32.xlu0 %v837, 16
      %v923 = vpop.permute.xlu0 %922
      %924 = vrot.lane.b32.xlu0 %v838, 16
      %v925 = vpop.permute.xlu0 %924
      %926 = vrot.lane.b32.xlu0 %v839, 16
      %v927 = vpop.permute.xlu0 %926
      %928 = vrot.lane.b32.xlu0 %v840, 16
      %v929 = vpop.permute.xlu0 %928
      %930 = vrot.lane.b32.xlu0 %v841, 16
      %v931 = vpop.permute.xlu0 %930
      %932 = vrot.lane.b32.xlu0 %v842, 16
      %v933 = vpop.permute.xlu0 %932
      %934 = vrot.lane.b32.xlu0 %v843, 16
      %v935 = vpop.permute.xlu0 %934
      %936 = vrot.lane.b32.xlu0 %v844, 16
      %v937 = vpop.permute.xlu0 %936
      %938 = vrot.lane.b32.xlu0 %v845, 16
      %v939 = vpop.permute.xlu0 %938
      %940 = vrot.lane.b32.xlu0 %v846, 16
      %v941 = vpop.permute.xlu0 %940
      %942 = vrot.lane.b32.xlu0 %v847, 16
      %v943 = vpop.permute.xlu0 %942
      %vm976 = vcmask 162944
      %977 = vst.msk [vmem:[#allocation2] sm:$0xff] %vm976, %v881
      %978 = vst.msk [vmem:[#allocation2 + $0x8] sm:$0xff] %vm976, %v883
      %979 = vst.msk [vmem:[#allocation2 + $0x10] sm:$0xff] %vm976, %v885
      %980 = vst.msk [vmem:[#allocation2 + $0x18] sm:$0xff] %vm976, %v887
      %981 = vst.msk [vmem:[#allocation2 + $0x20] sm:$0xff] %vm976, %v889
      %982 = vst.msk [vmem:[#allocation2 + $0x28] sm:$0xff] %vm976, %v891
      %983 = vst.msk [vmem:[#allocation2 + $0x30] sm:$0xff] %vm976, %v893
      %984 = vst.msk [vmem:[#allocation2 + $0x38] sm:$0xff] %vm976, %v895
      %985 = vst.msk [vmem:[#allocation2 + $0x40] sm:$0xff] %vm976, %v897
      %986 = vst.msk [vmem:[#allocation2 + $0x48] sm:$0xff] %vm976, %v899
      %987 = vst.msk [vmem:[#allocation2 + $0x50] sm:$0xff] %vm976, %v901
      %988 = vst.msk [vmem:[#allocation2 + $0x58] sm:$0xff] %vm976, %v903
      %989 = vst.msk [vmem:[#allocation2 + $0x60] sm:$0xff] %vm976, %v905
      %990 = vst.msk [vmem:[#allocation2 + $0x68] sm:$0xff] %vm976, %v907
      %991 = vst.msk [vmem:[#allocation2 + $0x70] sm:$0xff] %vm976, %v909
      %992 = vst.msk [vmem:[#allocation2 + $0x78] sm:$0xff] %vm976, %v911
      %993 = vst.msk [vmem:[#allocation2 + $0x80] sm:$0xff] %vm976, %v913
      %994 = vst.msk [vmem:[#allocation2 + $0x88] sm:$0xff] %vm976, %v915
      %995 = vst.msk [vmem:[#allocation2 + $0x90] sm:$0xff] %vm976, %v917
      %996 = vst.msk [vmem:[#allocation2 + $0x98] sm:$0xff] %vm976, %v919
      %997 = vst.msk [vmem:[#allocation2 + $0xa0] sm:$0xff] %vm976, %v921
      %998 = vst.msk [vmem:[#allocation2 + $0xa8] sm:$0xff] %vm976, %v923
      %999 = vst.msk [vmem:[#allocation2 + $0xb0] sm:$0xff] %vm976, %v925
      %1000 = vst.msk [vmem:[#allocation2 + $0xb8] sm:$0xff] %vm976, %v927
      %1001 = vst.msk [vmem:[#allocation2 + $0xc0] sm:$0xff] %vm976, %v929
      %1002 = vst.msk [vmem:[#allocation2 + $0xc8] sm:$0xff] %vm976, %v931
      %1003 = vst.msk [vmem:[#allocation2 + $0xd0] sm:$0xff] %vm976, %v933
      %1004 = vst.msk [vmem:[#allocation2 + $0xd8] sm:$0xff] %vm976, %v935
      %1005 = vst.msk [vmem:[#allocation2 + $0xe0] sm:$0xff] %vm976, %v937
      %1006 = vst.msk [vmem:[#allocation2 + $0xe8] sm:$0xff] %vm976, %v939
      %1007 = vst.msk [vmem:[#allocation2 + $0xf0] sm:$0xff] %vm976, %v941
      %1008 = vst.msk [vmem:[#allocation2 + $0xf8] sm:$0xff] %vm976, %v943
      %v1009 = vld [vmem:[%s622 + $0x2] sm:$0xff]
      %v1010 = vld [vmem:[%s622 + $0xa] sm:$0xff]
      %v1011 = vld [vmem:[%s622 + $0x1a] sm:$0xff]
      %v1012 = vld [vmem:[%s622 + $0x22] sm:$0xff]
      %v1013 = vld [vmem:[%s622 + $0x32] sm:$0xff]
      %v1014 = vld [vmem:[%s622 + $0x3a] sm:$0xff]
      %v1015 = vld [vmem:[%s622 + $0x4a] sm:$0xff]
      %v1016 = vld [vmem:[%s622 + $0x52] sm:$0xff]
      %v1017 = vld [vmem:[%s622 + $0x62] sm:$0xff]
      %v1018 = vld [vmem:[%s622 + $0x6a] sm:$0xff]
      %v1019 = vld [vmem:[%s622 + $0x7a] sm:$0xff]
      %v1020 = vld [vmem:[%s622 + $0x82] sm:$0xff]
      %v1021 = vld [vmem:[%s622 + $0x92] sm:$0xff]
      %v1022 = vld [vmem:[%s622 + $0x9a] sm:$0xff]
      %v1023 = vld [vmem:[%s622 + $0xaa] sm:$0xff]
      %v1024 = vld [vmem:[%s622 + $0xb2] sm:$0xff]
      %v1025 = vld [vmem:[%s622 + $0xc2] sm:$0xff]
      %v1026 = vld [vmem:[%s622 + $0xca] sm:$0xff]
      %v1027 = vld [vmem:[%s622 + $0xda] sm:$0xff]
      %v1028 = vld [vmem:[%s622 + $0xe2] sm:$0xff]
      %v1029 = vld [vmem:[%s622 + $0xf2] sm:$0xff]
      %v1030 = vld [vmem:[%s622 + $0xfa] sm:$0xff]
      %v1031 = vld [vmem:[%s622 + $0x10a] sm:$0xff]
      %v1032 = vld [vmem:[%s622 + $0x112] sm:$0xff]
      %v1033 = vld [vmem:[%s622 + $0x122] sm:$0xff]
      %v1034 = vld [vmem:[%s622 + $0x12a] sm:$0xff]
      %v1035 = vld [vmem:[%s622 + $0x13a] sm:$0xff]
      %v1036 = vld [vmem:[%s622 + $0x142] sm:$0xff]
      %v1037 = vld [vmem:[%s622 + $0x152] sm:$0xff]
      %v1038 = vld [vmem:[%s622 + $0x15a] sm:$0xff]
      %v1039 = vld [vmem:[%s622 + $0x16a] sm:$0xff]
      %v1040 = vld [vmem:[%s622 + $0x172] sm:$0xff]
      %1073 = vrot.lane.b32.xlu0 %v1009, 20
      %v1074 = vpop.permute.xlu0 %1073
      %1075 = vrot.lane.b32.xlu0 %v1010, 20
      %v1076 = vpop.permute.xlu0 %1075
      %1077 = vrot.lane.b32.xlu0 %v1011, 20
      %v1078 = vpop.permute.xlu0 %1077
      %1079 = vrot.lane.b32.xlu0 %v1012, 20
      %v1080 = vpop.permute.xlu0 %1079
      %1081 = vrot.lane.b32.xlu0 %v1013, 20
      %v1082 = vpop.permute.xlu0 %1081
      %1083 = vrot.lane.b32.xlu0 %v1014, 20
      %v1084 = vpop.permute.xlu0 %1083
      %1085 = vrot.lane.b32.xlu0 %v1015, 20
      %v1086 = vpop.permute.xlu0 %1085
      %1087 = vrot.lane.b32.xlu0 %v1016, 20
      %v1088 = vpop.permute.xlu0 %1087
      %1089 = vrot.lane.b32.xlu0 %v1017, 20
      %v1090 = vpop.permute.xlu0 %1089
      %1091 = vrot.lane.b32.xlu0 %v1018, 20
      %v1092 = vpop.permute.xlu0 %1091
      %1093 = vrot.lane.b32.xlu0 %v1019, 20
      %v1094 = vpop.permute.xlu0 %1093
      %1095 = vrot.lane.b32.xlu0 %v1020, 20
      %v1096 = vpop.permute.xlu0 %1095
      %1097 = vrot.lane.b32.xlu0 %v1021, 20
      %v1098 = vpop.permute.xlu0 %1097
      %1099 = vrot.lane.b32.xlu0 %v1022, 20
      %v1100 = vpop.permute.xlu0 %1099
      %1101 = vrot.lane.b32.xlu0 %v1023, 20
      %v1102 = vpop.permute.xlu0 %1101
      %1103 = vrot.lane.b32.xlu0 %v1024, 20
      %v1104 = vpop.permute.xlu0 %1103
      %1105 = vrot.lane.b32.xlu0 %v1025, 20
      %v1106 = vpop.permute.xlu0 %1105
      %1107 = vrot.lane.b32.xlu0 %v1026, 20
      %v1108 = vpop.permute.xlu0 %1107
      %1109 = vrot.lane.b32.xlu0 %v1027, 20
      %v1110 = vpop.permute.xlu0 %1109
      %1111 = vrot.lane.b32.xlu0 %v1028, 20
      %v1112 = vpop.permute.xlu0 %1111
      %1113 = vrot.lane.b32.xlu0 %v1029, 20
      %v1114 = vpop.permute.xlu0 %1113
      %1115 = vrot.lane.b32.xlu0 %v1030, 20
      %v1116 = vpop.permute.xlu0 %1115
      %1117 = vrot.lane.b32.xlu0 %v1031, 20
      %v1118 = vpop.permute.xlu0 %1117
      %1119 = vrot.lane.b32.xlu0 %v1032, 20
      %v1120 = vpop.permute.xlu0 %1119
      %1121 = vrot.lane.b32.xlu0 %v1033, 20
      %v1122 = vpop.permute.xlu0 %1121
      %1123 = vrot.lane.b32.xlu0 %v1034, 20
      %v1124 = vpop.permute.xlu0 %1123
      %1125 = vrot.lane.b32.xlu0 %v1035, 20
      %v1126 = vpop.permute.xlu0 %1125
      %1127 = vrot.lane.b32.xlu0 %v1036, 20
      %v1128 = vpop.permute.xlu0 %1127
      %1129 = vrot.lane.b32.xlu0 %v1037, 20
      %v1130 = vpop.permute.xlu0 %1129
      %1131 = vrot.lane.b32.xlu0 %v1038, 20
      %v1132 = vpop.permute.xlu0 %1131
      %1133 = vrot.lane.b32.xlu0 %v1039, 20
      %v1134 = vpop.permute.xlu0 %1133
      %1135 = vrot.lane.b32.xlu0 %v1040, 20
      %v1136 = vpop.permute.xlu0 %1135
      %vm1169 = vcmask 195744
      %1170 = vst.msk [vmem:[#allocation2] sm:$0xff] %vm1169, %v1074
      %1171 = vst.msk [vmem:[#allocation2 + $0x8] sm:$0xff] %vm1169, %v1076
      %1172 = vst.msk [vmem:[#allocation2 + $0x10] sm:$0xff] %vm1169, %v1078
      %1173 = vst.msk [vmem:[#allocation2 + $0x18] sm:$0xff] %vm1169, %v1080
      %1174 = vst.msk [vmem:[#allocation2 + $0x20] sm:$0xff] %vm1169, %v1082
      %1175 = vst.msk [vmem:[#allocation2 + $0x28] sm:$0xff] %vm1169, %v1084
      %1176 = vst.msk [vmem:[#allocation2 + $0x30] sm:$0xff] %vm1169, %v1086
      %1177 = vst.msk [vmem:[#allocation2 + $0x38] sm:$0xff] %vm1169, %v1088
      %1178 = vst.msk [vmem:[#allocation2 + $0x40] sm:$0xff] %vm1169, %v1090
      %1179 = vst.msk [vmem:[#allocation2 + $0x48] sm:$0xff] %vm1169, %v1092
      %1180 = vst.msk [vmem:[#allocation2 + $0x50] sm:$0xff] %vm1169, %v1094
      %1181 = vst.msk [vmem:[#allocation2 + $0x58] sm:$0xff] %vm1169, %v1096
      %1182 = vst.msk [vmem:[#allocation2 + $0x60] sm:$0xff] %vm1169, %v1098
      %1183 = vst.msk [vmem:[#allocation2 + $0x68] sm:$0xff] %vm1169, %v1100
      %1184 = vst.msk [vmem:[#allocation2 + $0x70] sm:$0xff] %vm1169, %v1102
      %1185 = vst.msk [vmem:[#allocation2 + $0x78] sm:$0xff] %vm1169, %v1104
      %1186 = vst.msk [vmem:[#allocation2 + $0x80] sm:$0xff] %vm1169, %v1106
      %1187 = vst.msk [vmem:[#allocation2 + $0x88] sm:$0xff] %vm1169, %v1108
      %1188 = vst.msk [vmem:[#allocation2 + $0x90] sm:$0xff] %vm1169, %v1110
      %1189 = vst.msk [vmem:[#allocation2 + $0x98] sm:$0xff] %vm1169, %v1112
      %1190 = vst.msk [vmem:[#allocation2 + $0xa0] sm:$0xff] %vm1169, %v1114
      %1191 = vst.msk [vmem:[#allocation2 + $0xa8] sm:$0xff] %vm1169, %v1116
      %1192 = vst.msk [vmem:[#allocation2 + $0xb0] sm:$0xff] %vm1169, %v1118
      %1193 = vst.msk [vmem:[#allocation2 + $0xb8] sm:$0xff] %vm1169, %v1120
      %1194 = vst.msk [vmem:[#allocation2 + $0xc0] sm:$0xff] %vm1169, %v1122
      %1195 = vst.msk [vmem:[#allocation2 + $0xc8] sm:$0xff] %vm1169, %v1124
      %1196 = vst.msk [vmem:[#allocation2 + $0xd0] sm:$0xff] %vm1169, %v1126
      %1197 = vst.msk [vmem:[#allocation2 + $0xd8] sm:$0xff] %vm1169, %v1128
      %1198 = vst.msk [vmem:[#allocation2 + $0xe0] sm:$0xff] %vm1169, %v1130
      %1199 = vst.msk [vmem:[#allocation2 + $0xe8] sm:$0xff] %vm1169, %v1132
      %1200 = vst.msk [vmem:[#allocation2 + $0xf0] sm:$0xff] %vm1169, %v1134
      %1201 = vst.msk [vmem:[#allocation2 + $0xf8] sm:$0xff] %vm1169, %v1136
      %s1202 = scalar_lea.vmem %s165, 48
      %v1203 = vld [vmem:[%s1202] sm:$0xff]
      %v1204 = vld [vmem:[%s1202 + $0x8] sm:$0xff]
      %v1205 = vld [vmem:[%s1202 + $0x18] sm:$0xff]
      %v1206 = vld [vmem:[%s1202 + $0x20] sm:$0xff]
      %v1207 = vld [vmem:[%s1202 + $0x30] sm:$0xff]
      %v1208 = vld [vmem:[%s1202 + $0x38] sm:$0xff]
      %v1209 = vld [vmem:[%s1202 + $0x48] sm:$0xff]
      %v1210 = vld [vmem:[%s1202 + $0x50] sm:$0xff]
      %v1211 = vld [vmem:[%s1202 + $0x60] sm:$0xff]
      %v1212 = vld [vmem:[%s1202 + $0x68] sm:$0xff]
      %v1213 = vld [vmem:[%s1202 + $0x78] sm:$0xff]
      %v1214 = vld [vmem:[%s1202 + $0x80] sm:$0xff]
      %v1215 = vld [vmem:[%s1202 + $0x90] sm:$0xff]
      %v1216 = vld [vmem:[%s1202 + $0x98] sm:$0xff]
      %v1217 = vld [vmem:[%s1202 + $0xa8] sm:$0xff]
      %v1218 = vld [vmem:[%s1202 + $0xb0] sm:$0xff]
      %v1219 = vld [vmem:[%s1202 + $0xc0] sm:$0xff]
      %v1220 = vld [vmem:[%s1202 + $0xc8] sm:$0xff]
      %v1221 = vld [vmem:[%s1202 + $0xd8] sm:$0xff]
      %v1222 = vld [vmem:[%s1202 + $0xe0] sm:$0xff]
      %v1223 = vld [vmem:[%s1202 + $0xf0] sm:$0xff]
      %v1224 = vld [vmem:[%s1202 + $0xf8] sm:$0xff]
      %v1225 = vld [vmem:[%s1202 + $0x108] sm:$0xff]
      %v1226 = vld [vmem:[%s1202 + $0x110] sm:$0xff]
      %v1227 = vld [vmem:[%s1202 + $0x120] sm:$0xff]
      %v1228 = vld [vmem:[%s1202 + $0x128] sm:$0xff]
      %v1229 = vld [vmem:[%s1202 + $0x138] sm:$0xff]
      %v1230 = vld [vmem:[%s1202 + $0x140] sm:$0xff]
      %v1231 = vld [vmem:[%s1202 + $0x150] sm:$0xff]
      %v1232 = vld [vmem:[%s1202 + $0x158] sm:$0xff]
      %v1233 = vld [vmem:[%s1202 + $0x168] sm:$0xff]
      %v1234 = vld [vmem:[%s1202 + $0x170] sm:$0xff]
      %1267 = vrot.lane.b32.xlu0 %v1203, 24
      %v1268 = vpop.permute.xlu0 %1267
      %1269 = vrot.lane.b32.xlu0 %v1204, 24
      %v1270 = vpop.permute.xlu0 %1269
      %1271 = vrot.lane.b32.xlu0 %v1205, 24
      %v1272 = vpop.permute.xlu0 %1271
      %1273 = vrot.lane.b32.xlu0 %v1206, 24
      %v1274 = vpop.permute.xlu0 %1273
      %1275 = vrot.lane.b32.xlu0 %v1207, 24
      %v1276 = vpop.permute.xlu0 %1275
      %1277 = vrot.lane.b32.xlu0 %v1208, 24
      %v1278 = vpop.permute.xlu0 %1277
      %1279 = vrot.lane.b32.xlu0 %v1209, 24
      %v1280 = vpop.permute.xlu0 %1279
      %1281 = vrot.lane.b32.xlu0 %v1210, 24
      %v1282 = vpop.permute.xlu0 %1281
      %1283 = vrot.lane.b32.xlu0 %v1211, 24
      %v1284 = vpop.permute.xlu0 %1283
      %1285 = vrot.lane.b32.xlu0 %v1212, 24
      %v1286 = vpop.permute.xlu0 %1285
      %1287 = vrot.lane.b32.xlu0 %v1213, 24
      %v1288 = vpop.permute.xlu0 %1287
      %1289 = vrot.lane.b32.xlu0 %v1214, 24
      %v1290 = vpop.permute.xlu0 %1289
      %1291 = vrot.lane.b32.xlu0 %v1215, 24
      %v1292 = vpop.permute.xlu0 %1291
      %1293 = vrot.lane.b32.xlu0 %v1216, 24
      %v1294 = vpop.permute.xlu0 %1293
      %1295 = vrot.lane.b32.xlu0 %v1217, 24
      %v1296 = vpop.permute.xlu0 %1295
      %1297 = vrot.lane.b32.xlu0 %v1218, 24
      %v1298 = vpop.permute.xlu0 %1297
      %1299 = vrot.lane.b32.xlu0 %v1219, 24
      %v1300 = vpop.permute.xlu0 %1299
      %1301 = vrot.lane.b32.xlu0 %v1220, 24
      %v1302 = vpop.permute.xlu0 %1301
      %1303 = vrot.lane.b32.xlu0 %v1221, 24
      %v1304 = vpop.permute.xlu0 %1303
      %1305 = vrot.lane.b32.xlu0 %v1222, 24
      %v1306 = vpop.permute.xlu0 %1305
      %1307 = vrot.lane.b32.xlu0 %v1223, 24
      %v1308 = vpop.permute.xlu0 %1307
      %1309 = vrot.lane.b32.xlu0 %v1224, 24
      %v1310 = vpop.permute.xlu0 %1309
      %1311 = vrot.lane.b32.xlu0 %v1225, 24
      %v1312 = vpop.permute.xlu0 %1311
      %1313 = vrot.lane.b32.xlu0 %v1226, 24
      %v1314 = vpop.permute.xlu0 %1313
      %1315 = vrot.lane.b32.xlu0 %v1227, 24
      %v1316 = vpop.permute.xlu0 %1315
      %1317 = vrot.lane.b32.xlu0 %v1228, 24
      %v1318 = vpop.permute.xlu0 %1317
      %1319 = vrot.lane.b32.xlu0 %v1229, 24
      %v1320 = vpop.permute.xlu0 %1319
      %1321 = vrot.lane.b32.xlu0 %v1230, 24
      %v1322 = vpop.permute.xlu0 %1321
      %1323 = vrot.lane.b32.xlu0 %v1231, 24
      %v1324 = vpop.permute.xlu0 %1323
      %1325 = vrot.lane.b32.xlu0 %v1232, 24
      %v1326 = vpop.permute.xlu0 %1325
      %1327 = vrot.lane.b32.xlu0 %v1233, 24
      %v1328 = vpop.permute.xlu0 %1327
      %1329 = vrot.lane.b32.xlu0 %v1234, 24
      %v1330 = vpop.permute.xlu0 %1329
      %vm1363 = vcmask 228544
      %1364 = vst.msk [vmem:[#allocation2] sm:$0xff] %vm1363, %v1268
      %1365 = vst.msk [vmem:[#allocation2 + $0x8] sm:$0xff] %vm1363, %v1270
      %1366 = vst.msk [vmem:[#allocation2 + $0x10] sm:$0xff] %vm1363, %v1272
      %1367 = vst.msk [vmem:[#allocation2 + $0x18] sm:$0xff] %vm1363, %v1274
      %1368 = vst.msk [vmem:[#allocation2 + $0x20] sm:$0xff] %vm1363, %v1276
      %1369 = vst.msk [vmem:[#allocation2 + $0x28] sm:$0xff] %vm1363, %v1278
      %1370 = vst.msk [vmem:[#allocation2 + $0x30] sm:$0xff] %vm1363, %v1280
      %1371 = vst.msk [vmem:[#allocation2 + $0x38] sm:$0xff] %vm1363, %v1282
      %1372 = vst.msk [vmem:[#allocation2 + $0x40] sm:$0xff] %vm1363, %v1284
      %1373 = vst.msk [vmem:[#allocation2 + $0x48] sm:$0xff] %vm1363, %v1286
      %1374 = vst.msk [vmem:[#allocation2 + $0x50] sm:$0xff] %vm1363, %v1288
      %1375 = vst.msk [vmem:[#allocation2 + $0x58] sm:$0xff] %vm1363, %v1290
      %1376 = vst.msk [vmem:[#allocation2 + $0x60] sm:$0xff] %vm1363, %v1292
      %1377 = vst.msk [vmem:[#allocation2 + $0x68] sm:$0xff] %vm1363, %v1294
      %1378 = vst.msk [vmem:[#allocation2 + $0x70] sm:$0xff] %vm1363, %v1296
      %1379 = vst.msk [vmem:[#allocation2 + $0x78] sm:$0xff] %vm1363, %v1298
      %1380 = vst.msk [vmem:[#allocation2 + $0x80] sm:$0xff] %vm1363, %v1300
      %1381 = vst.msk [vmem:[#allocation2 + $0x88] sm:$0xff] %vm1363, %v1302
      %1382 = vst.msk [vmem:[#allocation2 + $0x90] sm:$0xff] %vm1363, %v1304
      %1383 = vst.msk [vmem:[#allocation2 + $0x98] sm:$0xff] %vm1363, %v1306
      %1384 = vst.msk [vmem:[#allocation2 + $0xa0] sm:$0xff] %vm1363, %v1308
      %1385 = vst.msk [vmem:[#allocation2 + $0xa8] sm:$0xff] %vm1363, %v1310
      %1386 = vst.msk [vmem:[#allocation2 + $0xb0] sm:$0xff] %vm1363, %v1312
      %1387 = vst.msk [vmem:[#allocation2 + $0xb8] sm:$0xff] %vm1363, %v1314
      %1388 = vst.msk [vmem:[#allocation2 + $0xc0] sm:$0xff] %vm1363, %v1316
      %1389 = vst.msk [vmem:[#allocation2 + $0xc8] sm:$0xff] %vm1363, %v1318
      %1390 = vst.msk [vmem:[#allocation2 + $0xd0] sm:$0xff] %vm1363, %v1320
      %1391 = vst.msk [vmem:[#allocation2 + $0xd8] sm:$0xff] %vm1363, %v1322
      %1392 = vst.msk [vmem:[#allocation2 + $0xe0] sm:$0xff] %vm1363, %v1324
      %1393 = vst.msk [vmem:[#allocation2 + $0xe8] sm:$0xff] %vm1363, %v1326
      %1394 = vst.msk [vmem:[#allocation2 + $0xf0] sm:$0xff] %vm1363, %v1328
      %1395 = vst.msk [vmem:[#allocation2 + $0xf8] sm:$0xff] %vm1363, %v1330
      %v1396 = vld [vmem:[%s1202 + $0x1] sm:$0xff]
      %v1397 = vld [vmem:[%s1202 + $0x9] sm:$0xff]
      %v1398 = vld [vmem:[%s1202 + $0x19] sm:$0xff]
      %v1399 = vld [vmem:[%s1202 + $0x21] sm:$0xff]
      %v1400 = vld [vmem:[%s1202 + $0x31] sm:$0xff]
      %v1401 = vld [vmem:[%s1202 + $0x39] sm:$0xff]
      %v1402 = vld [vmem:[%s1202 + $0x49] sm:$0xff]
      %v1403 = vld [vmem:[%s1202 + $0x51] sm:$0xff]
      %v1404 = vld [vmem:[%s1202 + $0x61] sm:$0xff]
      %v1405 = vld [vmem:[%s1202 + $0x69] sm:$0xff]
      %v1406 = vld [vmem:[%s1202 + $0x79] sm:$0xff]
      %v1407 = vld [vmem:[%s1202 + $0x81] sm:$0xff]
      %v1408 = vld [vmem:[%s1202 + $0x91] sm:$0xff]
      %v1409 = vld [vmem:[%s1202 + $0x99] sm:$0xff]
      %v1410 = vld [vmem:[%s1202 + $0xa9] sm:$0xff]
      %v1411 = vld [vmem:[%s1202 + $0xb1] sm:$0xff]
      %v1412 = vld [vmem:[%s1202 + $0xc1] sm:$0xff]
      %v1413 = vld [vmem:[%s1202 + $0xc9] sm:$0xff]
      %v1414 = vld [vmem:[%s1202 + $0xd9] sm:$0xff]
      %v1415 = vld [vmem:[%s1202 + $0xe1] sm:$0xff]
      %v1416 = vld [vmem:[%s1202 + $0xf1] sm:$0xff]
      %v1417 = vld [vmem:[%s1202 + $0xf9] sm:$0xff]
      %v1418 = vld [vmem:[%s1202 + $0x109] sm:$0xff]
      %v1419 = vld [vmem:[%s1202 + $0x111] sm:$0xff]
      %v1420 = vld [vmem:[%s1202 + $0x121] sm:$0xff]
      %v1421 = vld [vmem:[%s1202 + $0x129] sm:$0xff]
      %v1422 = vld [vmem:[%s1202 + $0x139] sm:$0xff]
      %v1423 = vld [vmem:[%s1202 + $0x141] sm:$0xff]
      %v1424 = vld [vmem:[%s1202 + $0x151] sm:$0xff]
      %v1425 = vld [vmem:[%s1202 + $0x159] sm:$0xff]
      %v1426 = vld [vmem:[%s1202 + $0x169] sm:$0xff]
      %v1427 = vld [vmem:[%s1202 + $0x171] sm:$0xff]
      %1460 = vrot.lane.b32.xlu0 %v1396, 28
      %v1461 = vpop.permute.xlu0 %1460
      %1462 = vrot.lane.b32.xlu0 %v1397, 28
      %v1463 = vpop.permute.xlu0 %1462
      %1464 = vrot.lane.b32.xlu0 %v1398, 28
      %v1465 = vpop.permute.xlu0 %1464
      %1466 = vrot.lane.b32.xlu0 %v1399, 28
      %v1467 = vpop.permute.xlu0 %1466
      %1468 = vrot.lane.b32.xlu0 %v1400, 28
      %v1469 = vpop.permute.xlu0 %1468
      %1470 = vrot.lane.b32.xlu0 %v1401, 28
      %v1471 = vpop.permute.xlu0 %1470
      %1472 = vrot.lane.b32.xlu0 %v1402, 28
      %v1473 = vpop.permute.xlu0 %1472
      %1474 = vrot.lane.b32.xlu0 %v1403, 28
      %v1475 = vpop.permute.xlu0 %1474
      %1476 = vrot.lane.b32.xlu0 %v1404, 28
      %v1477 = vpop.permute.xlu0 %1476
      %1478 = vrot.lane.b32.xlu0 %v1405, 28
      %v1479 = vpop.permute.xlu0 %1478
      %1480 = vrot.lane.b32.xlu0 %v1406, 28
      %v1481 = vpop.permute.xlu0 %1480
      %1482 = vrot.lane.b32.xlu0 %v1407, 28
      %v1483 = vpop.permute.xlu0 %1482
      %1484 = vrot.lane.b32.xlu0 %v1408, 28
      %v1485 = vpop.permute.xlu0 %1484
      %1486 = vrot.lane.b32.xlu0 %v1409, 28
      %v1487 = vpop.permute.xlu0 %1486
      %1488 = vrot.lane.b32.xlu0 %v1410, 28
      %v1489 = vpop.permute.xlu0 %1488
      %1490 = vrot.lane.b32.xlu0 %v1411, 28
      %v1491 = vpop.permute.xlu0 %1490
      %1492 = vrot.lane.b32.xlu0 %v1412, 28
      %v1493 = vpop.permute.xlu0 %1492
      %1494 = vrot.lane.b32.xlu0 %v1413, 28
      %v1495 = vpop.permute.xlu0 %1494
      %1496 = vrot.lane.b32.xlu0 %v1414, 28
      %v1497 = vpop.permute.xlu0 %1496
      %1498 = vrot.lane.b32.xlu0 %v1415, 28
      %v1499 = vpop.permute.xlu0 %1498
      %1500 = vrot.lane.b32.xlu0 %v1416, 28
      %v1501 = vpop.permute.xlu0 %1500
      %1502 = vrot.lane.b32.xlu0 %v1417, 28
      %v1503 = vpop.permute.xlu0 %1502
      %1504 = vrot.lane.b32.xlu0 %v1418, 28
      %v1505 = vpop.permute.xlu0 %1504
      %1506 = vrot.lane.b32.xlu0 %v1419, 28
      %v1507 = vpop.permute.xlu0 %1506
      %1508 = vrot.lane.b32.xlu0 %v1420, 28
      %v1509 = vpop.permute.xlu0 %1508
      %1510 = vrot.lane.b32.xlu0 %v1421, 28
      %v1511 = vpop.permute.xlu0 %1510
      %1512 = vrot.lane.b32.xlu0 %v1422, 28
      %v1513 = vpop.permute.xlu0 %1512
      %1514 = vrot.lane.b32.xlu0 %v1423, 28
      %v1515 = vpop.permute.xlu0 %1514
      %1516 = vrot.lane.b32.xlu0 %v1424, 28
      %v1517 = vpop.permute.xlu0 %1516
      %1518 = vrot.lane.b32.xlu0 %v1425, 28
      %v1519 = vpop.permute.xlu0 %1518
      %1520 = vrot.lane.b32.xlu0 %v1426, 28
      %v1521 = vpop.permute.xlu0 %1520
      %1522 = vrot.lane.b32.xlu0 %v1427, 28
      %v1523 = vpop.permute.xlu0 %1522
      %vm1556 = vcmask 261344
      %1557 = vst.msk [vmem:[#allocation2] sm:$0xff] %vm1556, %v1461
      %1558 = vst.msk [vmem:[#allocation2 + $0x8] sm:$0xff] %vm1556, %v1463
      %1559 = vst.msk [vmem:[#allocation2 + $0x10] sm:$0xff] %vm1556, %v1465
      %1560 = vst.msk [vmem:[#allocation2 + $0x18] sm:$0xff] %vm1556, %v1467
      %1561 = vst.msk [vmem:[#allocation2 + $0x20] sm:$0xff] %vm1556, %v1469
      %1562 = vst.msk [vmem:[#allocation2 + $0x28] sm:$0xff] %vm1556, %v1471
      %1563 = vst.msk [vmem:[#allocation2 + $0x30] sm:$0xff] %vm1556, %v1473
      %1564 = vst.msk [vmem:[#allocation2 + $0x38] sm:$0xff] %vm1556, %v1475
      %1565 = vst.msk [vmem:[#allocation2 + $0x40] sm:$0xff] %vm1556, %v1477
      %1566 = vst.msk [vmem:[#allocation2 + $0x48] sm:$0xff] %vm1556, %v1479
      %1567 = vst.msk [vmem:[#allocation2 + $0x50] sm:$0xff] %vm1556, %v1481
      %1568 = vst.msk [vmem:[#allocation2 + $0x58] sm:$0xff] %vm1556, %v1483
      %1569 = vst.msk [vmem:[#allocation2 + $0x60] sm:$0xff] %vm1556, %v1485
      %1570 = vst.msk [vmem:[#allocation2 + $0x68] sm:$0xff] %vm1556, %v1487
      %1571 = vst.msk [vmem:[#allocation2 + $0x70] sm:$0xff] %vm1556, %v1489
      %1572 = vst.msk [vmem:[#allocation2 + $0x78] sm:$0xff] %vm1556, %v1491
      %1573 = vst.msk [vmem:[#allocation2 + $0x80] sm:$0xff] %vm1556, %v1493
      %1574 = vst.msk [vmem:[#allocation2 + $0x88] sm:$0xff] %vm1556, %v1495
      %1575 = vst.msk [vmem:[#allocation2 + $0x90] sm:$0xff] %vm1556, %v1497
      %1576 = vst.msk [vmem:[#allocation2 + $0x98] sm:$0xff] %vm1556, %v1499
      %1577 = vst.msk [vmem:[#allocation2 + $0xa0] sm:$0xff] %vm1556, %v1501
      %1578 = vst.msk [vmem:[#allocation2 + $0xa8] sm:$0xff] %vm1556, %v1503
      %1579 = vst.msk [vmem:[#allocation2 + $0xb0] sm:$0xff] %vm1556, %v1505
      %1580 = vst.msk [vmem:[#allocation2 + $0xb8] sm:$0xff] %vm1556, %v1507
      %1581 = vst.msk [vmem:[#allocation2 + $0xc0] sm:$0xff] %vm1556, %v1509
      %1582 = vst.msk [vmem:[#allocation2 + $0xc8] sm:$0xff] %vm1556, %v1511
      %1583 = vst.msk [vmem:[#allocation2 + $0xd0] sm:$0xff] %vm1556, %v1513
      %1584 = vst.msk [vmem:[#allocation2 + $0xd8] sm:$0xff] %vm1556, %v1515
      %1585 = vst.msk [vmem:[#allocation2 + $0xe0] sm:$0xff] %vm1556, %v1517
      %1586 = vst.msk [vmem:[#allocation2 + $0xe8] sm:$0xff] %vm1556, %v1519
      %1587 = vst.msk [vmem:[#allocation2 + $0xf0] sm:$0xff] %vm1556, %v1521
      %1588 = vst.msk [vmem:[#allocation2 + $0xf8] sm:$0xff] %vm1556, %v1523
      %v1589 = vld [vmem:[%s1202 + $0x2] sm:$0xff]
      %v1590 = vld [vmem:[%s1202 + $0xa] sm:$0xff]
      %v1591 = vld [vmem:[%s1202 + $0x1a] sm:$0xff]
      %v1592 = vld [vmem:[%s1202 + $0x22] sm:$0xff]
      %v1593 = vld [vmem:[%s1202 + $0x32] sm:$0xff]
      %v1594 = vld [vmem:[%s1202 + $0x3a] sm:$0xff]
      %v1595 = vld [vmem:[%s1202 + $0x4a] sm:$0xff]
      %v1596 = vld [vmem:[%s1202 + $0x52] sm:$0xff]
      %v1597 = vld [vmem:[%s1202 + $0x62] sm:$0xff]
      %v1598 = vld [vmem:[%s1202 + $0x6a] sm:$0xff]
      %v1599 = vld [vmem:[%s1202 + $0x7a] sm:$0xff]
      %v1600 = vld [vmem:[%s1202 + $0x82] sm:$0xff]
      %v1601 = vld [vmem:[%s1202 + $0x92] sm:$0xff]
      %v1602 = vld [vmem:[%s1202 + $0x9a] sm:$0xff]
      %v1603 = vld [vmem:[%s1202 + $0xaa] sm:$0xff]
      %v1604 = vld [vmem:[%s1202 + $0xb2] sm:$0xff]
      %v1605 = vld [vmem:[%s1202 + $0xc2] sm:$0xff]
      %v1606 = vld [vmem:[%s1202 + $0xca] sm:$0xff]
      %v1607 = vld [vmem:[%s1202 + $0xda] sm:$0xff]
      %v1608 = vld [vmem:[%s1202 + $0xe2] sm:$0xff]
      %v1609 = vld [vmem:[%s1202 + $0xf2] sm:$0xff]
      %v1610 = vld [vmem:[%s1202 + $0xfa] sm:$0xff]
      %v1611 = vld [vmem:[%s1202 + $0x10a] sm:$0xff]
      %v1612 = vld [vmem:[%s1202 + $0x112] sm:$0xff]
      %v1613 = vld [vmem:[%s1202 + $0x122] sm:$0xff]
      %v1614 = vld [vmem:[%s1202 + $0x12a] sm:$0xff]
      %v1615 = vld [vmem:[%s1202 + $0x13a] sm:$0xff]
      %v1616 = vld [vmem:[%s1202 + $0x142] sm:$0xff]
      %v1617 = vld [vmem:[%s1202 + $0x152] sm:$0xff]
      %v1618 = vld [vmem:[%s1202 + $0x15a] sm:$0xff]
      %v1619 = vld [vmem:[%s1202 + $0x16a] sm:$0xff]
      %v1620 = vld [vmem:[%s1202 + $0x172] sm:$0xff]
      %1653 = vrot.lane.b32.xlu0 %v1589, 32
      %v1654 = vpop.permute.xlu0 %1653
      %1655 = vrot.lane.b32.xlu0 %v1590, 32
      %v1656 = vpop.permute.xlu0 %1655
      %1657 = vrot.lane.b32.xlu0 %v1591, 32
      %v1658 = vpop.permute.xlu0 %1657
      %1659 = vrot.lane.b32.xlu0 %v1592, 32
      %v1660 = vpop.permute.xlu0 %1659
      %1661 = vrot.lane.b32.xlu0 %v1593, 32
      %v1662 = vpop.permute.xlu0 %1661
      %1663 = vrot.lane.b32.xlu0 %v1594, 32
      %v1664 = vpop.permute.xlu0 %1663
      %1665 = vrot.lane.b32.xlu0 %v1595, 32
      %v1666 = vpop.permute.xlu0 %1665
      %1667 = vrot.lane.b32.xlu0 %v1596, 32
      %v1668 = vpop.permute.xlu0 %1667
      %1669 = vrot.lane.b32.xlu0 %v1597, 32
      %v1670 = vpop.permute.xlu0 %1669
      %1671 = vrot.lane.b32.xlu0 %v1598, 32
      %v1672 = vpop.permute.xlu0 %1671
      %1673 = vrot.lane.b32.xlu0 %v1599, 32
      %v1674 = vpop.permute.xlu0 %1673
      %1675 = vrot.lane.b32.xlu0 %v1600, 32
      %v1676 = vpop.permute.xlu0 %1675
      %1677 = vrot.lane.b32.xlu0 %v1601, 32
      %v1678 = vpop.permute.xlu0 %1677
      %1679 = vrot.lane.b32.xlu0 %v1602, 32
      %v1680 = vpop.permute.xlu0 %1679
      %1681 = vrot.lane.b32.xlu0 %v1603, 32
      %v1682 = vpop.permute.xlu0 %1681
      %1683 = vrot.lane.b32.xlu0 %v1604, 32
      %v1684 = vpop.permute.xlu0 %1683
      %1685 = vrot.lane.b32.xlu0 %v1605, 32
      %v1686 = vpop.permute.xlu0 %1685
      %1687 = vrot.lane.b32.xlu0 %v1606, 32
      %v1688 = vpop.permute.xlu0 %1687
      %1689 = vrot.lane.b32.xlu0 %v1607, 32
      %v1690 = vpop.permute.xlu0 %1689
      %1691 = vrot.lane.b32.xlu0 %v1608, 32
      %v1692 = vpop.permute.xlu0 %1691
      %1693 = vrot.lane.b32.xlu0 %v1609, 32
      %v1694 = vpop.permute.xlu0 %1693
      %1695 = vrot.lane.b32.xlu0 %v1610, 32
      %v1696 = vpop.permute.xlu0 %1695
      %1697 = vrot.lane.b32.xlu0 %v1611, 32
      %v1698 = vpop.permute.xlu0 %1697
      %1699 = vrot.lane.b32.xlu0 %v1612, 32
      %v1700 = vpop.permute.xlu0 %1699
      %1701 = vrot.lane.b32.xlu0 %v1613, 32
      %v1702 = vpop.permute.xlu0 %1701
      %1703 = vrot.lane.b32.xlu0 %v1614, 32
      %v1704 = vpop.permute.xlu0 %1703
      %1705 = vrot.lane.b32.xlu0 %v1615, 32
      %v1706 = vpop.permute.xlu0 %1705
      %1707 = vrot.lane.b32.xlu0 %v1616, 32
      %v1708 = vpop.permute.xlu0 %1707
      %1709 = vrot.lane.b32.xlu0 %v1617, 32
      %v1710 = vpop.permute.xlu0 %1709
      %1711 = vrot.lane.b32.xlu0 %v1618, 32
      %v1712 = vpop.permute.xlu0 %1711
      %1713 = vrot.lane.b32.xlu0 %v1619, 32
      %v1714 = vpop.permute.xlu0 %1713
      %1715 = vrot.lane.b32.xlu0 %v1620, 32
      %v1716 = vpop.permute.xlu0 %1715
      %vm1749 = vcmask 294144
      %1750 = vst.msk [vmem:[#allocation2] sm:$0xff] %vm1749, %v1654
      %1751 = vst.msk [vmem:[#allocation2 + $0x8] sm:$0xff] %vm1749, %v1656
      %1752 = vst.msk [vmem:[#allocation2 + $0x10] sm:$0xff] %vm1749, %v1658
      %1753 = vst.msk [vmem:[#allocation2 + $0x18] sm:$0xff] %vm1749, %v1660
      %1754 = vst.msk [vmem:[#allocation2 + $0x20] sm:$0xff] %vm1749, %v1662
      %1755 = vst.msk [vmem:[#allocation2 + $0x28] sm:$0xff] %vm1749, %v1664
      %1756 = vst.msk [vmem:[#allocation2 + $0x30] sm:$0xff] %vm1749, %v1666
      %1757 = vst.msk [vmem:[#allocation2 + $0x38] sm:$0xff] %vm1749, %v1668
      %1758 = vst.msk [vmem:[#allocation2 + $0x40] sm:$0xff] %vm1749, %v1670
      %1759 = vst.msk [vmem:[#allocation2 + $0x48] sm:$0xff] %vm1749, %v1672
      %1760 = vst.msk [vmem:[#allocation2 + $0x50] sm:$0xff] %vm1749, %v1674
      %1761 = vst.msk [vmem:[#allocation2 + $0x58] sm:$0xff] %vm1749, %v1676
      %1762 = vst.msk [vmem:[#allocation2 + $0x60] sm:$0xff] %vm1749, %v1678
      %1763 = vst.msk [vmem:[#allocation2 + $0x68] sm:$0xff] %vm1749, %v1680
      %1764 = vst.msk [vmem:[#allocation2 + $0x70] sm:$0xff] %vm1749, %v1682
      %1765 = vst.msk [vmem:[#allocation2 + $0x78] sm:$0xff] %vm1749, %v1684
      %1766 = vst.msk [vmem:[#allocation2 + $0x80] sm:$0xff] %vm1749, %v1686
      %1767 = vst.msk [vmem:[#allocation2 + $0x88] sm:$0xff] %vm1749, %v1688
      %1768 = vst.msk [vmem:[#allocation2 + $0x90] sm:$0xff] %vm1749, %v1690
      %1769 = vst.msk [vmem:[#allocation2 + $0x98] sm:$0xff] %vm1749, %v1692
      %1770 = vst.msk [vmem:[#allocation2 + $0xa0] sm:$0xff] %vm1749, %v1694
      %1771 = vst.msk [vmem:[#allocation2 + $0xa8] sm:$0xff] %vm1749, %v1696
      %1772 = vst.msk [vmem:[#allocation2 + $0xb0] sm:$0xff] %vm1749, %v1698
      %1773 = vst.msk [vmem:[#allocation2 + $0xb8] sm:$0xff] %vm1749, %v1700
      %1774 = vst.msk [vmem:[#allocation2 + $0xc0] sm:$0xff] %vm1749, %v1702
      %1775 = vst.msk [vmem:[#allocation2 + $0xc8] sm:$0xff] %vm1749, %v1704
      %1776 = vst.msk [vmem:[#allocation2 + $0xd0] sm:$0xff] %vm1749, %v1706
      %1777 = vst.msk [vmem:[#allocation2 + $0xd8] sm:$0xff] %vm1749, %v1708
      %1778 = vst.msk [vmem:[#allocation2 + $0xe0] sm:$0xff] %vm1749, %v1710
      %1779 = vst.msk [vmem:[#allocation2 + $0xe8] sm:$0xff] %vm1749, %v1712
      %1780 = vst.msk [vmem:[#allocation2 + $0xf0] sm:$0xff] %vm1749, %v1714
      %1781 = vst.msk [vmem:[#allocation2 + $0xf8] sm:$0xff] %vm1749, %v1716
      %v1782 = vld [vmem:[#allocation2] sm:$0xff]
      %v1783 = vld [vmem:[#allocation2 + $0x8] sm:$0xff]
      %v1784 = vld [vmem:[#allocation2 + $0x10] sm:$0xff]
      %v1785 = vld [vmem:[#allocation2 + $0x18] sm:$0xff]
      %v1786 = vld [vmem:[#allocation2 + $0x20] sm:$0xff]
      %v1787 = vld [vmem:[#allocation2 + $0x28] sm:$0xff]
      %v1788 = vld [vmem:[#allocation2 + $0x30] sm:$0xff]
      %v1789 = vld [vmem:[#allocation2 + $0x38] sm:$0xff]
      %v1790 = vld [vmem:[#allocation2 + $0x40] sm:$0xff]
      %v1791 = vld [vmem:[#allocation2 + $0x48] sm:$0xff]
      %v1792 = vld [vmem:[#allocation2 + $0x50] sm:$0xff]
      %v1793 = vld [vmem:[#allocation2 + $0x58] sm:$0xff]
      %v1794 = vld [vmem:[#allocation2 + $0x60] sm:$0xff]
      %v1795 = vld [vmem:[#allocation2 + $0x68] sm:$0xff]
      %v1796 = vld [vmem:[#allocation2 + $0x70] sm:$0xff]
      %v1797 = vld [vmem:[#allocation2 + $0x78] sm:$0xff]
      %v1798 = vld [vmem:[#allocation2 + $0x80] sm:$0xff]
      %v1799 = vld [vmem:[#allocation2 + $0x88] sm:$0xff]
      %v1800 = vld [vmem:[#allocation2 + $0x90] sm:$0xff]
      %v1801 = vld [vmem:[#allocation2 + $0x98] sm:$0xff]
      %v1802 = vld [vmem:[#allocation2 + $0xa0] sm:$0xff]
      %v1803 = vld [vmem:[#allocation2 + $0xa8] sm:$0xff]
      %v1804 = vld [vmem:[#allocation2 + $0xb0] sm:$0xff]
      %v1805 = vld [vmem:[#allocation2 + $0xb8] sm:$0xff]
      %v1806 = vld [vmem:[#allocation2 + $0xc0] sm:$0xff]
      %v1807 = vld [vmem:[#allocation2 + $0xc8] sm:$0xff]
      %v1808 = vld [vmem:[#allocation2 + $0xd0] sm:$0xff]
      %v1809 = vld [vmem:[#allocation2 + $0xd8] sm:$0xff]
      %v1810 = vld [vmem:[#allocation2 + $0xe0] sm:$0xff]
      %v1811 = vld [vmem:[#allocation2 + $0xe8] sm:$0xff]
      %v1812 = vld [vmem:[#allocation2 + $0xf0] sm:$0xff]
      %v1813 = vld [vmem:[#allocation2 + $0xf8] sm:$0xff]
      %v1814 = vld [vmem:[%s1] sm:$0xff]
      %v1815 = vld [vmem:[%s1 + $0x8] sm:$0xff]
      %v1816 = vld [vmem:[%s1 + $0x10] sm:$0xff]
      %v1817 = vld [vmem:[%s1 + $0x18] sm:$0xff]
      %v1818 = vld [vmem:[%s1 + $0x20] sm:$0xf]
      %v1819 = vld [vmem:[%s2] sm:$0x1]
      %v1821 = vlaneseq
      %v1822 = vshrl.u32 %v1821, 7
      %v1823 = vsub.s32 0, %v1822
      %v1824 = vrot.slane %v1819, %v1823
      %vm1826 = vcmask 293888
      %v1828 = vsel %vm1826, %v1782, 0
      %v1831 = vsel %vm1826, %v1783, 0
      %v1834 = vsel %vm1826, %v1784, 0
      %v1837 = vsel %vm1826, %v1785, 0
      %v1840 = vsel %vm1826, %v1786, 0
      %v1843 = vsel %vm1826, %v1787, 0
      %v1846 = vsel %vm1826, %v1788, 0
      %v1849 = vsel %vm1826, %v1789, 0
      %v1852 = vsel %vm1826, %v1790, 0
      %v1855 = vsel %vm1826, %v1791, 0
      %v1858 = vsel %vm1826, %v1792, 0
      %v1861 = vsel %vm1826, %v1793, 0
      %v1864 = vsel %vm1826, %v1794, 0
      %v1867 = vsel %vm1826, %v1795, 0
      %v1870 = vsel %vm1826, %v1796, 0
      %v1873 = vsel %vm1826, %v1797, 0
      %v1876 = vsel %vm1826, %v1798, 0
      %v1879 = vsel %vm1826, %v1799, 0
      %v1882 = vsel %vm1826, %v1800, 0
      %v1885 = vsel %vm1826, %v1801, 0
      %v1888 = vsel %vm1826, %v1802, 0
      %v1891 = vsel %vm1826, %v1803, 0
      %v1894 = vsel %vm1826, %v1804, 0
      %v1897 = vsel %vm1826, %v1805, 0
      %v1900 = vsel %vm1826, %v1806, 0
      %v1903 = vsel %vm1826, %v1807, 0
      %v1906 = vsel %vm1826, %v1808, 0
      %v1909 = vsel %vm1826, %v1809, 0
      %v1912 = vsel %vm1826, %v1810, 0
      %v1915 = vsel %vm1826, %v1811, 0
      %v1918 = vsel %vm1826, %v1812, 0
      %v1921 = vsel %vm1826, %v1813, 0
      %vm1923 = vcmask 1043456
      %v1925 = vsel %vm1923, %v1818, 0
      %1927 = vmatprep.subr.mxu0 0.0
      %1928 = vmatpush1.msra.mxu0 %v1814
      %1929 = vmatprep.subr.mxu0 0.0
      %1930 = vmatpush1.msra.mxu0 %v1815
      %1931 = vmatprep.subr.mxu0 0.0
      %1932 = vmatpush1.msra.mxu0 %v1816
      %1933 = vmatprep.subr.mxu0 0.0
      %1934 = vmatpush1.msra.mxu0 %v1817
      %1935 = vmatprep.subr.mxu0 0.0
      %1936 = vmatpush1.msra.mxu0 %v1925
      %1937 = vmatprep.subr.mxu0 0.0
      %1938 = vmatpush1.msra.mxu0 0.0
      %1939 = vmatprep.subr.mxu0 0.0
      %1940 = vmatpush1.msra.mxu0 0.0
      %1941 = vmatprep.subr.mxu0 0.0
      %1942 = vmatpush1.msra.mxu0 0.0
      %1943 = vmatprep.subr.mxu0 0.0
      %1944 = vmatpush1.msra.mxu0 0.0
      %1945 = vmatprep.subr.mxu0 0.0
      %1946 = vmatpush1.msra.mxu0 0.0
      %1947 = vmatprep.subr.mxu0 0.0
      %1948 = vmatpush1.msra.mxu0 0.0
      %1949 = vmatprep.subr.mxu0 0.0
      %1950 = vmatpush1.msra.mxu0 0.0
      %1951 = vmatprep.subr.mxu0 0.0
      %1952 = vmatpush1.msra.mxu0 0.0
      %1953 = vmatprep.subr.mxu0 0.0
      %1954 = vmatpush1.msra.mxu0 0.0
      %1955 = vmatprep.subr.mxu0 0.0
      %1956 = vmatpush1.msra.mxu0 0.0
      %1957 = vmatprep.subr.mxu0 0.0
      %1958 = vmatpush1.msra.mxu0 0.0
      %1959 = vmatprep.subr.mxu0 0.0
      %1960 = vmatpush1.msra.mxu0 0.0
      %1961 = vmatprep.subr.mxu0 0.0
      %1962 = vmatpush1.msra.mxu0 0.0
      %1963 = vmatprep.subr.mxu0 0.0
      %1964 = vmatpush1.msra.mxu0 0.0
      %1965 = vmatprep.subr.mxu0 0.0
      %1966 = vmatpush1.msra.mxu0 0.0
      %1967 = vmatprep.subr.mxu0 0.0
      %1968 = vmatpush1.msra.mxu0 0.0
      %1969 = vmatprep.subr.mxu0 0.0
      %1970 = vmatpush1.msra.mxu0 0.0
      %1971 = vmatprep.subr.mxu0 0.0
      %1972 = vmatpush1.msra.mxu0 0.0
      %1973 = vmatprep.subr.mxu0 0.0
      %1974 = vmatpush1.msra.mxu0 0.0
      %1975 = vmatprep.subr.mxu0 0.0
      %1976 = vmatpush1.msra.mxu0 0.0
      %1977 = vmatprep.subr.mxu0 0.0
      %1978 = vmatpush1.msra.mxu0 0.0
      %1979 = vmatprep.subr.mxu0 0.0
      %1980 = vmatpush1.msra.mxu0 0.0
      %1981 = vmatprep.subr.mxu0 0.0
      %1982 = vmatpush1.msra.mxu0 0.0
      %1983 = vmatprep.subr.mxu0 0.0
      %1984 = vmatpush1.msra.mxu0 0.0
      %1985 = vmatprep.subr.mxu0 0.0
      %1986 = vmatpush1.msra.mxu0 0.0
      %1987 = vmatprep.subr.mxu0 0.0
      %1988 = vmatpush1.msra.mxu0 0.0
      %1989 = vmatprep.subr.mxu0 0.0
      %1990 = vmatpush1.msra.mxu0 0.0
      %1991 = vmatprep.mubr.f32.mxu0 0.0
      %1992 = vmatmul.mubr.f32.gmra.mrb[0].mxu0 %v1828
      %v1993 = vpop.f32.mrb[0].mxu0
      %v1994 = vadd.f32 %v1824, %v1993
      %v1995 = vpop.f32.mrb[0].mxu0
      %1996 = vmatprep.mubr.f32.mxu0 0.0
      %1997 = vmatmul.mubr.f32.gmra.mrb[0].mxu0 %v1831
      %v1998 = vpop.f32.mrb[0].mxu0
      %v1999 = vadd.f32 %v1824, %v1998
      %v2000 = vpop.f32.mrb[0].mxu0
      %2001 = vmatprep.mubr.f32.mxu0 0.0
      %2002 = vmatmul.mubr.f32.gmra.mrb[0].mxu0 %v1834
      %v2003 = vpop.f32.mrb[0].mxu0
      %v2004 = vadd.f32 %v1824, %v2003
      %v2005 = vpop.f32.mrb[0].mxu0
      %2006 = vmatprep.mubr.f32.mxu0 0.0
      %2007 = vmatmul.mubr.f32.gmra.mrb[0].mxu0 %v1837
      %v2008 = vpop.f32.mrb[0].mxu0
      %v2009 = vadd.f32 %v1824, %v2008
      %v2010 = vpop.f32.mrb[0].mxu0
      %2011 = vmatprep.mubr.f32.mxu0 0.0
      %2012 = vmatmul.mubr.f32.gmra.mrb[0].mxu0 %v1840
      %v2013 = vpop.f32.mrb[0].mxu0
      %v2014 = vadd.f32 %v1824, %v2013
      %v2015 = vpop.f32.mrb[0].mxu0
      %2016 = vmatprep.mubr.f32.mxu0 0.0
      %2017 = vmatmul.mubr.f32.gmra.mrb[0].mxu0 %v1843
      %v2018 = vpop.f32.mrb[0].mxu0
      %v2019 = vadd.f32 %v1824, %v2018
      %v2020 = vpop.f32.mrb[0].mxu0
      %2021 = vmatprep.mubr.f32.mxu0 0.0
      %2022 = vmatmul.mubr.f32.gmra.mrb[0].mxu0 %v1846
      %v2023 = vpop.f32.mrb[0].mxu0
      %v2024 = vadd.f32 %v1824, %v2023
      %v2025 = vpop.f32.mrb[0].mxu0
      %2026 = vmatprep.mubr.f32.mxu0 0.0
      %2027 = vmatmul.mubr.f32.gmra.mrb[0].mxu0 %v1849
      %v2028 = vpop.f32.mrb[0].mxu0
      %v2029 = vadd.f32 %v1824, %v2028
      %v2030 = vpop.f32.mrb[0].mxu0
      %2031 = vmatprep.mubr.f32.mxu0 0.0
      %2032 = vmatmul.mubr.f32.gmra.mrb[0].mxu0 %v1852
      %v2033 = vpop.f32.mrb[0].mxu0
      %v2034 = vadd.f32 %v1824, %v2033
      %v2035 = vpop.f32.mrb[0].mxu0
      %2036 = vmatprep.mubr.f32.mxu0 0.0
      %2037 = vmatmul.mubr.f32.gmra.mrb[0].mxu0 %v1855
      %v2038 = vpop.f32.mrb[0].mxu0
      %v2039 = vadd.f32 %v1824, %v2038
      %v2040 = vpop.f32.mrb[0].mxu0
      %2041 = vmatprep.mubr.f32.mxu0 0.0
      %2042 = vmatmul.mubr.f32.gmra.mrb[0].mxu0 %v1858
      %v2043 = vpop.f32.mrb[0].mxu0
      %v2044 = vadd.f32 %v1824, %v2043
      %v2045 = vpop.f32.mrb[0].mxu0
      %2046 = vmatprep.mubr.f32.mxu0 0.0
      %2047 = vmatmul.mubr.f32.gmra.mrb[0].mxu0 %v1861
      %v2048 = vpop.f32.mrb[0].mxu0
      %v2049 = vadd.f32 %v1824, %v2048
      %v2050 = vpop.f32.mrb[0].mxu0
      %2051 = vmatprep.mubr.f32.mxu0 0.0
      %2052 = vmatmul.mubr.f32.gmra.mrb[0].mxu0 %v1864
      %v2053 = vpop.f32.mrb[0].mxu0
      %v2054 = vadd.f32 %v1824, %v2053
      %v2055 = vpop.f32.mrb[0].mxu0
      %2056 = vmatprep.mubr.f32.mxu0 0.0
      %2057 = vmatmul.mubr.f32.gmra.mrb[0].mxu0 %v1867
      %v2058 = vpop.f32.mrb[0].mxu0
      %v2059 = vadd.f32 %v1824, %v2058
      %v2060 = vpop.f32.mrb[0].mxu0
      %2061 = vmatprep.mubr.f32.mxu0 0.0
      %2062 = vmatmul.mubr.f32.gmra.mrb[0].mxu0 %v1870
      %v2063 = vpop.f32.mrb[0].mxu0
      %v2064 = vadd.f32 %v1824, %v2063
      %v2065 = vpop.f32.mrb[0].mxu0
      %2066 = vmatprep.mubr.f32.mxu0 0.0
      %2067 = vmatmul.mubr.f32.gmra.mrb[0].mxu0 %v1873
      %v2068 = vpop.f32.mrb[0].mxu0
      %v2069 = vadd.f32 %v1824, %v2068
      %v2070 = vpop.f32.mrb[0].mxu0
      %2071 = vmatprep.mubr.f32.mxu0 0.0
      %2072 = vmatmul.mubr.f32.gmra.mrb[0].mxu0 %v1876
      %v2073 = vpop.f32.mrb[0].mxu0
      %v2074 = vadd.f32 %v1824, %v2073
      %v2075 = vpop.f32.mrb[0].mxu0
      %2076 = vmatprep.mubr.f32.mxu0 0.0
      %2077 = vmatmul.mubr.f32.gmra.mrb[0].mxu0 %v1879
      %v2078 = vpop.f32.mrb[0].mxu0
      %v2079 = vadd.f32 %v1824, %v2078
      %v2080 = vpop.f32.mrb[0].mxu0
      %2081 = vmatprep.mubr.f32.mxu0 0.0
      %2082 = vmatmul.mubr.f32.gmra.mrb[0].mxu0 %v1882
      %v2083 = vpop.f32.mrb[0].mxu0
      %v2084 = vadd.f32 %v1824, %v2083
      %v2085 = vpop.f32.mrb[0].mxu0
      %2086 = vmatprep.mubr.f32.mxu0 0.0
      %2087 = vmatmul.mubr.f32.gmra.mrb[0].mxu0 %v1885
      %v2088 = vpop.f32.mrb[0].mxu0
      %v2089 = vadd.f32 %v1824, %v2088
      %v2090 = vpop.f32.mrb[0].mxu0
      %2091 = vmatprep.mubr.f32.mxu0 0.0
      %2092 = vmatmul.mubr.f32.gmra.mrb[0].mxu0 %v1888
      %v2093 = vpop.f32.mrb[0].mxu0
      %v2094 = vadd.f32 %v1824, %v2093
      %v2095 = vpop.f32.mrb[0].mxu0
      %2096 = vmatprep.mubr.f32.mxu0 0.0
      %2097 = vmatmul.mubr.f32.gmra.mrb[0].mxu0 %v1891
      %v2098 = vpop.f32.mrb[0].mxu0
      %v2099 = vadd.f32 %v1824, %v2098
      %v2100 = vpop.f32.mrb[0].mxu0
      %2101 = vmatprep.mubr.f32.mxu0 0.0
      %2102 = vmatmul.mubr.f32.gmra.mrb[0].mxu0 %v1894
      %v2103 = vpop.f32.mrb[0].mxu0
      %v2104 = vadd.f32 %v1824, %v2103
      %v2105 = vpop.f32.mrb[0].mxu0
      %2106 = vmatprep.mubr.f32.mxu0 0.0
      %2107 = vmatmul.mubr.f32.gmra.mrb[0].mxu0 %v1897
      %v2108 = vpop.f32.mrb[0].mxu0
      %v2109 = vadd.f32 %v1824, %v2108
      %v2110 = vpop.f32.mrb[0].mxu0
      %2111 = vmatprep.mubr.f32.mxu0 0.0
      %2112 = vmatmul.mubr.f32.gmra.mrb[0].mxu0 %v1900
      %v2113 = vpop.f32.mrb[0].mxu0
      %v2114 = vadd.f32 %v1824, %v2113
      %v2115 = vpop.f32.mrb[0].mxu0
      %2116 = vmatprep.mubr.f32.mxu0 0.0
      %2117 = vmatmul.mubr.f32.gmra.mrb[0].mxu0 %v1903
      %v2118 = vpop.f32.mrb[0].mxu0
      %v2119 = vadd.f32 %v1824, %v2118
      %v2120 = vpop.f32.mrb[0].mxu0
      %2121 = vmatprep.mubr.f32.mxu0 0.0
      %2122 = vmatmul.mubr.f32.gmra.mrb[0].mxu0 %v1906
      %v2123 = vpop.f32.mrb[0].mxu0
      %v2124 = vadd.f32 %v1824, %v2123
      %v2125 = vpop.f32.mrb[0].mxu0
      %2126 = vmatprep.mubr.f32.mxu0 0.0
      %2127 = vmatmul.mubr.f32.gmra.mrb[0].mxu0 %v1909
      %v2128 = vpop.f32.mrb[0].mxu0
      %v2129 = vadd.f32 %v1824, %v2128
      %v2130 = vpop.f32.mrb[0].mxu0
      %2131 = vmatprep.mubr.f32.mxu0 0.0
      %2132 = vmatmul.mubr.f32.gmra.mrb[0].mxu0 %v1912
      %v2133 = vpop.f32.mrb[0].mxu0
      %v2134 = vadd.f32 %v1824, %v2133
      %v2135 = vpop.f32.mrb[0].mxu0
      %2136 = vmatprep.mubr.f32.mxu0 0.0
      %2137 = vmatmul.mubr.f32.gmra.mrb[0].mxu0 %v1915
      %v2138 = vpop.f32.mrb[0].mxu0
      %v2139 = vadd.f32 %v1824, %v2138
      %v2140 = vpop.f32.mrb[0].mxu0
      %2141 = vmatprep.mubr.f32.mxu0 0.0
      %2142 = vmatmul.mubr.f32.gmra.mrb[0].mxu0 %v1918
      %v2143 = vpop.f32.mrb[0].mxu0
      %v2144 = vadd.f32 %v1824, %v2143
      %v2145 = vpop.f32.mrb[0].mxu0
      %2146 = vmatprep.mubr.f32.mxu0 0.0
      %2147 = vmatmul.mubr.f32.gmra.mrb[0].mxu0 %v1921
      %v2148 = vpop.f32.mrb[0].mxu0
      %v2149 = vadd.f32 %v1824, %v2148
      %v2150 = vpop.f32.mrb[0].mxu0
      %2151 = vdwg.mxu0
      %v2152 = vmax.f32 %v1994, 0.0
      %v2153 = vmax.f32 %v1999, 0.0
      %v2154 = vmax.f32 %v2004, 0.0
      %v2155 = vmax.f32 %v2009, 0.0
      %v2156 = vmax.f32 %v2014, 0.0
      %v2157 = vmax.f32 %v2019, 0.0
      %v2158 = vmax.f32 %v2024, 0.0
      %v2159 = vmax.f32 %v2029, 0.0
      %v2160 = vmax.f32 %v2034, 0.0
      %v2161 = vmax.f32 %v2039, 0.0
      %v2162 = vmax.f32 %v2044, 0.0
      %v2163 = vmax.f32 %v2049, 0.0
      %v2164 = vmax.f32 %v2054, 0.0
      %v2165 = vmax.f32 %v2059, 0.0
      %v2166 = vmax.f32 %v2064, 0.0
      %v2167 = vmax.f32 %v2069, 0.0
      %v2168 = vmax.f32 %v2074, 0.0
      %v2169 = vmax.f32 %v2079, 0.0
      %v2170 = vmax.f32 %v2084, 0.0
      %v2171 = vmax.f32 %v2089, 0.0
      %v2172 = vmax.f32 %v2094, 0.0
      %v2173 = vmax.f32 %v2099, 0.0
      %v2174 = vmax.f32 %v2104, 0.0
      %v2175 = vmax.f32 %v2109, 0.0
      %v2176 = vmax.f32 %v2114, 0.0
      %v2177 = vmax.f32 %v2119, 0.0
      %v2178 = vmax.f32 %v2124, 0.0
      %v2179 = vmax.f32 %v2129, 0.0
      %v2180 = vmax.f32 %v2134, 0.0
      %v2181 = vmax.f32 %v2139, 0.0
      %v2182 = vmax.f32 %v2144, 0.0
      %v2183 = vmax.f32 %v2149, 0.0
      %v2184 = vmax.f32 %v2152, %v2154
      %v2185 = vmax.f32 %v2153, %v2155
      %v2186 = vmax.f32 %v2156, %v2158
      %v2187 = vmax.f32 %v2157, %v2159
      %v2188 = vmax.f32 %v2160, %v2162
      %v2189 = vmax.f32 %v2161, %v2163
      %v2190 = vmax.f32 %v2164, %v2166
      %v2191 = vmax.f32 %v2165, %v2167
      %v2192 = vmax.f32 %v2168, %v2170
      %v2193 = vmax.f32 %v2169, %v2171
      %v2194 = vmax.f32 %v2172, %v2174
      %v2195 = vmax.f32 %v2173, %v2175
      %v2196 = vmax.f32 %v2176, %v2178
      %v2197 = vmax.f32 %v2177, %v2179
      %v2198 = vmax.f32 %v2180, %v2182
      %v2199 = vmax.f32 %v2181, %v2183
      %vm2200 = vcmask 64512
      %2201 = vst.msk [vmem:[#allocation3] sm:$0xff] %vm2200, %v2184
      %2202 = vst.msk [vmem:[#allocation3 + $0x8] sm:$0xff] %vm2200, %v2185
      %2203 = vst.msk [vmem:[#allocation3 + $0x10] sm:$0xff] %vm2200, %v2186
      %2204 = vst.msk [vmem:[#allocation3 + $0x18] sm:$0xff] %vm2200, %v2187
      %2205 = vst.msk [vmem:[#allocation3 + $0x20] sm:$0xff] %vm2200, %v2188
      %2206 = vst.msk [vmem:[#allocation3 + $0x28] sm:$0xff] %vm2200, %v2189
      %2207 = vst.msk [vmem:[#allocation3 + $0x30] sm:$0xff] %vm2200, %v2190
      %2208 = vst.msk [vmem:[#allocation3 + $0x38] sm:$0xff] %vm2200, %v2191
      %2209 = vst.msk [vmem:[#allocation3 + $0x40] sm:$0xff] %vm2200, %v2192
      %2210 = vst.msk [vmem:[#allocation3 + $0x48] sm:$0xff] %vm2200, %v2193
      %2211 = vst.msk [vmem:[#allocation3 + $0x50] sm:$0xff] %vm2200, %v2194
      %2212 = vst.msk [vmem:[#allocation3 + $0x58] sm:$0xff] %vm2200, %v2195
      %2213 = vst.msk [vmem:[#allocation3 + $0x60] sm:$0xff] %vm2200, %v2196
      %2214 = vst.msk [vmem:[#allocation3 + $0x68] sm:$0xff] %vm2200, %v2197
      %2215 = vst.msk [vmem:[#allocation3 + $0x70] sm:$0xff] %vm2200, %v2198
      %2216 = vst.msk [vmem:[#allocation3 + $0x78] sm:$0xff] %vm2200, %v2199
      %v2217 = vld [vmem:[#allocation3] ss:$2 sm:$0xff]
      %s2218 = scalar_lea.vmem [#allocation3], 16
      %v2219 = vld [vmem:[%s2218] ss:$2 sm:$0xff]
      %s2220 = scalar_lea.vmem [#allocation3], 32
      %v2221 = vld [vmem:[%s2220] ss:$2 sm:$0xff]
      %s2222 = scalar_lea.vmem [#allocation3], 48
      %v2223 = vld [vmem:[%s2222] ss:$2 sm:$0xff]
      %s2224 = scalar_lea.vmem [#allocation3], 64
      %v2225 = vld [vmem:[%s2224] ss:$2 sm:$0xff]
      %s2226 = scalar_lea.vmem [#allocation3], 80
      %v2227 = vld [vmem:[%s2226] ss:$2 sm:$0xff]
      %s2228 = scalar_lea.vmem [#allocation3], 96
      %v2229 = vld [vmem:[%s2228] ss:$2 sm:$0xff]
      %s2230 = scalar_lea.vmem [#allocation3], 112
      %v2231 = vld [vmem:[%s2230] ss:$2 sm:$0xff]
      %s2232 = scalar_lea.vmem [#allocation3], 1
      %v2233 = vld [vmem:[%s2232] ss:$2 sm:$0xff]
      %s2234 = scalar_lea.vmem [#allocation3], 17
      %v2235 = vld [vmem:[%s2234] ss:$2 sm:$0xff]
      %s2236 = scalar_lea.vmem [#allocation3], 33
      %v2237 = vld [vmem:[%s2236] ss:$2 sm:$0xff]
      %s2238 = scalar_lea.vmem [#allocation3], 49
      %v2239 = vld [vmem:[%s2238] ss:$2 sm:$0xff]
      %s2240 = scalar_lea.vmem [#allocation3], 65
      %v2241 = vld [vmem:[%s2240] ss:$2 sm:$0xff]
      %s2242 = scalar_lea.vmem [#allocation3], 81
      %v2243 = vld [vmem:[%s2242] ss:$2 sm:$0xff]
      %s2244 = scalar_lea.vmem [#allocation3], 97
      %v2245 = vld [vmem:[%s2244] ss:$2 sm:$0xff]
      %s2246 = scalar_lea.vmem [#allocation3], 113
      %v2247 = vld [vmem:[%s2246] ss:$2 sm:$0xff]
      %v2248 = vmax.f32 %v2217, %v2233
      %v2249 = vmax.f32 %v2219, %v2235
      %v2250 = vmax.f32 %v2221, %v2237
      %v2251 = vmax.f32 %v2223, %v2239
      %v2252 = vmax.f32 %v2225, %v2241
      %v2253 = vmax.f32 %v2227, %v2243
      %v2254 = vmax.f32 %v2229, %v2245
      %v2255 = vmax.f32 %v2231, %v2247
      %2256 = vst.msk [vmem:[%s170] sm:$0xff] %vm2200, %v2248
      %2257 = vst.msk [vmem:[%s170 + $0x8] sm:$0xff] %vm2200, %v2249
      %2258 = vst.msk [vmem:[%s170 + $0x10] sm:$0xff] %vm2200, %v2250
      %2259 = vst.msk [vmem:[%s170 + $0x18] sm:$0xff] %vm2200, %v2251
      %2260 = vst.msk [vmem:[%s170 + $0x20] sm:$0xff] %vm2200, %v2252
      %2261 = vst.msk [vmem:[%s170 + $0x28] sm:$0xff] %vm2200, %v2253
      %2262 = vst.msk [vmem:[%s170 + $0x30] sm:$0xff] %vm2200, %v2254
      %2263 = vst.msk [vmem:[%s170 + $0x38] sm:$0xff] %vm2200, %v2255
      %p2264 = scmp.lt.s32.totalorder %s14, 1
      %s2265 = scalar_select %p2264, %s14, 1
      %s2266 = smul.addr %s2265, 8
      %s2267 = smul.addr %s2266, 8
      %s2268 = scalar_lea.vmem %s3, %s2267
      // Predicated region
      $region33: #{cnn_forward.3} parent=31 // pred_check
        %p2269 = pneg %p100
      $region34: #{cnn_forward.3} parent=31 // pred_check_branch
        %2271 = sbr.rel (%p2269) target = $region36
      $region35: #{cnn_forward.3} parent=31 // pred_region
        _
      $region36: #{cnn_forward.3} parent=31 // pred_fallthru
        _
    $region32: #{cnn_forward.3} parent=5 // pred_fallthru
      _
    %p2272 = scmp.le.s32.totalorder 2, %s9
    // Predicated region
    $region37: #{cnn_forward.3} parent=5 // pred_check
      %p2273 = pneg %p2272
    $region38: #{cnn_forward.3} parent=5 // pred_check_branch
      %2275 = sbr.rel (%p2273) target = $region40
    $region39: #{cnn_forward.3} parent=5 // pred_region
      %s2276 = ssub.s32 %s9, 2
      // Predicated region
      $region41: #{cnn_forward.3} parent=39 // pred_check
        %p2277 = pneg %p106
      $region42: #{cnn_forward.3} parent=39 // pred_check_branch
        %2279 = sbr.rel (%p2277) target = $region44
      $region43: #{cnn_forward.3} parent=39 // pred_region
        %p2280 = scmp.lt.s32.totalorder %s15, 1
        %s2281 = scalar_select %p2280, %s15, 1
        %s2282 = smul.addr %s2281, 8
        %s2283 = smul.addr %s2282, 8
        %s2284 = scalar_lea.vmem %s3, %s2283
      $region44: #{cnn_forward.3} parent=39 // pred_fallthru
        _
    $region40: #{cnn_forward.3} parent=5 // pred_fallthru
      _
  $region6: #{cnn_forward.3} parent=0 // loop_footer
    %s13 = sadd.s32 1, %s9
  $region7: #{cnn_forward.3} parent=0 // loop_footer_branch
    %8 = sbr.rel target = $region3
  $region8: #{cnn_forward.3} parent=0 // loop_exit
    _

</llo_original>
